<compile_context>
chip_gen: v5e
topology: v5e:2x2
jax: 0.10.0
libtpu: 0.0.40
codegen_flags: <defaults>
</compile_context>

<pallas_src>
import jax
import jax.numpy as jnp
from jax.experimental import pallas as pl
from jax.experimental.pallas import tpu as pltpu

# Model hyper-parameters (embeddingDim must be >= 4+8+12-3+1 = 22 for valid convs).
PROTEIN_LEN = 16   # vocab size of the embedding == Conv1d(1) in_channels
EMBED_DIM = 32     # embedding dim == the "length" axis the convs slide over
C1, K1 = 32, 4
C2, K2 = 64, 8
C3, K3 = 128, 12

L1 = EMBED_DIM - K1 + 1   # 29
L2 = L1 - K2 + 1          # 22
L3 = L2 - K3 + 1          # 11

BATCH = 16
B_PER_STEP = 8            # batch elements fused per grid step -> grid=(2,) for 2 TCs


def _protein_kernel(e_ref, w1_ref, b1_ref, w2_ref, b2_ref, w3_ref, b3_ref, o_ref):
    """One grid step = B_PER_STEP batch elements.

    e_ref : (B_PER_STEP*EMBED_DIM, PROTEIN_LEN) bf16  (length, channels), batches
            stacked along the sublane axis
    wX_ref: (Kx*Cin_x, Cout_x) bf16                   merged tap-major weights
    bX_ref: (1, Cout_x) f32
    o_ref : (B_PER_STEP, C3) f32                      lane-dense per-batch means
    """
    bb = B_PER_STEP

    def conv_relu(h, length, w_ref, b_ref, k):
        # h: (bb*length, Cin) f32; batch b occupies rows [b*length, (b+1)*length).
        lout = length - k + 1
        cols = []
        for b in range(bb):                       # static unroll over fused batches
            xb = h[b * length:(b + 1) * length, :]
            # im2col built once per layer: (lout, k*Cin), feature index = kk*Cin + c
            cols.append(jnp.concatenate(
                [xb[kk:kk + lout, :] for kk in range(k)], axis=1))
        cols_all = jnp.concatenate(cols, axis=0).astype(jnp.bfloat16)  # (bb*lout, k*Cin)
        # Single MXU matmul per layer, bf16 operands, f32 accumulation.
        y = jnp.dot(cols_all, w_ref[...], preferred_element_type=jnp.float32)
        return jnp.maximum(y + b_ref[...], 0.0), lout  # (bb*lout, Cout) f32

    h = e_ref[...].astype(jnp.float32)                    # (bb*32, 16)
    h, l1 = conv_relu(h, EMBED_DIM, w1_ref, b1_ref, K1)   # (bb*29, 32)
    h, l2 = conv_relu(h, l1, w2_ref, b2_ref, K2)          # (bb*22, 64)
    h, l3 = conv_relu(h, l2, w3_ref, b3_ref, K3)          # (bb*11, 128)

    # Per-batch mean over the l3 length rows as one (bb, bb*l3) @ (bb*l3, C3) matmul,
    # producing the lane-dense (bb, 128) output tile in a single unmasked store.
    row = jax.lax.broadcasted_iota(jnp.int32, (bb, bb * l3), 0)
    col = jax.lax.broadcasted_iota(jnp.int32, (bb, bb * l3), 1)
    seg = (col >= row * l3) & (col < (row + 1) * l3)
    avg = jnp.where(seg, 1.0 / l3, 0.0).astype(jnp.float32)
    o_ref[...] = jnp.dot(avg, h, preferred_element_type=jnp.float32)


def pack_params(params):
    """One-time re-layout of the model parameters into the kernel's merged bf16 format."""
    emb_tab, (w1, b1), (w2, b2), (w3, b3) = params

    def pack_w(w):   # (Cout, Cin, K) -> (K*Cin, Cout), tap-major rows, bf16
        cout, cin, k = w.shape
        return jnp.transpose(w, (2, 1, 0)).reshape(k * cin, cout).astype(jnp.bfloat16)

    def pack_b(bias):  # (Cout,) -> (1, Cout), f32
        return bias.reshape(1, -1).astype(jnp.float32)

    return (emb_tab.astype(jnp.bfloat16),
            pack_w(w1), pack_b(b1),
            pack_w(w2), pack_b(b2),
            pack_w(w3), pack_b(b3))


def protein_net_forward(x_idx, packed):
    """x_idx: (B, PROTEIN_LEN) int32 indices into the embedding table -> (B, C3) f32."""
    emb_tab, w1p, b1p, w2p, b2p, w3p, b3p = packed
    b = x_idx.shape[0]
    assert b % B_PER_STEP == 0, (b, B_PER_STEP)

    # Glue: embedding gather, then (length, channels) layout with the batch stacked
    # along the sublane axis: (B*EMBED_DIM, PROTEIN_LEN), bf16 (half the DMA bytes).
    e = jnp.transpose(emb_tab[x_idx], (0, 2, 1)).reshape(b * EMBED_DIM, PROTEIN_LEN)

    def const_spec(shape):
        return pl.BlockSpec(shape, lambda i: (0,) * len(shape))

    out = pl.pallas_call(
        _protein_kernel,
        out_shape=jax.ShapeDtypeStruct((b, C3), jnp.float32),
        grid=(b // B_PER_STEP,),
        in_specs=[
            pl.BlockSpec((B_PER_STEP * EMBED_DIM, PROTEIN_LEN), lambda i: (i, 0)),
            const_spec((K1 * PROTEIN_LEN, C1)),
            const_spec((1, C1)),
            const_spec((K2 * C1, C2)),
            const_spec((1, C2)),
            const_spec((K3 * C2, C3)),
            const_spec((1, C3)),
        ],
        out_specs=pl.BlockSpec((B_PER_STEP, C3), lambda i: (i, 0)),
        compiler_params=pltpu.CompilerParams(dimension_semantics=("parallel",)),
    )(e, w1p, b1p, w2p, b2p, w3p, b3p)
    return out


def reference_forward(x_idx, params):
    """Pure-JAX reference with PyTorch NCL valid-conv semantics (f32 compute)."""
    emb_tab, *convs = params
    h = emb_tab[x_idx].astype(jnp.float32)   # (B, P, D) treated as (N, C, L)
    for w, bias in convs:
        h = jax.lax.conv_general_dilated(
            h, w.astype(jnp.float32), window_strides=(1,), padding="VALID",
            dimension_numbers=("NCH", "OIH", "NCH"))
        h = jax.nn.relu(h + bias.astype(jnp.float32)[None, :, None])
    return h.mean(axis=2)


def init_params(key):
    k_emb, k1w, k1b, k2w, k2b, k3w, k3b = jax.random.split(key, 7)
    # nn.Embedding default init N(0,1); table stored in bf16 (the kernel's DMA dtype).
    emb_tab = jax.random.normal(
        k_emb, (PROTEIN_LEN, EMBED_DIM), jnp.float32).astype(jnp.bfloat16)

    def conv_init(kw, kb, cout, cin, k):
        bound = 1.0 / (cin * k) ** 0.5  # PyTorch Conv1d default U(-sqrt(1/fan_in), +)
        w = jax.random.uniform(kw, (cout, cin, k), jnp.float32,
                               -bound, bound).astype(jnp.bfloat16)
        bias = jax.random.uniform(kb, (cout,), jnp.float32, -bound, bound)
        return w, bias

    return (
        emb_tab,
        conv_init(k1w, k1b, C1, PROTEIN_LEN, K1),
        conv_init(k2w, k2b, C2, C1, K2),
        conv_init(k3w, k3b, C3, C2, K3),
    )


if __name__ == "__main__":
    key = jax.random.PRNGKey(0)
    k_params, k_x = jax.random.split(key)
    params = init_params(k_params)
    packed = pack_params(params)   # one-time weight re-layout (not per forward call)
    x = jax.random.randint(k_x, (BATCH, PROTEIN_LEN), 0, PROTEIN_LEN, dtype=jnp.int32)

    fwd = jax.jit(protein_net_forward)
    out = jax.block_until_ready(fwd(x, packed))
    ref = jax.block_until_ready(reference_forward(x, params))

    assert out.shape == (BATCH, C3), out.shape
    max_err = float(jnp.max(jnp.abs(out - ref)))
    assert jnp.allclose(out, ref, atol=2e-2, rtol=2e-2), f"max abs err = {max_err}"
    print("KERNEL_OK")
</pallas_src>

<mosaic_0001>
module attributes {stable_mosaic.version = 11 : i64} {
  func.func @_protein_kernel(%arg0: i32, %arg1: memref<256x16xbf16, #tpu.memory_space<vmem>>, %arg2: memref<64x32xbf16, #tpu.memory_space<vmem>>, %arg3: memref<1x32xf32, #tpu.memory_space<vmem>>, %arg4: memref<256x64xbf16, #tpu.memory_space<vmem>>, %arg5: memref<1x64xf32, #tpu.memory_space<vmem>>, %arg6: memref<768x128xbf16, #tpu.memory_space<vmem>>, %arg7: memref<1x128xf32, #tpu.memory_space<vmem>>, %arg8: memref<8x128xf32, #tpu.memory_space<vmem>>) attributes {dimension_semantics = [#tpu.dimension_semantics<parallel>], iteration_bounds = array<i64: 2>, scalar_prefetch = 0 : i64, scratch_operands = 0 : i64, tpu.core_type = #tpu.core_type<tc>, window_params = [{transform_indices = @transform_0, window_bounds = array<i64: 256, 16>}, {pipeline_mode = #tpu.pipeline_mode<synchronous>, transform_indices = @transform_1, window_bounds = array<i64: 64, 32>}, {pipeline_mode = #tpu.pipeline_mode<synchronous>, transform_indices = @transform_2, window_bounds = array<i64: 1, 32>}, {pipeline_mode = #tpu.pipeline_mode<synchronous>, transform_indices = @transform_3, window_bounds = array<i64: 256, 64>}, {pipeline_mode = #tpu.pipeline_mode<synchronous>, transform_indices = @transform_4, window_bounds = array<i64: 1, 64>}, {pipeline_mode = #tpu.pipeline_mode<synchronous>, transform_indices = @transform_5, window_bounds = array<i64: 768, 128>}, {pipeline_mode = #tpu.pipeline_mode<synchronous>, transform_indices = @transform_6, window_bounds = array<i64: 1, 128>}, {transform_indices = @transform_7, window_bounds = array<i64: 8, 128>}]} {
    %c0 = arith.constant 0 : index
    %c0_0 = arith.constant 0 : index
    %0 = vector.load %arg1[%c0, %c0_0] : memref<256x16xbf16, #tpu.memory_space<vmem>>, vector<256x16xbf16>
    %1 = arith.extf %0 : vector<256x16xbf16> to vector<256x16xf32>
    %2 = vector.extract_strided_slice %1 {offsets = [0, 0], sizes = [32, 16], strides = [1, 1]} : vector<256x16xf32> to vector<32x16xf32>
    %3 = vector.extract_strided_slice %2 {offsets = [0, 0], sizes = [29, 16], strides = [1, 1]} : vector<32x16xf32> to vector<29x16xf32>
    %4 = vector.extract_strided_slice %2 {offsets = [1, 0], sizes = [29, 16], strides = [1, 1]} : vector<32x16xf32> to vector<29x16xf32>
    %5 = vector.extract_strided_slice %2 {offsets = [2, 0], sizes = [29, 16], strides = [1, 1]} : vector<32x16xf32> to vector<29x16xf32>
    %6 = vector.extract_strided_slice %2 {offsets = [3, 0], sizes = [29, 16], strides = [1, 1]} : vector<32x16xf32> to vector<29x16xf32>
    %7 = tpu.concatenate %3, %4, %5, %6 in 1 : vector<29x16xf32>, vector<29x16xf32>, vector<29x16xf32>, vector<29x16xf32> -> vector<29x64xf32>
    %8 = vector.extract_strided_slice %1 {offsets = [32, 0], sizes = [32, 16], strides = [1, 1]} : vector<256x16xf32> to vector<32x16xf32>
    %9 = vector.extract_strided_slice %8 {offsets = [0, 0], sizes = [29, 16], strides = [1, 1]} : vector<32x16xf32> to vector<29x16xf32>
    %10 = vector.extract_strided_slice %8 {offsets = [1, 0], sizes = [29, 16], strides = [1, 1]} : vector<32x16xf32> to vector<29x16xf32>
    %11 = vector.extract_strided_slice %8 {offsets = [2, 0], sizes = [29, 16], strides = [1, 1]} : vector<32x16xf32> to vector<29x16xf32>
    %12 = vector.extract_strided_slice %8 {offsets = [3, 0], sizes = [29, 16], strides = [1, 1]} : vector<32x16xf32> to vector<29x16xf32>
    %13 = tpu.concatenate %9, %10, %11, %12 in 1 : vector<29x16xf32>, vector<29x16xf32>, vector<29x16xf32>, vector<29x16xf32> -> vector<29x64xf32>
    %14 = vector.extract_strided_slice %1 {offsets = [64, 0], sizes = [32, 16], strides = [1, 1]} : vector<256x16xf32> to vector<32x16xf32>
    %15 = vector.extract_strided_slice %14 {offsets = [0, 0], sizes = [29, 16], strides = [1, 1]} : vector<32x16xf32> to vector<29x16xf32>
    %16 = vector.extract_strided_slice %14 {offsets = [1, 0], sizes = [29, 16], strides = [1, 1]} : vector<32x16xf32> to vector<29x16xf32>
    %17 = vector.extract_strided_slice %14 {offsets = [2, 0], sizes = [29, 16], strides = [1, 1]} : vector<32x16xf32> to vector<29x16xf32>
    %18 = vector.extract_strided_slice %14 {offsets = [3, 0], sizes = [29, 16], strides = [1, 1]} : vector<32x16xf32> to vector<29x16xf32>
    %19 = tpu.concatenate %15, %16, %17, %18 in 1 : vector<29x16xf32>, vector<29x16xf32>, vector<29x16xf32>, vector<29x16xf32> -> vector<29x64xf32>
    %20 = vector.extract_strided_slice %1 {offsets = [96, 0], sizes = [32, 16], strides = [1, 1]} : vector<256x16xf32> to vector<32x16xf32>
    %21 = vector.extract_strided_slice %20 {offsets = [0, 0], sizes = [29, 16], strides = [1, 1]} : vector<32x16xf32> to vector<29x16xf32>
    %22 = vector.extract_strided_slice %20 {offsets = [1, 0], sizes = [29, 16], strides = [1, 1]} : vector<32x16xf32> to vector<29x16xf32>
    %23 = vector.extract_strided_slice %20 {offsets = [2, 0], sizes = [29, 16], strides = [1, 1]} : vector<32x16xf32> to vector<29x16xf32>
    %24 = vector.extract_strided_slice %20 {offsets = [3, 0], sizes = [29, 16], strides = [1, 1]} : vector<32x16xf32> to vector<29x16xf32>
    %25 = tpu.concatenate %21, %22, %23, %24 in 1 : vector<29x16xf32>, vector<29x16xf32>, vector<29x16xf32>, vector<29x16xf32> -> vector<29x64xf32>
    %26 = vector.extract_strided_slice %1 {offsets = [128, 0], sizes = [32, 16], strides = [1, 1]} : vector<256x16xf32> to vector<32x16xf32>
    %27 = vector.extract_strided_slice %26 {offsets = [0, 0], sizes = [29, 16], strides = [1, 1]} : vector<32x16xf32> to vector<29x16xf32>
    %28 = vector.extract_strided_slice %26 {offsets = [1, 0], sizes = [29, 16], strides = [1, 1]} : vector<32x16xf32> to vector<29x16xf32>
    %29 = vector.extract_strided_slice %26 {offsets = [2, 0], sizes = [29, 16], strides = [1, 1]} : vector<32x16xf32> to vector<29x16xf32>
    %30 = vector.extract_strided_slice %26 {offsets = [3, 0], sizes = [29, 16], strides = [1, 1]} : vector<32x16xf32> to vector<29x16xf32>
    %31 = tpu.concatenate %27, %28, %29, %30 in 1 : vector<29x16xf32>, vector<29x16xf32>, vector<29x16xf32>, vector<29x16xf32> -> vector<29x64xf32>
    %32 = vector.extract_strided_slice %1 {offsets = [160, 0], sizes = [32, 16], strides = [1, 1]} : vector<256x16xf32> to vector<32x16xf32>
    %33 = vector.extract_strided_slice %32 {offsets = [0, 0], sizes = [29, 16], strides = [1, 1]} : vector<32x16xf32> to vector<29x16xf32>
    %34 = vector.extract_strided_slice %32 {offsets = [1, 0], sizes = [29, 16], strides = [1, 1]} : vector<32x16xf32> to vector<29x16xf32>
    %35 = vector.extract_strided_slice %32 {offsets = [2, 0], sizes = [29, 16], strides = [1, 1]} : vector<32x16xf32> to vector<29x16xf32>
    %36 = vector.extract_strided_slice %32 {offsets = [3, 0], sizes = [29, 16], strides = [1, 1]} : vector<32x16xf32> to vector<29x16xf32>
    %37 = tpu.concatenate %33, %34, %35, %36 in 1 : vector<29x16xf32>, vector<29x16xf32>, vector<29x16xf32>, vector<29x16xf32> -> vector<29x64xf32>
    %38 = vector.extract_strided_slice %1 {offsets = [192, 0], sizes = [32, 16], strides = [1, 1]} : vector<256x16xf32> to vector<32x16xf32>
    %39 = vector.extract_strided_slice %38 {offsets = [0, 0], sizes = [29, 16], strides = [1, 1]} : vector<32x16xf32> to vector<29x16xf32>
    %40 = vector.extract_strided_slice %38 {offsets = [1, 0], sizes = [29, 16], strides = [1, 1]} : vector<32x16xf32> to vector<29x16xf32>
    %41 = vector.extract_strided_slice %38 {offsets = [2, 0], sizes = [29, 16], strides = [1, 1]} : vector<32x16xf32> to vector<29x16xf32>
    %42 = vector.extract_strided_slice %38 {offsets = [3, 0], sizes = [29, 16], strides = [1, 1]} : vector<32x16xf32> to vector<29x16xf32>
    %43 = tpu.concatenate %39, %40, %41, %42 in 1 : vector<29x16xf32>, vector<29x16xf32>, vector<29x16xf32>, vector<29x16xf32> -> vector<29x64xf32>
    %44 = vector.extract_strided_slice %1 {offsets = [224, 0], sizes = [32, 16], strides = [1, 1]} : vector<256x16xf32> to vector<32x16xf32>
    %45 = vector.extract_strided_slice %44 {offsets = [0, 0], sizes = [29, 16], strides = [1, 1]} : vector<32x16xf32> to vector<29x16xf32>
    %46 = vector.extract_strided_slice %44 {offsets = [1, 0], sizes = [29, 16], strides = [1, 1]} : vector<32x16xf32> to vector<29x16xf32>
    %47 = vector.extract_strided_slice %44 {offsets = [2, 0], sizes = [29, 16], strides = [1, 1]} : vector<32x16xf32> to vector<29x16xf32>
    %48 = vector.extract_strided_slice %44 {offsets = [3, 0], sizes = [29, 16], strides = [1, 1]} : vector<32x16xf32> to vector<29x16xf32>
    %49 = tpu.concatenate %45, %46, %47, %48 in 1 : vector<29x16xf32>, vector<29x16xf32>, vector<29x16xf32>, vector<29x16xf32> -> vector<29x64xf32>
    %50 = tpu.concatenate %7, %13, %19, %25, %31, %37, %43, %49 in 0 : vector<29x64xf32>, vector<29x64xf32>, vector<29x64xf32>, vector<29x64xf32>, vector<29x64xf32>, vector<29x64xf32>, vector<29x64xf32>, vector<29x64xf32> -> vector<232x64xf32>
    %51 = arith.truncf %50 : vector<232x64xf32> to vector<232x64xbf16>
    %c0_1 = arith.constant 0 : index
    %c0_2 = arith.constant 0 : index
    %52 = vector.load %arg2[%c0_1, %c0_2] : memref<64x32xbf16, #tpu.memory_space<vmem>>, vector<64x32xbf16>
    %cst = arith.constant dense<0.000000e+00> : vector<232x32xf32>
    %53 = tpu.matmul %51, %52, %cst {dimension_numbers = #tpu.dot_dimension_numbers<[1], [0], [0], [1], [0, 0, 1, 1], [], []>} : vector<232x64xbf16>, vector<64x32xbf16>, vector<232x32xf32> -> vector<232x32xf32>
    %c0_3 = arith.constant 0 : index
    %c0_4 = arith.constant 0 : index
    %54 = vector.load %arg3[%c0_3, %c0_4] : memref<1x32xf32, #tpu.memory_space<vmem>>, vector<1x32xf32>
    %55 = vector.broadcast %54 : vector<1x32xf32> to vector<232x32xf32>
    %56 = arith.addf %53, %55 : vector<232x32xf32>
    %cst_5 = arith.constant 0.000000e+00 : f32
    %57 = vector.broadcast %cst_5 : f32 to vector<232x32xf32>
    %58 = arith.maximumf %56, %57 : vector<232x32xf32>
    %59 = vector.extract_strided_slice %58 {offsets = [0, 0], sizes = [29, 32], strides = [1, 1]} : vector<232x32xf32> to vector<29x32xf32>
    %60 = vector.extract_strided_slice %59 {offsets = [0, 0], sizes = [22, 32], strides = [1, 1]} : vector<29x32xf32> to vector<22x32xf32>
    %61 = vector.extract_strided_slice %59 {offsets = [1, 0], sizes = [22, 32], strides = [1, 1]} : vector<29x32xf32> to vector<22x32xf32>
    %62 = vector.extract_strided_slice %59 {offsets = [2, 0], sizes = [22, 32], strides = [1, 1]} : vector<29x32xf32> to vector<22x32xf32>
    %63 = vector.extract_strided_slice %59 {offsets = [3, 0], sizes = [22, 32], strides = [1, 1]} : vector<29x32xf32> to vector<22x32xf32>
    %64 = vector.extract_strided_slice %59 {offsets = [4, 0], sizes = [22, 32], strides = [1, 1]} : vector<29x32xf32> to vector<22x32xf32>
    %65 = vector.extract_strided_slice %59 {offsets = [5, 0], sizes = [22, 32], strides = [1, 1]} : vector<29x32xf32> to vector<22x32xf32>
    %66 = vector.extract_strided_slice %59 {offsets = [6, 0], sizes = [22, 32], strides = [1, 1]} : vector<29x32xf32> to vector<22x32xf32>
    %67 = vector.extract_strided_slice %59 {offsets = [7, 0], sizes = [22, 32], strides = [1, 1]} : vector<29x32xf32> to vector<22x32xf32>
    %68 = tpu.concatenate %60, %61, %62, %63, %64, %65, %66, %67 in 1 : vector<22x32xf32>, vector<22x32xf32>, vector<22x32xf32>, vector<22x32xf32>, vector<22x32xf32>, vector<22x32xf32>, vector<22x32xf32>, vector<22x32xf32> -> vector<22x256xf32>
    %69 = vector.extract_strided_slice %58 {offsets = [29, 0], sizes = [29, 32], strides = [1, 1]} : vector<232x32xf32> to vector<29x32xf32>
    %70 = vector.extract_strided_slice %69 {offsets = [0, 0], sizes = [22, 32], strides = [1, 1]} : vector<29x32xf32> to vector<22x32xf32>
    %71 = vector.extract_strided_slice %69 {offsets = [1, 0], sizes = [22, 32], strides = [1, 1]} : vector<29x32xf32> to vector<22x32xf32>
    %72 = vector.extract_strided_slice %69 {offsets = [2, 0], sizes = [22, 32], strides = [1, 1]} : vector<29x32xf32> to vector<22x32xf32>
    %73 = vector.extract_strided_slice %69 {offsets = [3, 0], sizes = [22, 32], strides = [1, 1]} : vector<29x32xf32> to vector<22x32xf32>
    %74 = vector.extract_strided_slice %69 {offsets = [4, 0], sizes = [22, 32], strides = [1, 1]} : vector<29x32xf32> to vector<22x32xf32>
    %75 = vector.extract_strided_slice %69 {offsets = [5, 0], sizes = [22, 32], strides = [1, 1]} : vector<29x32xf32> to vector<22x32xf32>
    %76 = vector.extract_strided_slice %69 {offsets = [6, 0], sizes = [22, 32], strides = [1, 1]} : vector<29x32xf32> to vector<22x32xf32>
    %77 = vector.extract_strided_slice %69 {offsets = [7, 0], sizes = [22, 32], strides = [1, 1]} : vector<29x32xf32> to vector<22x32xf32>
    %78 = tpu.concatenate %70, %71, %72, %73, %74, %75, %76, %77 in 1 : vector<22x32xf32>, vector<22x32xf32>, vector<22x32xf32>, vector<22x32xf32>, vector<22x32xf32>, vector<22x32xf32>, vector<22x32xf32>, vector<22x32xf32> -> vector<22x256xf32>
    %79 = vector.extract_strided_slice %58 {offsets = [58, 0], sizes = [29, 32], strides = [1, 1]} : vector<232x32xf32> to vector<29x32xf32>
    %80 = vector.extract_strided_slice %79 {offsets = [0, 0], sizes = [22, 32], strides = [1, 1]} : vector<29x32xf32> to vector<22x32xf32>
    %81 = vector.extract_strided_slice %79 {offsets = [1, 0], sizes = [22, 32], strides = [1, 1]} : vector<29x32xf32> to vector<22x32xf32>
    %82 = vector.extract_strided_slice %79 {offsets = [2, 0], sizes = [22, 32], strides = [1, 1]} : vector<29x32xf32> to vector<22x32xf32>
    %83 = vector.extract_strided_slice %79 {offsets = [3, 0], sizes = [22, 32], strides = [1, 1]} : vector<29x32xf32> to vector<22x32xf32>
    %84 = vector.extract_strided_slice %79 {offsets = [4, 0], sizes = [22, 32], strides = [1, 1]} : vector<29x32xf32> to vector<22x32xf32>
    %85 = vector.extract_strided_slice %79 {offsets = [5, 0], sizes = [22, 32], strides = [1, 1]} : vector<29x32xf32> to vector<22x32xf32>
    %86 = vector.extract_strided_slice %79 {offsets = [6, 0], sizes = [22, 32], strides = [1, 1]} : vector<29x32xf32> to vector<22x32xf32>
    %87 = vector.extract_strided_slice %79 {offsets = [7, 0], sizes = [22, 32], strides = [1, 1]} : vector<29x32xf32> to vector<22x32xf32>
    %88 = tpu.concatenate %80, %81, %82, %83, %84, %85, %86, %87 in 1 : vector<22x32xf32>, vector<22x32xf32>, vector<22x32xf32>, vector<22x32xf32>, vector<22x32xf32>, vector<22x32xf32>, vector<22x32xf32>, vector<22x32xf32> -> vector<22x256xf32>
    %89 = vector.extract_strided_slice %58 {offsets = [87, 0], sizes = [29, 32], strides = [1, 1]} : vector<232x32xf32> to vector<29x32xf32>
    %90 = vector.extract_strided_slice %89 {offsets = [0, 0], sizes = [22, 32], strides = [1, 1]} : vector<29x32xf32> to vector<22x32xf32>
    %91 = vector.extract_strided_slice %89 {offsets = [1, 0], sizes = [22, 32], strides = [1, 1]} : vector<29x32xf32> to vector<22x32xf32>
    %92 = vector.extract_strided_slice %89 {offsets = [2, 0], sizes = [22, 32], strides = [1, 1]} : vector<29x32xf32> to vector<22x32xf32>
    %93 = vector.extract_strided_slice %89 {offsets = [3, 0], sizes = [22, 32], strides = [1, 1]} : vector<29x32xf32> to vector<22x32xf32>
    %94 = vector.extract_strided_slice %89 {offsets = [4, 0], sizes = [22, 32], strides = [1, 1]} : vector<29x32xf32> to vector<22x32xf32>
    %95 = vector.extract_strided_slice %89 {offsets = [5, 0], sizes = [22, 32], strides = [1, 1]} : vector<29x32xf32> to vector<22x32xf32>
    %96 = vector.extract_strided_slice %89 {offsets = [6, 0], sizes = [22, 32], strides = [1, 1]} : vector<29x32xf32> to vector<22x32xf32>
    %97 = vector.extract_strided_slice %89 {offsets = [7, 0], sizes = [22, 32], strides = [1, 1]} : vector<29x32xf32> to vector<22x32xf32>
    %98 = tpu.concatenate %90, %91, %92, %93, %94, %95, %96, %97 in 1 : vector<22x32xf32>, vector<22x32xf32>, vector<22x32xf32>, vector<22x32xf32>, vector<22x32xf32>, vector<22x32xf32>, vector<22x32xf32>, vector<22x32xf32> -> vector<22x256xf32>
    %99 = vector.extract_strided_slice %58 {offsets = [116, 0], sizes = [29, 32], strides = [1, 1]} : vector<232x32xf32> to vector<29x32xf32>
    %100 = vector.extract_strided_slice %99 {offsets = [0, 0], sizes = [22, 32], strides = [1, 1]} : vector<29x32xf32> to vector<22x32xf32>
    %101 = vector.extract_strided_slice %99 {offsets = [1, 0], sizes = [22, 32], strides = [1, 1]} : vector<29x32xf32> to vector<22x32xf32>
    %102 = vector.extract_strided_slice %99 {offsets = [2, 0], sizes = [22, 32], strides = [1, 1]} : vector<29x32xf32> to vector<22x32xf32>
    %103 = vector.extract_strided_slice %99 {offsets = [3, 0], sizes = [22, 32], strides = [1, 1]} : vector<29x32xf32> to vector<22x32xf32>
    %104 = vector.extract_strided_slice %99 {offsets = [4, 0], sizes = [22, 32], strides = [1, 1]} : vector<29x32xf32> to vector<22x32xf32>
    %105 = vector.extract_strided_slice %99 {offsets = [5, 0], sizes = [22, 32], strides = [1, 1]} : vector<29x32xf32> to vector<22x32xf32>
    %106 = vector.extract_strided_slice %99 {offsets = [6, 0], sizes = [22, 32], strides = [1, 1]} : vector<29x32xf32> to vector<22x32xf32>
    %107 = vector.extract_strided_slice %99 {offsets = [7, 0], sizes = [22, 32], strides = [1, 1]} : vector<29x32xf32> to vector<22x32xf32>
    %108 = tpu.concatenate %100, %101, %102, %103, %104, %105, %106, %107 in 1 : vector<22x32xf32>, vector<22x32xf32>, vector<22x32xf32>, vector<22x32xf32>, vector<22x32xf32>, vector<22x32xf32>, vector<22x32xf32>, vector<22x32xf32> -> vector<22x256xf32>
    %109 = vector.extract_strided_slice %58 {offsets = [145, 0], sizes = [29, 32], strides = [1, 1]} : vector<232x32xf32> to vector<29x32xf32>
    %110 = vector.extract_strided_slice %109 {offsets = [0, 0], sizes = [22, 32], strides = [1, 1]} : vector<29x32xf32> to vector<22x32xf32>
    %111 = vector.extract_strided_slice %109 {offsets = [1, 0], sizes = [22, 32], strides = [1, 1]} : vector<29x32xf32> to vector<22x32xf32>
    %112 = vector.extract_strided_slice %109 {offsets = [2, 0], sizes = [22, 32], strides = [1, 1]} : vector<29x32xf32> to vector<22x32xf32>
    %113 = vector.extract_strided_slice %109 {offsets = [3, 0], sizes = [22, 32], strides = [1, 1]} : vector<29x32xf32> to vector<22x32xf32>
    %114 = vector.extract_strided_slice %109 {offsets = [4, 0], sizes = [22, 32], strides = [1, 1]} : vector<29x32xf32> to vector<22x32xf32>
    %115 = vector.extract_strided_slice %109 {offsets = [5, 0], sizes = [22, 32], strides = [1, 1]} : vector<29x32xf32> to vector<22x32xf32>
    %116 = vector.extract_strided_slice %109 {offsets = [6, 0], sizes = [22, 32], strides = [1, 1]} : vector<29x32xf32> to vector<22x32xf32>
    %117 = vector.extract_strided_slice %109 {offsets = [7, 0], sizes = [22, 32], strides = [1, 1]} : vector<29x32xf32> to vector<22x32xf32>
    %118 = tpu.concatenate %110, %111, %112, %113, %114, %115, %116, %117 in 1 : vector<22x32xf32>, vector<22x32xf32>, vector<22x32xf32>, vector<22x32xf32>, vector<22x32xf32>, vector<22x32xf32>, vector<22x32xf32>, vector<22x32xf32> -> vector<22x256xf32>
    %119 = vector.extract_strided_slice %58 {offsets = [174, 0], sizes = [29, 32], strides = [1, 1]} : vector<232x32xf32> to vector<29x32xf32>
    %120 = vector.extract_strided_slice %119 {offsets = [0, 0], sizes = [22, 32], strides = [1, 1]} : vector<29x32xf32> to vector<22x32xf32>
    %121 = vector.extract_strided_slice %119 {offsets = [1, 0], sizes = [22, 32], strides = [1, 1]} : vector<29x32xf32> to vector<22x32xf32>
    %122 = vector.extract_strided_slice %119 {offsets = [2, 0], sizes = [22, 32], strides = [1, 1]} : vector<29x32xf32> to vector<22x32xf32>
    %123 = vector.extract_strided_slice %119 {offsets = [3, 0], sizes = [22, 32], strides = [1, 1]} : vector<29x32xf32> to vector<22x32xf32>
    %124 = vector.extract_strided_slice %119 {offsets = [4, 0], sizes = [22, 32], strides = [1, 1]} : vector<29x32xf32> to vector<22x32xf32>
    %125 = vector.extract_strided_slice %119 {offsets = [5, 0], sizes = [22, 32], strides = [1, 1]} : vector<29x32xf32> to vector<22x32xf32>
    %126 = vector.extract_strided_slice %119 {offsets = [6, 0], sizes = [22, 32], strides = [1, 1]} : vector<29x32xf32> to vector<22x32xf32>
    %127 = vector.extract_strided_slice %119 {offsets = [7, 0], sizes = [22, 32], strides = [1, 1]} : vector<29x32xf32> to vector<22x32xf32>
    %128 = tpu.concatenate %120, %121, %122, %123, %124, %125, %126, %127 in 1 : vector<22x32xf32>, vector<22x32xf32>, vector<22x32xf32>, vector<22x32xf32>, vector<22x32xf32>, vector<22x32xf32>, vector<22x32xf32>, vector<22x32xf32> -> vector<22x256xf32>
    %129 = vector.extract_strided_slice %58 {offsets = [203, 0], sizes = [29, 32], strides = [1, 1]} : vector<232x32xf32> to vector<29x32xf32>
    %130 = vector.extract_strided_slice %129 {offsets = [0, 0], sizes = [22, 32], strides = [1, 1]} : vector<29x32xf32> to vector<22x32xf32>
    %131 = vector.extract_strided_slice %129 {offsets = [1, 0], sizes = [22, 32], strides = [1, 1]} : vector<29x32xf32> to vector<22x32xf32>
    %132 = vector.extract_strided_slice %129 {offsets = [2, 0], sizes = [22, 32], strides = [1, 1]} : vector<29x32xf32> to vector<22x32xf32>
    %133 = vector.extract_strided_slice %129 {offsets = [3, 0], sizes = [22, 32], strides = [1, 1]} : vector<29x32xf32> to vector<22x32xf32>
    %134 = vector.extract_strided_slice %129 {offsets = [4, 0], sizes = [22, 32], strides = [1, 1]} : vector<29x32xf32> to vector<22x32xf32>
    %135 = vector.extract_strided_slice %129 {offsets = [5, 0], sizes = [22, 32], strides = [1, 1]} : vector<29x32xf32> to vector<22x32xf32>
    %136 = vector.extract_strided_slice %129 {offsets = [6, 0], sizes = [22, 32], strides = [1, 1]} : vector<29x32xf32> to vector<22x32xf32>
    %137 = vector.extract_strided_slice %129 {offsets = [7, 0], sizes = [22, 32], strides = [1, 1]} : vector<29x32xf32> to vector<22x32xf32>
    %138 = tpu.concatenate %130, %131, %132, %133, %134, %135, %136, %137 in 1 : vector<22x32xf32>, vector<22x32xf32>, vector<22x32xf32>, vector<22x32xf32>, vector<22x32xf32>, vector<22x32xf32>, vector<22x32xf32>, vector<22x32xf32> -> vector<22x256xf32>
    %139 = tpu.concatenate %68, %78, %88, %98, %108, %118, %128, %138 in 0 : vector<22x256xf32>, vector<22x256xf32>, vector<22x256xf32>, vector<22x256xf32>, vector<22x256xf32>, vector<22x256xf32>, vector<22x256xf32>, vector<22x256xf32> -> vector<176x256xf32>
    %140 = arith.truncf %139 : vector<176x256xf32> to vector<176x256xbf16>
    %c0_6 = arith.constant 0 : index
    %c0_7 = arith.constant 0 : index
    %141 = vector.load %arg4[%c0_6, %c0_7] : memref<256x64xbf16, #tpu.memory_space<vmem>>, vector<256x64xbf16>
    %cst_8 = arith.constant dense<0.000000e+00> : vector<176x64xf32>
    %142 = tpu.matmul %140, %141, %cst_8 {dimension_numbers = #tpu.dot_dimension_numbers<[1], [0], [0], [1], [0, 0, 1, 1], [], []>} : vector<176x256xbf16>, vector<256x64xbf16>, vector<176x64xf32> -> vector<176x64xf32>
    %c0_9 = arith.constant 0 : index
    %c0_10 = arith.constant 0 : index
    %143 = vector.load %arg5[%c0_9, %c0_10] : memref<1x64xf32, #tpu.memory_space<vmem>>, vector<1x64xf32>
    %144 = vector.broadcast %143 : vector<1x64xf32> to vector<176x64xf32>
    %145 = arith.addf %142, %144 : vector<176x64xf32>
    %cst_11 = arith.constant 0.000000e+00 : f32
    %146 = vector.broadcast %cst_11 : f32 to vector<176x64xf32>
    %147 = arith.maximumf %145, %146 : vector<176x64xf32>
    %148 = vector.extract_strided_slice %147 {offsets = [0, 0], sizes = [22, 64], strides = [1, 1]} : vector<176x64xf32> to vector<22x64xf32>
    %149 = vector.extract_strided_slice %148 {offsets = [0, 0], sizes = [11, 64], strides = [1, 1]} : vector<22x64xf32> to vector<11x64xf32>
    %150 = vector.extract_strided_slice %148 {offsets = [1, 0], sizes = [11, 64], strides = [1, 1]} : vector<22x64xf32> to vector<11x64xf32>
    %151 = vector.extract_strided_slice %148 {offsets = [2, 0], sizes = [11, 64], strides = [1, 1]} : vector<22x64xf32> to vector<11x64xf32>
    %152 = vector.extract_strided_slice %148 {offsets = [3, 0], sizes = [11, 64], strides = [1, 1]} : vector<22x64xf32> to vector<11x64xf32>
    %153 = vector.extract_strided_slice %148 {offsets = [4, 0], sizes = [11, 64], strides = [1, 1]} : vector<22x64xf32> to vector<11x64xf32>
    %154 = vector.extract_strided_slice %148 {offsets = [5, 0], sizes = [11, 64], strides = [1, 1]} : vector<22x64xf32> to vector<11x64xf32>
    %155 = vector.extract_strided_slice %148 {offsets = [6, 0], sizes = [11, 64], strides = [1, 1]} : vector<22x64xf32> to vector<11x64xf32>
    %156 = vector.extract_strided_slice %148 {offsets = [7, 0], sizes = [11, 64], strides = [1, 1]} : vector<22x64xf32> to vector<11x64xf32>
    %157 = vector.extract_strided_slice %148 {offsets = [8, 0], sizes = [11, 64], strides = [1, 1]} : vector<22x64xf32> to vector<11x64xf32>
    %158 = vector.extract_strided_slice %148 {offsets = [9, 0], sizes = [11, 64], strides = [1, 1]} : vector<22x64xf32> to vector<11x64xf32>
    %159 = vector.extract_strided_slice %148 {offsets = [10, 0], sizes = [11, 64], strides = [1, 1]} : vector<22x64xf32> to vector<11x64xf32>
    %160 = vector.extract_strided_slice %148 {offsets = [11, 0], sizes = [11, 64], strides = [1, 1]} : vector<22x64xf32> to vector<11x64xf32>
    %161 = tpu.concatenate %149, %150, %151, %152, %153, %154, %155, %156, %157, %158, %159, %160 in 1 : vector<11x64xf32>, vector<11x64xf32>, vector<11x64xf32>, vector<11x64xf32>, vector<11x64xf32>, vector<11x64xf32>, vector<11x64xf32>, vector<11x64xf32>, vector<11x64xf32>, vector<11x64xf32>, vector<11x64xf32>, vector<11x64xf32> -> vector<11x768xf32>
    %162 = vector.extract_strided_slice %147 {offsets = [22, 0], sizes = [22, 64], strides = [1, 1]} : vector<176x64xf32> to vector<22x64xf32>
    %163 = vector.extract_strided_slice %162 {offsets = [0, 0], sizes = [11, 64], strides = [1, 1]} : vector<22x64xf32> to vector<11x64xf32>
    %164 = vector.extract_strided_slice %162 {offsets = [1, 0], sizes = [11, 64], strides = [1, 1]} : vector<22x64xf32> to vector<11x64xf32>
    %165 = vector.extract_strided_slice %162 {offsets = [2, 0], sizes = [11, 64], strides = [1, 1]} : vector<22x64xf32> to vector<11x64xf32>
    %166 = vector.extract_strided_slice %162 {offsets = [3, 0], sizes = [11, 64], strides = [1, 1]} : vector<22x64xf32> to vector<11x64xf32>
    %167 = vector.extract_strided_slice %162 {offsets = [4, 0], sizes = [11, 64], strides = [1, 1]} : vector<22x64xf32> to vector<11x64xf32>
    %168 = vector.extract_strided_slice %162 {offsets = [5, 0], sizes = [11, 64], strides = [1, 1]} : vector<22x64xf32> to vector<11x64xf32>
    %169 = vector.extract_strided_slice %162 {offsets = [6, 0], sizes = [11, 64], strides = [1, 1]} : vector<22x64xf32> to vector<11x64xf32>
    %170 = vector.extract_strided_slice %162 {offsets = [7, 0], sizes = [11, 64], strides = [1, 1]} : vector<22x64xf32> to vector<11x64xf32>
    %171 = vector.extract_strided_slice %162 {offsets = [8, 0], sizes = [11, 64], strides = [1, 1]} : vector<22x64xf32> to vector<11x64xf32>
    %172 = vector.extract_strided_slice %162 {offsets = [9, 0], sizes = [11, 64], strides = [1, 1]} : vector<22x64xf32> to vector<11x64xf32>
    %173 = vector.extract_strided_slice %162 {offsets = [10, 0], sizes = [11, 64], strides = [1, 1]} : vector<22x64xf32> to vector<11x64xf32>
    %174 = vector.extract_strided_slice %162 {offsets = [11, 0], sizes = [11, 64], strides = [1, 1]} : vector<22x64xf32> to vector<11x64xf32>
    %175 = tpu.concatenate %163, %164, %165, %166, %167, %168, %169, %170, %171, %172, %173, %174 in 1 : vector<11x64xf32>, vector<11x64xf32>, vector<11x64xf32>, vector<11x64xf32>, vector<11x64xf32>, vector<11x64xf32>, vector<11x64xf32>, vector<11x64xf32>, vector<11x64xf32>, vector<11x64xf32>, vector<11x64xf32>, vector<11x64xf32> -> vector<11x768xf32>
    %176 = vector.extract_strided_slice %147 {offsets = [44, 0], sizes = [22, 64], strides = [1, 1]} : vector<176x64xf32> to vector<22x64xf32>
    %177 = vector.extract_strided_slice %176 {offsets = [0, 0], sizes = [11, 64], strides = [1, 1]} : vector<22x64xf32> to vector<11x64xf32>
    %178 = vector.extract_strided_slice %176 {offsets = [1, 0], sizes = [11, 64], strides = [1, 1]} : vector<22x64xf32> to vector<11x64xf32>
    %179 = vector.extract_strided_slice %176 {offsets = [2, 0], sizes = [11, 64], strides = [1, 1]} : vector<22x64xf32> to vector<11x64xf32>
    %180 = vector.extract_strided_slice %176 {offsets = [3, 0], sizes = [11, 64], strides = [1, 1]} : vector<22x64xf32> to vector<11x64xf32>
    %181 = vector.extract_strided_slice %176 {offsets = [4, 0], sizes = [11, 64], strides = [1, 1]} : vector<22x64xf32> to vector<11x64xf32>
    %182 = vector.extract_strided_slice %176 {offsets = [5, 0], sizes = [11, 64], strides = [1, 1]} : vector<22x64xf32> to vector<11x64xf32>
    %183 = vector.extract_strided_slice %176 {offsets = [6, 0], sizes = [11, 64], strides = [1, 1]} : vector<22x64xf32> to vector<11x64xf32>
    %184 = vector.extract_strided_slice %176 {offsets = [7, 0], sizes = [11, 64], strides = [1, 1]} : vector<22x64xf32> to vector<11x64xf32>
    %185 = vector.extract_strided_slice %176 {offsets = [8, 0], sizes = [11, 64], strides = [1, 1]} : vector<22x64xf32> to vector<11x64xf32>
    %186 = vector.extract_strided_slice %176 {offsets = [9, 0], sizes = [11, 64], strides = [1, 1]} : vector<22x64xf32> to vector<11x64xf32>
    %187 = vector.extract_strided_slice %176 {offsets = [10, 0], sizes = [11, 64], strides = [1, 1]} : vector<22x64xf32> to vector<11x64xf32>
    %188 = vector.extract_strided_slice %176 {offsets = [11, 0], sizes = [11, 64], strides = [1, 1]} : vector<22x64xf32> to vector<11x64xf32>
    %189 = tpu.concatenate %177, %178, %179, %180, %181, %182, %183, %184, %185, %186, %187, %188 in 1 : vector<11x64xf32>, vector<11x64xf32>, vector<11x64xf32>, vector<11x64xf32>, vector<11x64xf32>, vector<11x64xf32>, vector<11x64xf32>, vector<11x64xf32>, vector<11x64xf32>, vector<11x64xf32>, vector<11x64xf32>, vector<11x64xf32> -> vector<11x768xf32>
    %190 = vector.extract_strided_slice %147 {offsets = [66, 0], sizes = [22, 64], strides = [1, 1]} : vector<176x64xf32> to vector<22x64xf32>
    %191 = vector.extract_strided_slice %190 {offsets = [0, 0], sizes = [11, 64], strides = [1, 1]} : vector<22x64xf32> to vector<11x64xf32>
    %192 = vector.extract_strided_slice %190 {offsets = [1, 0], sizes = [11, 64], strides = [1, 1]} : vector<22x64xf32> to vector<11x64xf32>
    %193 = vector.extract_strided_slice %190 {offsets = [2, 0], sizes = [11, 64], strides = [1, 1]} : vector<22x64xf32> to vector<11x64xf32>
    %194 = vector.extract_strided_slice %190 {offsets = [3, 0], sizes = [11, 64], strides = [1, 1]} : vector<22x64xf32> to vector<11x64xf32>
    %195 = vector.extract_strided_slice %190 {offsets = [4, 0], sizes = [11, 64], strides = [1, 1]} : vector<22x64xf32> to vector<11x64xf32>
    %196 = vector.extract_strided_slice %190 {offsets = [5, 0], sizes = [11, 64], strides = [1, 1]} : vector<22x64xf32> to vector<11x64xf32>
    %197 = vector.extract_strided_slice %190 {offsets = [6, 0], sizes = [11, 64], strides = [1, 1]} : vector<22x64xf32> to vector<11x64xf32>
    %198 = vector.extract_strided_slice %190 {offsets = [7, 0], sizes = [11, 64], strides = [1, 1]} : vector<22x64xf32> to vector<11x64xf32>
    %199 = vector.extract_strided_slice %190 {offsets = [8, 0], sizes = [11, 64], strides = [1, 1]} : vector<22x64xf32> to vector<11x64xf32>
    %200 = vector.extract_strided_slice %190 {offsets = [9, 0], sizes = [11, 64], strides = [1, 1]} : vector<22x64xf32> to vector<11x64xf32>
    %201 = vector.extract_strided_slice %190 {offsets = [10, 0], sizes = [11, 64], strides = [1, 1]} : vector<22x64xf32> to vector<11x64xf32>
    %202 = vector.extract_strided_slice %190 {offsets = [11, 0], sizes = [11, 64], strides = [1, 1]} : vector<22x64xf32> to vector<11x64xf32>
    %203 = tpu.concatenate %191, %192, %193, %194, %195, %196, %197, %198, %199, %200, %201, %202 in 1 : vector<11x64xf32>, vector<11x64xf32>, vector<11x64xf32>, vector<11x64xf32>, vector<11x64xf32>, vector<11x64xf32>, vector<11x64xf32>, vector<11x64xf32>, vector<11x64xf32>, vector<11x64xf32>, vector<11x64xf32>, vector<11x64xf32> -> vector<11x768xf32>
    %204 = vector.extract_strided_slice %147 {offsets = [88, 0], sizes = [22, 64], strides = [1, 1]} : vector<176x64xf32> to vector<22x64xf32>
    %205 = vector.extract_strided_slice %204 {offsets = [0, 0], sizes = [11, 64], strides = [1, 1]} : vector<22x64xf32> to vector<11x64xf32>
    %206 = vector.extract_strided_slice %204 {offsets = [1, 0], sizes = [11, 64], strides = [1, 1]} : vector<22x64xf32> to vector<11x64xf32>
    %207 = vector.extract_strided_slice %204 {offsets = [2, 0], sizes = [11, 64], strides = [1, 1]} : vector<22x64xf32> to vector<11x64xf32>
    %208 = vector.extract_strided_slice %204 {offsets = [3, 0], sizes = [11, 64], strides = [1, 1]} : vector<22x64xf32> to vector<11x64xf32>
    %209 = vector.extract_strided_slice %204 {offsets = [4, 0], sizes = [11, 64], strides = [1, 1]} : vector<22x64xf32> to vector<11x64xf32>
    %210 = vector.extract_strided_slice %204 {offsets = [5, 0], sizes = [11, 64], strides = [1, 1]} : vector<22x64xf32> to vector<11x64xf32>
    %211 = vector.extract_strided_slice %204 {offsets = [6, 0], sizes = [11, 64], strides = [1, 1]} : vector<22x64xf32> to vector<11x64xf32>
    %212 = vector.extract_strided_slice %204 {offsets = [7, 0], sizes = [11, 64], strides = [1, 1]} : vector<22x64xf32> to vector<11x64xf32>
    %213 = vector.extract_strided_slice %204 {offsets = [8, 0], sizes = [11, 64], strides = [1, 1]} : vector<22x64xf32> to vector<11x64xf32>
    %214 = vector.extract_strided_slice %204 {offsets = [9, 0], sizes = [11, 64], strides = [1, 1]} : vector<22x64xf32> to vector<11x64xf32>
    %215 = vector.extract_strided_slice %204 {offsets = [10, 0], sizes = [11, 64], strides = [1, 1]} : vector<22x64xf32> to vector<11x64xf32>
    %216 = vector.extract_strided_slice %204 {offsets = [11, 0], sizes = [11, 64], strides = [1, 1]} : vector<22x64xf32> to vector<11x64xf32>
    %217 = tpu.concatenate %205, %206, %207, %208, %209, %210, %211, %212, %213, %214, %215, %216 in 1 : vector<11x64xf32>, vector<11x64xf32>, vector<11x64xf32>, vector<11x64xf32>, vector<11x64xf32>, vector<11x64xf32>, vector<11x64xf32>, vector<11x64xf32>, vector<11x64xf32>, vector<11x64xf32>, vector<11x64xf32>, vector<11x64xf32> -> vector<11x768xf32>
    %218 = vector.extract_strided_slice %147 {offsets = [110, 0], sizes = [22, 64], strides = [1, 1]} : vector<176x64xf32> to vector<22x64xf32>
    %219 = vector.extract_strided_slice %218 {offsets = [0, 0], sizes = [11, 64], strides = [1, 1]} : vector<22x64xf32> to vector<11x64xf32>
    %220 = vector.extract_strided_slice %218 {offsets = [1, 0], sizes = [11, 64], strides = [1, 1]} : vector<22x64xf32> to vector<11x64xf32>
    %221 = vector.extract_strided_slice %218 {offsets = [2, 0], sizes = [11, 64], strides = [1, 1]} : vector<22x64xf32> to vector<11x64xf32>
    %222 = vector.extract_strided_slice %218 {offsets = [3, 0], sizes = [11, 64], strides = [1, 1]} : vector<22x64xf32> to vector<11x64xf32>
    %223 = vector.extract_strided_slice %218 {offsets = [4, 0], sizes = [11, 64], strides = [1, 1]} : vector<22x64xf32> to vector<11x64xf32>
    %224 = vector.extract_strided_slice %218 {offsets = [5, 0], sizes = [11, 64], strides = [1, 1]} : vector<22x64xf32> to vector<11x64xf32>
    %225 = vector.extract_strided_slice %218 {offsets = [6, 0], sizes = [11, 64], strides = [1, 1]} : vector<22x64xf32> to vector<11x64xf32>
    %226 = vector.extract_strided_slice %218 {offsets = [7, 0], sizes = [11, 64], strides = [1, 1]} : vector<22x64xf32> to vector<11x64xf32>
    %227 = vector.extract_strided_slice %218 {offsets = [8, 0], sizes = [11, 64], strides = [1, 1]} : vector<22x64xf32> to vector<11x64xf32>
    %228 = vector.extract_strided_slice %218 {offsets = [9, 0], sizes = [11, 64], strides = [1, 1]} : vector<22x64xf32> to vector<11x64xf32>
    %229 = vector.extract_strided_slice %218 {offsets = [10, 0], sizes = [11, 64], strides = [1, 1]} : vector<22x64xf32> to vector<11x64xf32>
    %230 = vector.extract_strided_slice %218 {offsets = [11, 0], sizes = [11, 64], strides = [1, 1]} : vector<22x64xf32> to vector<11x64xf32>
    %231 = tpu.concatenate %219, %220, %221, %222, %223, %224, %225, %226, %227, %228, %229, %230 in 1 : vector<11x64xf32>, vector<11x64xf32>, vector<11x64xf32>, vector<11x64xf32>, vector<11x64xf32>, vector<11x64xf32>, vector<11x64xf32>, vector<11x64xf32>, vector<11x64xf32>, vector<11x64xf32>, vector<11x64xf32>, vector<11x64xf32> -> vector<11x768xf32>
    %232 = vector.extract_strided_slice %147 {offsets = [132, 0], sizes = [22, 64], strides = [1, 1]} : vector<176x64xf32> to vector<22x64xf32>
    %233 = vector.extract_strided_slice %232 {offsets = [0, 0], sizes = [11, 64], strides = [1, 1]} : vector<22x64xf32> to vector<11x64xf32>
    %234 = vector.extract_strided_slice %232 {offsets = [1, 0], sizes = [11, 64], strides = [1, 1]} : vector<22x64xf32> to vector<11x64xf32>
    %235 = vector.extract_strided_slice %232 {offsets = [2, 0], sizes = [11, 64], strides = [1, 1]} : vector<22x64xf32> to vector<11x64xf32>
    %236 = vector.extract_strided_slice %232 {offsets = [3, 0], sizes = [11, 64], strides = [1, 1]} : vector<22x64xf32> to vector<11x64xf32>
    %237 = vector.extract_strided_slice %232 {offsets = [4, 0], sizes = [11, 64], strides = [1, 1]} : vector<22x64xf32> to vector<11x64xf32>
    %238 = vector.extract_strided_slice %232 {offsets = [5, 0], sizes = [11, 64], strides = [1, 1]} : vector<22x64xf32> to vector<11x64xf32>
    %239 = vector.extract_strided_slice %232 {offsets = [6, 0], sizes = [11, 64], strides = [1, 1]} : vector<22x64xf32> to vector<11x64xf32>
    %240 = vector.extract_strided_slice %232 {offsets = [7, 0], sizes = [11, 64], strides = [1, 1]} : vector<22x64xf32> to vector<11x64xf32>
    %241 = vector.extract_strided_slice %232 {offsets = [8, 0], sizes = [11, 64], strides = [1, 1]} : vector<22x64xf32> to vector<11x64xf32>
    %242 = vector.extract_strided_slice %232 {offsets = [9, 0], sizes = [11, 64], strides = [1, 1]} : vector<22x64xf32> to vector<11x64xf32>
    %243 = vector.extract_strided_slice %232 {offsets = [10, 0], sizes = [11, 64], strides = [1, 1]} : vector<22x64xf32> to vector<11x64xf32>
    %244 = vector.extract_strided_slice %232 {offsets = [11, 0], sizes = [11, 64], strides = [1, 1]} : vector<22x64xf32> to vector<11x64xf32>
    %245 = tpu.concatenate %233, %234, %235, %236, %237, %238, %239, %240, %241, %242, %243, %244 in 1 : vector<11x64xf32>, vector<11x64xf32>, vector<11x64xf32>, vector<11x64xf32>, vector<11x64xf32>, vector<11x64xf32>, vector<11x64xf32>, vector<11x64xf32>, vector<11x64xf32>, vector<11x64xf32>, vector<11x64xf32>, vector<11x64xf32> -> vector<11x768xf32>
    %246 = vector.extract_strided_slice %147 {offsets = [154, 0], sizes = [22, 64], strides = [1, 1]} : vector<176x64xf32> to vector<22x64xf32>
    %247 = vector.extract_strided_slice %246 {offsets = [0, 0], sizes = [11, 64], strides = [1, 1]} : vector<22x64xf32> to vector<11x64xf32>
    %248 = vector.extract_strided_slice %246 {offsets = [1, 0], sizes = [11, 64], strides = [1, 1]} : vector<22x64xf32> to vector<11x64xf32>
    %249 = vector.extract_strided_slice %246 {offsets = [2, 0], sizes = [11, 64], strides = [1, 1]} : vector<22x64xf32> to vector<11x64xf32>
    %250 = vector.extract_strided_slice %246 {offsets = [3, 0], sizes = [11, 64], strides = [1, 1]} : vector<22x64xf32> to vector<11x64xf32>
    %251 = vector.extract_strided_slice %246 {offsets = [4, 0], sizes = [11, 64], strides = [1, 1]} : vector<22x64xf32> to vector<11x64xf32>
    %252 = vector.extract_strided_slice %246 {offsets = [5, 0], sizes = [11, 64], strides = [1, 1]} : vector<22x64xf32> to vector<11x64xf32>
    %253 = vector.extract_strided_slice %246 {offsets = [6, 0], sizes = [11, 64], strides = [1, 1]} : vector<22x64xf32> to vector<11x64xf32>
    %254 = vector.extract_strided_slice %246 {offsets = [7, 0], sizes = [11, 64], strides = [1, 1]} : vector<22x64xf32> to vector<11x64xf32>
    %255 = vector.extract_strided_slice %246 {offsets = [8, 0], sizes = [11, 64], strides = [1, 1]} : vector<22x64xf32> to vector<11x64xf32>
    %256 = vector.extract_strided_slice %246 {offsets = [9, 0], sizes = [11, 64], strides = [1, 1]} : vector<22x64xf32> to vector<11x64xf32>
    %257 = vector.extract_strided_slice %246 {offsets = [10, 0], sizes = [11, 64], strides = [1, 1]} : vector<22x64xf32> to vector<11x64xf32>
    %258 = vector.extract_strided_slice %246 {offsets = [11, 0], sizes = [11, 64], strides = [1, 1]} : vector<22x64xf32> to vector<11x64xf32>
    %259 = tpu.concatenate %247, %248, %249, %250, %251, %252, %253, %254, %255, %256, %257, %258 in 1 : vector<11x64xf32>, vector<11x64xf32>, vector<11x64xf32>, vector<11x64xf32>, vector<11x64xf32>, vector<11x64xf32>, vector<11x64xf32>, vector<11x64xf32>, vector<11x64xf32>, vector<11x64xf32>, vector<11x64xf32>, vector<11x64xf32> -> vector<11x768xf32>
    %260 = tpu.concatenate %161, %175, %189, %203, %217, %231, %245, %259 in 0 : vector<11x768xf32>, vector<11x768xf32>, vector<11x768xf32>, vector<11x768xf32>, vector<11x768xf32>, vector<11x768xf32>, vector<11x768xf32>, vector<11x768xf32> -> vector<88x768xf32>
    %261 = arith.truncf %260 : vector<88x768xf32> to vector<88x768xbf16>
    %c0_12 = arith.constant 0 : index
    %c0_13 = arith.constant 0 : index
    %262 = vector.load %arg6[%c0_12, %c0_13] : memref<768x128xbf16, #tpu.memory_space<vmem>>, vector<768x128xbf16>
    %cst_14 = arith.constant dense<0.000000e+00> : vector<88x128xf32>
    %263 = tpu.matmul %261, %262, %cst_14 {dimension_numbers = #tpu.dot_dimension_numbers<[1], [0], [0], [1], [0, 0, 1, 1], [], []>} : vector<88x768xbf16>, vector<768x128xbf16>, vector<88x128xf32> -> vector<88x128xf32>
    %c0_15 = arith.constant 0 : index
    %c0_16 = arith.constant 0 : index
    %264 = vector.load %arg7[%c0_15, %c0_16] : memref<1x128xf32, #tpu.memory_space<vmem>>, vector<1x128xf32>
    %265 = vector.broadcast %264 : vector<1x128xf32> to vector<88x128xf32>
    %266 = arith.addf %263, %265 : vector<88x128xf32>
    %cst_17 = arith.constant 0.000000e+00 : f32
    %267 = vector.broadcast %cst_17 : f32 to vector<88x128xf32>
    %268 = arith.maximumf %266, %267 : vector<88x128xf32>
    %269 = tpu.iota {dimensions = array<i32: 0>} : vector<8x88xi32>
    %270 = tpu.iota {dimensions = array<i32: 1>} : vector<8x88xi32>
    %c11_i32 = arith.constant 11 : i32
    %271 = vector.broadcast %c11_i32 : i32 to vector<8x88xi32>
    %272 = arith.muli %269, %271 : vector<8x88xi32>
    %273 = arith.cmpi sge, %270, %272 : vector<8x88xi32>
    %c1_i32 = arith.constant 1 : i32
    %274 = vector.broadcast %c1_i32 : i32 to vector<8x88xi32>
    %275 = arith.addi %269, %274 : vector<8x88xi32>
    %c11_i32_18 = arith.constant 11 : i32
    %276 = vector.broadcast %c11_i32_18 : i32 to vector<8x88xi32>
    %277 = arith.muli %275, %276 : vector<8x88xi32>
    %278 = arith.cmpi slt, %270, %277 : vector<8x88xi32>
    %279 = arith.andi %273, %278 : vector<8x88xi1>
    %cst_19 = arith.constant 0.0909090936 : f32
    %cst_20 = arith.constant 0.000000e+00 : f32
    %280 = vector.broadcast %cst_19 : f32 to vector<8x88xf32>
    %281 = vector.broadcast %cst_20 : f32 to vector<8x88xf32>
    %282 = arith.select %279, %280, %281 : vector<8x88xi1>, vector<8x88xf32>
    %cst_21 = arith.constant dense<0.000000e+00> : vector<8x128xf32>
    %283 = tpu.matmul %282, %268, %cst_21 {dimension_numbers = #tpu.dot_dimension_numbers<[1], [0], [0], [1], [0, 0, 1, 1], [], []>} : vector<8x88xf32>, vector<88x128xf32>, vector<8x128xf32> -> vector<8x128xf32>
    %c0_22 = arith.constant 0 : index
    %c0_23 = arith.constant 0 : index
    %284 = vector.load %arg8[%c0_22, %c0_23] : memref<8x128xf32, #tpu.memory_space<vmem>>, vector<8x128xf32>
    tpu.vector_store %arg8[%c0_22, %c0_23], %283 {strides = array<i32>} : memref<8x128xf32, #tpu.memory_space<vmem>>, vector<8x128xf32>,
    return
  }
  func.func @transform_0(%arg0: i32) -> (i32, i32) {
    %c0_i32 = arith.constant 0 : i32
    %c0_i32_0 = arith.constant 0 : i32
    return %arg0, %c0_i32 : i32, i32
  }
  func.func @transform_1(%arg0: i32) -> (i32, i32) {
    %c0_i32 = arith.constant 0 : i32
    %c0_i32_0 = arith.constant 0 : i32
    %c0_i32_1 = arith.constant 0 : i32
    return %c0_i32, %c0_i32_0 : i32, i32
  }
  func.func @transform_2(%arg0: i32) -> (i32, i32) {
    %c0_i32 = arith.constant 0 : i32
    %c0_i32_0 = arith.constant 0 : i32
    %c0_i32_1 = arith.constant 0 : i32
    return %c0_i32, %c0_i32_0 : i32, i32
  }
  func.func @transform_3(%arg0: i32) -> (i32, i32) {
    %c0_i32 = arith.constant 0 : i32
    %c0_i32_0 = arith.constant 0 : i32
    %c0_i32_1 = arith.constant 0 : i32
    return %c0_i32, %c0_i32_0 : i32, i32
  }
  func.func @transform_4(%arg0: i32) -> (i32, i32) {
    %c0_i32 = arith.constant 0 : i32
    %c0_i32_0 = arith.constant 0 : i32
    %c0_i32_1 = arith.constant 0 : i32
    return %c0_i32, %c0_i32_0 : i32, i32
  }
  func.func @transform_5(%arg0: i32) -> (i32, i32) {
    %c0_i32 = arith.constant 0 : i32
    %c0_i32_0 = arith.constant 0 : i32
    %c0_i32_1 = arith.constant 0 : i32
    return %c0_i32, %c0_i32_0 : i32, i32
  }
  func.func @transform_6(%arg0: i32) -> (i32, i32) {
    %c0_i32 = arith.constant 0 : i32
    %c0_i32_0 = arith.constant 0 : i32
    %c0_i32_1 = arith.constant 0 : i32
    return %c0_i32, %c0_i32_0 : i32, i32
  }
  func.func @transform_7(%arg0: i32) -> (i32, i32) {
    %c0_i32 = arith.constant 0 : i32
    %c0_i32_0 = arith.constant 0 : i32
    return %arg0, %c0_i32 : i32, i32
  }
}

</mosaic_0001>

<llo_original>
// kernel: protein_net_forward.1
$region0: #{protein_net_forward.1}
  #allocation0 [shape = 'u32[]', space=smem, size = 0x4, offset = 0x4, fixed_abs, tag = 'smem constant byte address 0x4 - core index']
  #allocation1 [shape = 'u32[72,128]{1,0:T(1,128)}', space=vmem, size = 0x9000, scoped, tag = 'internal scratch']
  %s0 = inlined_call_operand.vmem [shape: bf16[512,16], index: 0, kind: input, shape index: {}]
  %s1 = inlined_call_operand.vmem [shape: bf16[64,32], index: 1, kind: input, shape index: {}]
  %s2 = inlined_call_operand.vmem [shape: f32[1,32], index: 2, kind: input, shape index: {}]
  %s3 = inlined_call_operand.vmem [shape: bf16[256,64], index: 3, kind: input, shape index: {}]
  %s4 = inlined_call_operand.vmem [shape: f32[1,64], index: 4, kind: input, shape index: {}]
  %s5 = inlined_call_operand.vmem [shape: bf16[768,128], index: 5, kind: input, shape index: {}]
  %s6 = inlined_call_operand.vmem [shape: f32[1,128], index: 6, kind: input, shape index: {}]
  %s7 = inlined_call_operand.hbm [shape: f32[16,128], index: 7, kind: output, shape index: {}]
  %s8 = sld [smem:[#allocation0]]
  $region61: #{protein_net_forward.1} parent=0
    _
  %s10 = ssub.s32 1, %s8
  %s11 = scalar_select 0, %s10, %s8
  $region1: #{protein_net_forward.1} parent=0
    #allocation2 [shape = 'u8[8192]{0}', space=vmem, size = 0x2000, scoped, tag = 'output window, operand 0']
    #allocation3 [shape = 's32[2]{0}', space=sflag, size = 0x8, scoped, tag = 'scoped memory for protein_net_forward.1']
    %12 = vsyncpa [#allocation3], 0
    %s13 = scalar_lea.sflag [#allocation3], 1
    %14 = vsyncpa %s13, 0
    loop: start=0, step=1, limit=4
    $region2: #{protein_net_forward.1} parent=1 // loop_pre_header
      _
    $region3: #{protein_net_forward.1} parent=1 // loop_header
      %s16 = sphi 0, %s20
      %p17 = scmp.ge.s32.totalorder %s16, 4
      %s26 = sphi 0, %s28
      %s29 = sphi 0, %s26
      %s30 = sphi 0, %s29
      %s46 = sphi 0, %s30
      %s50 = sphi 0, %s50
      %s52 = sphi 0, %s50
      %s53 = sphi 0, %s52
      %s67 = sphi 0, %s53
      %s71 = sphi 0, %s71
      %s73 = sphi 0, %s71
      %s74 = sphi 0, %s73
      %s88 = sphi 0, %s74
      %s92 = sphi 0, %s92
      %s94 = sphi 0, %s92
      %s95 = sphi 0, %s94
      %s109 = sphi 0, %s95
      %s113 = sphi 0, %s113
      %s115 = sphi 0, %s113
      %s116 = sphi 0, %s115
      %s130 = sphi 0, %s116
      %s134 = sphi 0, %s134
      %s136 = sphi 0, %s134
      %s137 = sphi 0, %s136
      %s151 = sphi 0, %s137
      %s155 = sphi 0, %s155
      %s157 = sphi 0, %s155
      %s158 = sphi 0, %s157
      %s172 = sphi 0, %s158
      %s178 = sphi 0, %s180
      %s181 = sphi 0, %s178
      %s182 = sphi 0, %s181
      %s198 = sphi 0, %s182
    $region4: #{protein_net_forward.1} parent=1 // loop_header_branch
      %19 = sbr.rel (%p17) target = $region8
    $region5: #{protein_net_forward.1} parent=1 // loop_body
      %s21 = ssub.s32 %s16, 1
      %s22 = ssub.s32 %s16, 2
      %s23 = sadd.s32 %s16, 1
      %s24 = ssub.s32 %s16, %s23
      %p25 = scmp.eq.s32.totalorder %s24, 0
      %s27 = sadd.s32 %s26, 1
      %s28 = scalar_select %p25, %s26, %s27
      %p31 = pneg %p25
      %p32 = scmp.eq.s32.totalorder %s16, 1
      %p33 = por %p31, %p32
      %p34 = scmp.ne.s32.totalorder %s26, %s29
      %p35 = scmp.eq.s32.totalorder %s16, 0
      %p36 = por %p34, %p35
      %p37 = scmp.ne.s32.totalorder %s26, %s29
      %p38 = scmp.eq.s32.totalorder %s21, 1
      %p39 = por %p37, %p38
      %p40 = scmp.ne.s32.totalorder %s29, %s30
      %p41 = scmp.eq.s32.totalorder %s21, 0
      %p42 = por %p40, %p41
      %p43 = scmp.ne.s32.totalorder %s29, %s30
      %p44 = scmp.eq.s32.totalorder %s22, 1
      %p45 = por %p43, %p44
      %p47 = scmp.ne.s32.totalorder %s30, %s46
      %p48 = scmp.eq.s32.totalorder %s22, 0
      %p49 = por %p47, %p48
      %s51 = sadd.s32 %s50, 1
      %p54 = scmp.eq.s32.totalorder %s16, 1
      %p55 = scmp.ne.s32.totalorder %s50, %s52
      %p56 = scmp.eq.s32.totalorder %s16, 0
      %p57 = por %p55, %p56
      %p58 = scmp.ne.s32.totalorder %s50, %s52
      %p59 = scmp.eq.s32.totalorder %s21, 1
      %p60 = por %p58, %p59
      %p61 = scmp.ne.s32.totalorder %s52, %s53
      %p62 = scmp.eq.s32.totalorder %s21, 0
      %p63 = por %p61, %p62
      %p64 = scmp.ne.s32.totalorder %s52, %s53
      %p65 = scmp.eq.s32.totalorder %s22, 1
      %p66 = por %p64, %p65
      %p68 = scmp.ne.s32.totalorder %s53, %s67
      %p69 = scmp.eq.s32.totalorder %s22, 0
      %p70 = por %p68, %p69
      %s72 = sadd.s32 %s71, 1
      %p75 = scmp.eq.s32.totalorder %s16, 1
      %p76 = scmp.ne.s32.totalorder %s71, %s73
      %p77 = scmp.eq.s32.totalorder %s16, 0
      %p78 = por %p76, %p77
      %p79 = scmp.ne.s32.totalorder %s71, %s73
      %p80 = scmp.eq.s32.totalorder %s21, 1
      %p81 = por %p79, %p80
      %p82 = scmp.ne.s32.totalorder %s73, %s74
      %p83 = scmp.eq.s32.totalorder %s21, 0
      %p84 = por %p82, %p83
      %p85 = scmp.ne.s32.totalorder %s73, %s74
      %p86 = scmp.eq.s32.totalorder %s22, 1
      %p87 = por %p85, %p86
      %p89 = scmp.ne.s32.totalorder %s74, %s88
      %p90 = scmp.eq.s32.totalorder %s22, 0
      %p91 = por %p89, %p90
      %s93 = sadd.s32 %s92, 1
      %p96 = scmp.eq.s32.totalorder %s16, 1
      %p97 = scmp.ne.s32.totalorder %s92, %s94
      %p98 = scmp.eq.s32.totalorder %s16, 0
      %p99 = por %p97, %p98
      %p100 = scmp.ne.s32.totalorder %s92, %s94
      %p101 = scmp.eq.s32.totalorder %s21, 1
      %p102 = por %p100, %p101
      %p103 = scmp.ne.s32.totalorder %s94, %s95
      %p104 = scmp.eq.s32.totalorder %s21, 0
      %p105 = por %p103, %p104
      %p106 = scmp.ne.s32.totalorder %s94, %s95
      %p107 = scmp.eq.s32.totalorder %s22, 1
      %p108 = por %p106, %p107
      %p110 = scmp.ne.s32.totalorder %s95, %s109
      %p111 = scmp.eq.s32.totalorder %s22, 0
      %p112 = por %p110, %p111
      %s114 = sadd.s32 %s113, 1
      %p117 = scmp.eq.s32.totalorder %s16, 1
      %p118 = scmp.ne.s32.totalorder %s113, %s115
      %p119 = scmp.eq.s32.totalorder %s16, 0
      %p120 = por %p118, %p119
      %p121 = scmp.ne.s32.totalorder %s113, %s115
      %p122 = scmp.eq.s32.totalorder %s21, 1
      %p123 = por %p121, %p122
      %p124 = scmp.ne.s32.totalorder %s115, %s116
      %p125 = scmp.eq.s32.totalorder %s21, 0
      %p126 = por %p124, %p125
      %p127 = scmp.ne.s32.totalorder %s115, %s116
      %p128 = scmp.eq.s32.totalorder %s22, 1
      %p129 = por %p127, %p128
      %p131 = scmp.ne.s32.totalorder %s116, %s130
      %p132 = scmp.eq.s32.totalorder %s22, 0
      %p133 = por %p131, %p132
      %s135 = sadd.s32 %s134, 1
      %p138 = scmp.eq.s32.totalorder %s16, 1
      %p139 = scmp.ne.s32.totalorder %s134, %s136
      %p140 = scmp.eq.s32.totalorder %s16, 0
      %p141 = por %p139, %p140
      %p142 = scmp.ne.s32.totalorder %s134, %s136
      %p143 = scmp.eq.s32.totalorder %s21, 1
      %p144 = por %p142, %p143
      %p145 = scmp.ne.s32.totalorder %s136, %s137
      %p146 = scmp.eq.s32.totalorder %s21, 0
      %p147 = por %p145, %p146
      %p148 = scmp.ne.s32.totalorder %s136, %s137
      %p149 = scmp.eq.s32.totalorder %s22, 1
      %p150 = por %p148, %p149
      %p152 = scmp.ne.s32.totalorder %s137, %s151
      %p153 = scmp.eq.s32.totalorder %s22, 0
      %p154 = por %p152, %p153
      %s156 = sadd.s32 %s155, 1
      %p159 = scmp.eq.s32.totalorder %s16, 1
      %p160 = scmp.ne.s32.totalorder %s155, %s157
      %p161 = scmp.eq.s32.totalorder %s16, 0
      %p162 = por %p160, %p161
      %p163 = scmp.ne.s32.totalorder %s155, %s157
      %p164 = scmp.eq.s32.totalorder %s21, 1
      %p165 = por %p163, %p164
      %p166 = scmp.ne.s32.totalorder %s157, %s158
      %p167 = scmp.eq.s32.totalorder %s21, 0
      %p168 = por %p166, %p167
      %p169 = scmp.ne.s32.totalorder %s157, %s158
      %p170 = scmp.eq.s32.totalorder %s22, 1
      %p171 = por %p169, %p170
      %p173 = scmp.ne.s32.totalorder %s158, %s172
      %p174 = scmp.eq.s32.totalorder %s22, 0
      %p175 = por %p173, %p174
      %s176 = ssub.s32 %s16, %s23
      %p177 = scmp.eq.s32.totalorder %s176, 0
      %s179 = sadd.s32 %s178, 1
      %s180 = scalar_select %p177, %s178, %s179
      %p183 = pneg %p177
      %p184 = scmp.eq.s32.totalorder %s16, 1
      %p185 = por %p183, %p184
      %p186 = scmp.ne.s32.totalorder %s178, %s181
      %p187 = scmp.eq.s32.totalorder %s16, 0
      %p188 = por %p186, %p187
      %p189 = scmp.ne.s32.totalorder %s178, %s181
      %p190 = scmp.eq.s32.totalorder %s21, 1
      %p191 = por %p189, %p190
      %p192 = scmp.ne.s32.totalorder %s181, %s182
      %p193 = scmp.eq.s32.totalorder %s21, 0
      %p194 = por %p192, %p193
      %p195 = scmp.ne.s32.totalorder %s181, %s182
      %p196 = scmp.eq.s32.totalorder %s22, 1
      %p197 = por %p195, %p196
      %p199 = scmp.ne.s32.totalorder %s182, %s198
      %p200 = scmp.eq.s32.totalorder %s22, 0
      %p201 = por %p199, %p200
      %p202 = scmp.le.s32.totalorder 1, %s16
      %p203 = scmp.lt.s32.totalorder %s16, 3
      %p204 = pnand %p202, %p203
      %p205 = pneg %p204
      // Predicated region
      $region9: #{protein_net_forward.1} parent=5 // pred_check
        _
      $region10: #{protein_net_forward.1} parent=5 // pred_check_branch
        %207 = sbr.rel (%p204) target = $region12
      $region11: #{protein_net_forward.1} parent=5 // pred_region
        %s208 = ssub.s32 %s16, 1
        // Predicated region
        $region13: #{protein_net_forward.1} parent=11 // pred_check
          %p209 = pneg %p63
        $region14: #{protein_net_forward.1} parent=11 // pred_check_branch
          %211 = sbr.rel (%p209) target = $region16
        $region15: #{protein_net_forward.1} parent=11 // pred_region
          _
        $region16: #{protein_net_forward.1} parent=11 // pred_fallthru
          _
        // Predicated region
        $region17: #{protein_net_forward.1} parent=11 // pred_check
          %p212 = pneg %p84
        $region18: #{protein_net_forward.1} parent=11 // pred_check_branch
          %214 = sbr.rel (%p212) target = $region20
        $region19: #{protein_net_forward.1} parent=11 // pred_region
          _
        $region20: #{protein_net_forward.1} parent=11 // pred_fallthru
          _
        // Predicated region
        $region21: #{protein_net_forward.1} parent=11 // pred_check
          %p215 = pneg %p105
        $region22: #{protein_net_forward.1} parent=11 // pred_check_branch
          %217 = sbr.rel (%p215) target = $region24
        $region23: #{protein_net_forward.1} parent=11 // pred_region
          _
        $region24: #{protein_net_forward.1} parent=11 // pred_fallthru
          _
        // Predicated region
        $region25: #{protein_net_forward.1} parent=11 // pred_check
          %p218 = pneg %p126
        $region26: #{protein_net_forward.1} parent=11 // pred_check_branch
          %220 = sbr.rel (%p218) target = $region28
        $region27: #{protein_net_forward.1} parent=11 // pred_region
          _
        $region28: #{protein_net_forward.1} parent=11 // pred_fallthru
          _
        // Predicated region
        $region29: #{protein_net_forward.1} parent=11 // pred_check
          %p221 = pneg %p147
        $region30: #{protein_net_forward.1} parent=11 // pred_check_branch
          %223 = sbr.rel (%p221) target = $region32
        $region31: #{protein_net_forward.1} parent=11 // pred_region
          _
        $region32: #{protein_net_forward.1} parent=11 // pred_fallthru
          _
        // Predicated region
        $region33: #{protein_net_forward.1} parent=11 // pred_check
          %p224 = pneg %p168
        $region34: #{protein_net_forward.1} parent=11 // pred_check_branch
          %226 = sbr.rel (%p224) target = $region36
        $region35: #{protein_net_forward.1} parent=11 // pred_region
          _
        $region36: #{protein_net_forward.1} parent=11 // pred_fallthru
          _
      $region12: #{protein_net_forward.1} parent=5 // pred_fallthru
        _
      %p227 = scmp.lt.s32.totalorder %s16, 2
      // Predicated region
      $region37: #{protein_net_forward.1} parent=5 // pred_check
        %p228 = pneg %p227
      $region38: #{protein_net_forward.1} parent=5 // pred_check_branch
        %230 = sbr.rel (%p228) target = $region40
      $region39: #{protein_net_forward.1} parent=5 // pred_region
        // Predicated region
        $region41: #{protein_net_forward.1} parent=39 // pred_check
          %p231 = pneg %p36
        $region42: #{protein_net_forward.1} parent=39 // pred_check_branch
          %233 = sbr.rel (%p231) target = $region44
        $region43: #{protein_net_forward.1} parent=39 // pred_region
          %s234 = smul.u32 32, %s16
          %p235 = scmp.lt.s32.totalorder %s234, 63
          %s236 = scalar_select %p235, %s234, 63
          %s237 = smul.addr %s236, 4
          %s238 = scalar_lea.vmem %s0, %s237
          %s239 = smul.u32 32, %s16
        $region44: #{protein_net_forward.1} parent=39 // pred_fallthru
          _
      $region40: #{protein_net_forward.1} parent=5 // pred_fallthru
        _
      %p240 = scmp.le.s32.totalorder 1, %s16
      %p241 = scmp.lt.s32.totalorder %s16, 3
      %p242 = pnand %p240, %p241
      %p243 = pneg %p242
      // Predicated region
      $region45: #{protein_net_forward.1} parent=5 // pred_check
        _
      $region46: #{protein_net_forward.1} parent=5 // pred_check_branch
        %245 = sbr.rel (%p242) target = $region48
      $region47: #{protein_net_forward.1} parent=5 // pred_region
        %s246 = ssub.s32 %s16, 1
        %s247 = smul.u32 32, %s21
        %p248 = scmp.lt.s32.totalorder %s247, 63
        %s249 = scalar_select %p248, %s247, 63
        %s250 = smul.addr %s249, 4
        %s251 = scalar_lea.vmem %s0, %s250
        %p252 = pneg %p42
        %p253 = pneg %p39
        %p254 = pneg %p63
        %p255 = pneg %p60
        %p256 = pneg %p84
        %p257 = pneg %p81
        %p258 = pneg %p105
        %p259 = pneg %p102
        %p260 = pneg %p126
        %p261 = pneg %p123
        %p262 = pneg %p147
        %p263 = pneg %p144
        %p264 = pneg %p168
        %p265 = pneg %p165
        %p266 = pneg %p194
        %p267 = pneg %p191
        %s268 = sand.u32 %s181, 1
        %s269 = scalar_lea.sflag [#allocation3], %s268
        %s270 = sand.u32 %s181, 1
        %s271 = smul.addr %s270, 8
        %s272 = scalar_lea.vmem [#allocation2], %s271
        %s273 = smul.u32 32, %s21
        %p274 = scmp.lt.s32.totalorder %s273, 63
        %s275 = scalar_select %p274, %s273, 63
        %s276 = smul.addr %s275, 4
        %s277 = scalar_lea.vmem %s0, %s276
        %s278 = smul.u32 32, %s21
        %v280 = vld [vmem:[%s277] sm:$0xf]
        %v281 = vld [vmem:[%s277 + $0x4] sm:$0xf]
        %v282 = vld [vmem:[%s277 + $0x8] sm:$0xf]
        %v283 = vld [vmem:[%s277 + $0xc] sm:$0xf]
        %v284 = vld [vmem:[%s277 + $0x10] sm:$0xf]
        %v285 = vld [vmem:[%s277 + $0x14] sm:$0xf]
        %v286 = vld [vmem:[%s277 + $0x18] sm:$0xf]
        %v287 = vld [vmem:[%s277 + $0x1c] sm:$0xf]
        %v288 = vld [vmem:[%s277 + $0x20] sm:$0xf]
        %v289 = vld [vmem:[%s277 + $0x24] sm:$0xf]
        %v290 = vld [vmem:[%s277 + $0x28] sm:$0xf]
        %v291 = vld [vmem:[%s277 + $0x2c] sm:$0xf]
        %v292 = vld [vmem:[%s277 + $0x30] sm:$0xf]
        %v293 = vld [vmem:[%s277 + $0x34] sm:$0xf]
        %v294 = vld [vmem:[%s277 + $0x38] sm:$0xf]
        %v295 = vld [vmem:[%s277 + $0x3c] sm:$0xf]
        %v296 = vld [vmem:[%s277 + $0x40] sm:$0xf]
        %v297 = vld [vmem:[%s277 + $0x44] sm:$0xf]
        %v298 = vld [vmem:[%s277 + $0x48] sm:$0xf]
        %v299 = vld [vmem:[%s277 + $0x4c] sm:$0xf]
        %v300 = vld [vmem:[%s277 + $0x50] sm:$0xf]
        %v301 = vld [vmem:[%s277 + $0x54] sm:$0xf]
        %v302 = vld [vmem:[%s277 + $0x58] sm:$0xf]
        %v303 = vld [vmem:[%s277 + $0x5c] sm:$0xf]
        %v304 = vld [vmem:[%s277 + $0x60] sm:$0xf]
        %v305 = vld [vmem:[%s277 + $0x64] sm:$0xf]
        %v306 = vld [vmem:[%s277 + $0x68] sm:$0xf]
        %v307 = vld [vmem:[%s277 + $0x6c] sm:$0xf]
        %v308 = vld [vmem:[%s277 + $0x70] sm:$0xf]
        %v309 = vld [vmem:[%s277 + $0x74] sm:$0xf]
        %v310 = vld [vmem:[%s277 + $0x78] sm:$0xf]
        %v311 = vld [vmem:[%s277 + $0x7c] sm:$0xf]
        %v312 = vunpack.c.l.bf16 %v280
        %v313 = vunpack.c.l.bf16 %v281
        %v314 = vunpack.c.l.bf16 %v282
        %v315 = vunpack.c.l.bf16 %v283
        %v316 = vunpack.c.l.bf16 %v284
        %v317 = vunpack.c.l.bf16 %v285
        %v318 = vunpack.c.l.bf16 %v286
        %v319 = vunpack.c.l.bf16 %v287
        %v320 = vunpack.c.l.bf16 %v288
        %v321 = vunpack.c.l.bf16 %v289
        %v322 = vunpack.c.l.bf16 %v290
        %v323 = vunpack.c.l.bf16 %v291
        %v324 = vunpack.c.l.bf16 %v292
        %v325 = vunpack.c.l.bf16 %v293
        %v326 = vunpack.c.l.bf16 %v294
        %v327 = vunpack.c.l.bf16 %v295
        %v328 = vunpack.c.l.bf16 %v296
        %v329 = vunpack.c.l.bf16 %v297
        %v330 = vunpack.c.l.bf16 %v298
        %v331 = vunpack.c.l.bf16 %v299
        %v332 = vunpack.c.l.bf16 %v300
        %v333 = vunpack.c.l.bf16 %v301
        %v334 = vunpack.c.l.bf16 %v302
        %v335 = vunpack.c.l.bf16 %v303
        %v336 = vunpack.c.l.bf16 %v304
        %v337 = vunpack.c.l.bf16 %v305
        %v338 = vunpack.c.l.bf16 %v306
        %v339 = vunpack.c.l.bf16 %v307
        %v340 = vunpack.c.l.bf16 %v308
        %v341 = vunpack.c.l.bf16 %v309
        %v342 = vunpack.c.l.bf16 %v310
        %v343 = vunpack.c.l.bf16 %v311
        %vm348 = vcmask 1046528
        %v349 = vrot.slane %v312, 1
        %v350 = vrot.slane %v313, 1
        %v351 = vsel %vm348, %v349, %v350
        %v352 = vrot.slane %v314, 1
        %v353 = vsel %vm348, %v350, %v352
        %v354 = vrot.slane %v315, 1
        %v355 = vsel %vm348, %v352, %v354
        %356 = vrot.lane.b32.xlu0 %v351, 16
        %v357 = vpop.permute.xlu0 %356
        %358 = vrot.lane.b32.xlu0 %v353, 16
        %v359 = vpop.permute.xlu0 %358
        %360 = vrot.lane.b32.xlu0 %v355, 16
        %v361 = vpop.permute.xlu0 %360
        %362 = vrot.lane.b32.xlu0 %v354, 16
        %v363 = vpop.permute.xlu0 %362
        %vm368 = vcmask 1045504
        %v369 = vrot.slane %v312, 2
        %v370 = vrot.slane %v313, 2
        %v371 = vsel %vm368, %v369, %v370
        %v372 = vrot.slane %v314, 2
        %v373 = vsel %vm368, %v370, %v372
        %v374 = vrot.slane %v315, 2
        %v375 = vsel %vm368, %v372, %v374
        %376 = vrot.lane.b32.xlu0 %v371, 32
        %v377 = vpop.permute.xlu0 %376
        %378 = vrot.lane.b32.xlu0 %v373, 32
        %v379 = vpop.permute.xlu0 %378
        %380 = vrot.lane.b32.xlu0 %v375, 32
        %v381 = vpop.permute.xlu0 %380
        %382 = vrot.lane.b32.xlu0 %v374, 32
        %v383 = vpop.permute.xlu0 %382
        %vm388 = vcmask 1044480
        %v389 = vrot.slane %v312, 3
        %v390 = vrot.slane %v313, 3
        %v391 = vsel %vm388, %v389, %v390
        %v392 = vrot.slane %v314, 3
        %v393 = vsel %vm388, %v390, %v392
        %v394 = vrot.slane %v315, 3
        %v395 = vsel %vm388, %v392, %v394
        %396 = vrot.lane.b32.xlu0 %v391, 48
        %v397 = vpop.permute.xlu0 %396
        %398 = vrot.lane.b32.xlu0 %v393, 48
        %v399 = vpop.permute.xlu0 %398
        %400 = vrot.lane.b32.xlu0 %v395, 48
        %v401 = vpop.permute.xlu0 %400
        %402 = vrot.lane.b32.xlu0 %v394, 48
        %v403 = vpop.permute.xlu0 %402
        %vm408 = vcmask 130048
        %v409 = vsel %vm408, %v312, %v357
        %v410 = vsel %vm408, %v313, %v359
        %v411 = vsel %vm408, %v314, %v361
        %v412 = vsel %vm408, %v315, %v363
        %vm413 = vcmask 261120
        %v414 = vsel %vm413, %v409, %v377
        %v415 = vsel %vm413, %v410, %v379
        %v416 = vsel %vm413, %v411, %v381
        %v417 = vsel %vm413, %v412, %v383
        %vm418 = vcmask 392192
        %v419 = vsel %vm418, %v414, %v397
        %v420 = vsel %vm418, %v415, %v399
        %v421 = vsel %vm418, %v416, %v401
        %v422 = vsel %vm418, %v417, %v403
        %v427 = vrot.slane %v316, 1
        %v428 = vrot.slane %v317, 1
        %v429 = vsel %vm348, %v427, %v428
        %v430 = vrot.slane %v318, 1
        %v431 = vsel %vm348, %v428, %v430
        %v432 = vrot.slane %v319, 1
        %v433 = vsel %vm348, %v430, %v432
        %434 = vrot.lane.b32.xlu0 %v429, 16
        %v435 = vpop.permute.xlu0 %434
        %436 = vrot.lane.b32.xlu0 %v431, 16
        %v437 = vpop.permute.xlu0 %436
        %438 = vrot.lane.b32.xlu0 %v433, 16
        %v439 = vpop.permute.xlu0 %438
        %440 = vrot.lane.b32.xlu0 %v432, 16
        %v441 = vpop.permute.xlu0 %440
        %v446 = vrot.slane %v316, 2
        %v447 = vrot.slane %v317, 2
        %v448 = vsel %vm368, %v446, %v447
        %v449 = vrot.slane %v318, 2
        %v450 = vsel %vm368, %v447, %v449
        %v451 = vrot.slane %v319, 2
        %v452 = vsel %vm368, %v449, %v451
        %453 = vrot.lane.b32.xlu0 %v448, 32
        %v454 = vpop.permute.xlu0 %453
        %455 = vrot.lane.b32.xlu0 %v450, 32
        %v456 = vpop.permute.xlu0 %455
        %457 = vrot.lane.b32.xlu0 %v452, 32
        %v458 = vpop.permute.xlu0 %457
        %459 = vrot.lane.b32.xlu0 %v451, 32
        %v460 = vpop.permute.xlu0 %459
        %v465 = vrot.slane %v316, 3
        %v466 = vrot.slane %v317, 3
        %v467 = vsel %vm388, %v465, %v466
        %v468 = vrot.slane %v318, 3
        %v469 = vsel %vm388, %v466, %v468
        %v470 = vrot.slane %v319, 3
        %v471 = vsel %vm388, %v468, %v470
        %472 = vrot.lane.b32.xlu0 %v467, 48
        %v473 = vpop.permute.xlu0 %472
        %474 = vrot.lane.b32.xlu0 %v469, 48
        %v475 = vpop.permute.xlu0 %474
        %476 = vrot.lane.b32.xlu0 %v471, 48
        %v477 = vpop.permute.xlu0 %476
        %478 = vrot.lane.b32.xlu0 %v470, 48
        %v479 = vpop.permute.xlu0 %478
        %v484 = vsel %vm408, %v316, %v435
        %v485 = vsel %vm408, %v317, %v437
        %v486 = vsel %vm408, %v318, %v439
        %v487 = vsel %vm408, %v319, %v441
        %v488 = vsel %vm413, %v484, %v454
        %v489 = vsel %vm413, %v485, %v456
        %v490 = vsel %vm413, %v486, %v458
        %v491 = vsel %vm413, %v487, %v460
        %v492 = vsel %vm418, %v488, %v473
        %v493 = vsel %vm418, %v489, %v475
        %v494 = vsel %vm418, %v490, %v477
        %v495 = vsel %vm418, %v491, %v479
        %v500 = vrot.slane %v320, 1
        %v501 = vrot.slane %v321, 1
        %v502 = vsel %vm348, %v500, %v501
        %v503 = vrot.slane %v322, 1
        %v504 = vsel %vm348, %v501, %v503
        %v505 = vrot.slane %v323, 1
        %v506 = vsel %vm348, %v503, %v505
        %507 = vrot.lane.b32.xlu0 %v502, 16
        %v508 = vpop.permute.xlu0 %507
        %509 = vrot.lane.b32.xlu0 %v504, 16
        %v510 = vpop.permute.xlu0 %509
        %511 = vrot.lane.b32.xlu0 %v506, 16
        %v512 = vpop.permute.xlu0 %511
        %513 = vrot.lane.b32.xlu0 %v505, 16
        %v514 = vpop.permute.xlu0 %513
        %v519 = vrot.slane %v320, 2
        %v520 = vrot.slane %v321, 2
        %v521 = vsel %vm368, %v519, %v520
        %v522 = vrot.slane %v322, 2
        %v523 = vsel %vm368, %v520, %v522
        %v524 = vrot.slane %v323, 2
        %v525 = vsel %vm368, %v522, %v524
        %526 = vrot.lane.b32.xlu0 %v521, 32
        %v527 = vpop.permute.xlu0 %526
        %528 = vrot.lane.b32.xlu0 %v523, 32
        %v529 = vpop.permute.xlu0 %528
        %530 = vrot.lane.b32.xlu0 %v525, 32
        %v531 = vpop.permute.xlu0 %530
        %532 = vrot.lane.b32.xlu0 %v524, 32
        %v533 = vpop.permute.xlu0 %532
        %v538 = vrot.slane %v320, 3
        %v539 = vrot.slane %v321, 3
        %v540 = vsel %vm388, %v538, %v539
        %v541 = vrot.slane %v322, 3
        %v542 = vsel %vm388, %v539, %v541
        %v543 = vrot.slane %v323, 3
        %v544 = vsel %vm388, %v541, %v543
        %545 = vrot.lane.b32.xlu0 %v540, 48
        %v546 = vpop.permute.xlu0 %545
        %547 = vrot.lane.b32.xlu0 %v542, 48
        %v548 = vpop.permute.xlu0 %547
        %549 = vrot.lane.b32.xlu0 %v544, 48
        %v550 = vpop.permute.xlu0 %549
        %551 = vrot.lane.b32.xlu0 %v543, 48
        %v552 = vpop.permute.xlu0 %551
        %v557 = vsel %vm408, %v320, %v508
        %v558 = vsel %vm408, %v321, %v510
        %v559 = vsel %vm408, %v322, %v512
        %v560 = vsel %vm408, %v323, %v514
        %v561 = vsel %vm413, %v557, %v527
        %v562 = vsel %vm413, %v558, %v529
        %v563 = vsel %vm413, %v559, %v531
        %v564 = vsel %vm413, %v560, %v533
        %v565 = vsel %vm418, %v561, %v546
        %v566 = vsel %vm418, %v562, %v548
        %v567 = vsel %vm418, %v563, %v550
        %v568 = vsel %vm418, %v564, %v552
        %v573 = vrot.slane %v324, 1
        %v574 = vrot.slane %v325, 1
        %v575 = vsel %vm348, %v573, %v574
        %v576 = vrot.slane %v326, 1
        %v577 = vsel %vm348, %v574, %v576
        %v578 = vrot.slane %v327, 1
        %v579 = vsel %vm348, %v576, %v578
        %580 = vrot.lane.b32.xlu0 %v575, 16
        %v581 = vpop.permute.xlu0 %580
        %582 = vrot.lane.b32.xlu0 %v577, 16
        %v583 = vpop.permute.xlu0 %582
        %584 = vrot.lane.b32.xlu0 %v579, 16
        %v585 = vpop.permute.xlu0 %584
        %586 = vrot.lane.b32.xlu0 %v578, 16
        %v587 = vpop.permute.xlu0 %586
        %v592 = vrot.slane %v324, 2
        %v593 = vrot.slane %v325, 2
        %v594 = vsel %vm368, %v592, %v593
        %v595 = vrot.slane %v326, 2
        %v596 = vsel %vm368, %v593, %v595
        %v597 = vrot.slane %v327, 2
        %v598 = vsel %vm368, %v595, %v597
        %599 = vrot.lane.b32.xlu0 %v594, 32
        %v600 = vpop.permute.xlu0 %599
        %601 = vrot.lane.b32.xlu0 %v596, 32
        %v602 = vpop.permute.xlu0 %601
        %603 = vrot.lane.b32.xlu0 %v598, 32
        %v604 = vpop.permute.xlu0 %603
        %605 = vrot.lane.b32.xlu0 %v597, 32
        %v606 = vpop.permute.xlu0 %605
        %v611 = vrot.slane %v324, 3
        %v612 = vrot.slane %v325, 3
        %v613 = vsel %vm388, %v611, %v612
        %v614 = vrot.slane %v326, 3
        %v615 = vsel %vm388, %v612, %v614
        %v616 = vrot.slane %v327, 3
        %v617 = vsel %vm388, %v614, %v616
        %618 = vrot.lane.b32.xlu0 %v613, 48
        %v619 = vpop.permute.xlu0 %618
        %620 = vrot.lane.b32.xlu0 %v615, 48
        %v621 = vpop.permute.xlu0 %620
        %622 = vrot.lane.b32.xlu0 %v617, 48
        %v623 = vpop.permute.xlu0 %622
        %624 = vrot.lane.b32.xlu0 %v616, 48
        %v625 = vpop.permute.xlu0 %624
        %v630 = vsel %vm408, %v324, %v581
        %v631 = vsel %vm408, %v325, %v583
        %v632 = vsel %vm408, %v326, %v585
        %v633 = vsel %vm408, %v327, %v587
        %v634 = vsel %vm413, %v630, %v600
        %v635 = vsel %vm413, %v631, %v602
        %v636 = vsel %vm413, %v632, %v604
        %v637 = vsel %vm413, %v633, %v606
        %v638 = vsel %vm418, %v634, %v619
        %v639 = vsel %vm418, %v635, %v621
        %v640 = vsel %vm418, %v636, %v623
        %v641 = vsel %vm418, %v637, %v625
        %v646 = vrot.slane %v328, 1
        %v647 = vrot.slane %v329, 1
        %v648 = vsel %vm348, %v646, %v647
        %v649 = vrot.slane %v330, 1
        %v650 = vsel %vm348, %v647, %v649
        %v651 = vrot.slane %v331, 1
        %v652 = vsel %vm348, %v649, %v651
        %653 = vrot.lane.b32.xlu0 %v648, 16
        %v654 = vpop.permute.xlu0 %653
        %655 = vrot.lane.b32.xlu0 %v650, 16
        %v656 = vpop.permute.xlu0 %655
        %657 = vrot.lane.b32.xlu0 %v652, 16
        %v658 = vpop.permute.xlu0 %657
        %659 = vrot.lane.b32.xlu0 %v651, 16
        %v660 = vpop.permute.xlu0 %659
        %v665 = vrot.slane %v328, 2
        %v666 = vrot.slane %v329, 2
        %v667 = vsel %vm368, %v665, %v666
        %v668 = vrot.slane %v330, 2
        %v669 = vsel %vm368, %v666, %v668
        %v670 = vrot.slane %v331, 2
        %v671 = vsel %vm368, %v668, %v670
        %672 = vrot.lane.b32.xlu0 %v667, 32
        %v673 = vpop.permute.xlu0 %672
        %674 = vrot.lane.b32.xlu0 %v669, 32
        %v675 = vpop.permute.xlu0 %674
        %676 = vrot.lane.b32.xlu0 %v671, 32
        %v677 = vpop.permute.xlu0 %676
        %678 = vrot.lane.b32.xlu0 %v670, 32
        %v679 = vpop.permute.xlu0 %678
        %v684 = vrot.slane %v328, 3
        %v685 = vrot.slane %v329, 3
        %v686 = vsel %vm388, %v684, %v685
        %v687 = vrot.slane %v330, 3
        %v688 = vsel %vm388, %v685, %v687
        %v689 = vrot.slane %v331, 3
        %v690 = vsel %vm388, %v687, %v689
        %691 = vrot.lane.b32.xlu0 %v686, 48
        %v692 = vpop.permute.xlu0 %691
        %693 = vrot.lane.b32.xlu0 %v688, 48
        %v694 = vpop.permute.xlu0 %693
        %695 = vrot.lane.b32.xlu0 %v690, 48
        %v696 = vpop.permute.xlu0 %695
        %697 = vrot.lane.b32.xlu0 %v689, 48
        %v698 = vpop.permute.xlu0 %697
        %v703 = vsel %vm408, %v328, %v654
        %v704 = vsel %vm408, %v329, %v656
        %v705 = vsel %vm408, %v330, %v658
        %v706 = vsel %vm408, %v331, %v660
        %v707 = vsel %vm413, %v703, %v673
        %v708 = vsel %vm413, %v704, %v675
        %v709 = vsel %vm413, %v705, %v677
        %v710 = vsel %vm413, %v706, %v679
        %v711 = vsel %vm418, %v707, %v692
        %v712 = vsel %vm418, %v708, %v694
        %v713 = vsel %vm418, %v709, %v696
        %v714 = vsel %vm418, %v710, %v698
        %v719 = vrot.slane %v332, 1
        %v720 = vrot.slane %v333, 1
        %v721 = vsel %vm348, %v719, %v720
        %v722 = vrot.slane %v334, 1
        %v723 = vsel %vm348, %v720, %v722
        %v724 = vrot.slane %v335, 1
        %v725 = vsel %vm348, %v722, %v724
        %726 = vrot.lane.b32.xlu0 %v721, 16
        %v727 = vpop.permute.xlu0 %726
        %728 = vrot.lane.b32.xlu0 %v723, 16
        %v729 = vpop.permute.xlu0 %728
        %730 = vrot.lane.b32.xlu0 %v725, 16
        %v731 = vpop.permute.xlu0 %730
        %732 = vrot.lane.b32.xlu0 %v724, 16
        %v733 = vpop.permute.xlu0 %732
        %v738 = vrot.slane %v332, 2
        %v739 = vrot.slane %v333, 2
        %v740 = vsel %vm368, %v738, %v739
        %v741 = vrot.slane %v334, 2
        %v742 = vsel %vm368, %v739, %v741
        %v743 = vrot.slane %v335, 2
        %v744 = vsel %vm368, %v741, %v743
        %745 = vrot.lane.b32.xlu0 %v740, 32
        %v746 = vpop.permute.xlu0 %745
        %747 = vrot.lane.b32.xlu0 %v742, 32
        %v748 = vpop.permute.xlu0 %747
        %749 = vrot.lane.b32.xlu0 %v744, 32
        %v750 = vpop.permute.xlu0 %749
        %751 = vrot.lane.b32.xlu0 %v743, 32
        %v752 = vpop.permute.xlu0 %751
        %v757 = vrot.slane %v332, 3
        %v758 = vrot.slane %v333, 3
        %v759 = vsel %vm388, %v757, %v758
        %v760 = vrot.slane %v334, 3
        %v761 = vsel %vm388, %v758, %v760
        %v762 = vrot.slane %v335, 3
        %v763 = vsel %vm388, %v760, %v762
        %764 = vrot.lane.b32.xlu0 %v759, 48
        %v765 = vpop.permute.xlu0 %764
        %766 = vrot.lane.b32.xlu0 %v761, 48
        %v767 = vpop.permute.xlu0 %766
        %768 = vrot.lane.b32.xlu0 %v763, 48
        %v769 = vpop.permute.xlu0 %768
        %770 = vrot.lane.b32.xlu0 %v762, 48
        %v771 = vpop.permute.xlu0 %770
        %v776 = vsel %vm408, %v332, %v727
        %v777 = vsel %vm408, %v333, %v729
        %v778 = vsel %vm408, %v334, %v731
        %v779 = vsel %vm408, %v335, %v733
        %v780 = vsel %vm413, %v776, %v746
        %v781 = vsel %vm413, %v777, %v748
        %v782 = vsel %vm413, %v778, %v750
        %v783 = vsel %vm413, %v779, %v752
        %v784 = vsel %vm418, %v780, %v765
        %v785 = vsel %vm418, %v781, %v767
        %v786 = vsel %vm418, %v782, %v769
        %v787 = vsel %vm418, %v783, %v771
        %v792 = vrot.slane %v336, 1
        %v793 = vrot.slane %v337, 1
        %v794 = vsel %vm348, %v792, %v793
        %v795 = vrot.slane %v338, 1
        %v796 = vsel %vm348, %v793, %v795
        %v797 = vrot.slane %v339, 1
        %v798 = vsel %vm348, %v795, %v797
        %799 = vrot.lane.b32.xlu0 %v794, 16
        %v800 = vpop.permute.xlu0 %799
        %801 = vrot.lane.b32.xlu0 %v796, 16
        %v802 = vpop.permute.xlu0 %801
        %803 = vrot.lane.b32.xlu0 %v798, 16
        %v804 = vpop.permute.xlu0 %803
        %805 = vrot.lane.b32.xlu0 %v797, 16
        %v806 = vpop.permute.xlu0 %805
        %v811 = vrot.slane %v336, 2
        %v812 = vrot.slane %v337, 2
        %v813 = vsel %vm368, %v811, %v812
        %v814 = vrot.slane %v338, 2
        %v815 = vsel %vm368, %v812, %v814
        %v816 = vrot.slane %v339, 2
        %v817 = vsel %vm368, %v814, %v816
        %818 = vrot.lane.b32.xlu0 %v813, 32
        %v819 = vpop.permute.xlu0 %818
        %820 = vrot.lane.b32.xlu0 %v815, 32
        %v821 = vpop.permute.xlu0 %820
        %822 = vrot.lane.b32.xlu0 %v817, 32
        %v823 = vpop.permute.xlu0 %822
        %824 = vrot.lane.b32.xlu0 %v816, 32
        %v825 = vpop.permute.xlu0 %824
        %v830 = vrot.slane %v336, 3
        %v831 = vrot.slane %v337, 3
        %v832 = vsel %vm388, %v830, %v831
        %v833 = vrot.slane %v338, 3
        %v834 = vsel %vm388, %v831, %v833
        %v835 = vrot.slane %v339, 3
        %v836 = vsel %vm388, %v833, %v835
        %837 = vrot.lane.b32.xlu0 %v832, 48
        %v838 = vpop.permute.xlu0 %837
        %839 = vrot.lane.b32.xlu0 %v834, 48
        %v840 = vpop.permute.xlu0 %839
        %841 = vrot.lane.b32.xlu0 %v836, 48
        %v842 = vpop.permute.xlu0 %841
        %843 = vrot.lane.b32.xlu0 %v835, 48
        %v844 = vpop.permute.xlu0 %843
        %v849 = vsel %vm408, %v336, %v800
        %v850 = vsel %vm408, %v337, %v802
        %v851 = vsel %vm408, %v338, %v804
        %v852 = vsel %vm408, %v339, %v806
        %v853 = vsel %vm413, %v849, %v819
        %v854 = vsel %vm413, %v850, %v821
        %v855 = vsel %vm413, %v851, %v823
        %v856 = vsel %vm413, %v852, %v825
        %v857 = vsel %vm418, %v853, %v838
        %v858 = vsel %vm418, %v854, %v840
        %v859 = vsel %vm418, %v855, %v842
        %v860 = vsel %vm418, %v856, %v844
        %v865 = vrot.slane %v340, 1
        %v866 = vrot.slane %v341, 1
        %v867 = vsel %vm348, %v865, %v866
        %v868 = vrot.slane %v342, 1
        %v869 = vsel %vm348, %v866, %v868
        %v870 = vrot.slane %v343, 1
        %v871 = vsel %vm348, %v868, %v870
        %872 = vrot.lane.b32.xlu0 %v867, 16
        %v873 = vpop.permute.xlu0 %872
        %874 = vrot.lane.b32.xlu0 %v869, 16
        %v875 = vpop.permute.xlu0 %874
        %876 = vrot.lane.b32.xlu0 %v871, 16
        %v877 = vpop.permute.xlu0 %876
        %878 = vrot.lane.b32.xlu0 %v870, 16
        %v879 = vpop.permute.xlu0 %878
        %v884 = vrot.slane %v340, 2
        %v885 = vrot.slane %v341, 2
        %v886 = vsel %vm368, %v884, %v885
        %v887 = vrot.slane %v342, 2
        %v888 = vsel %vm368, %v885, %v887
        %v889 = vrot.slane %v343, 2
        %v890 = vsel %vm368, %v887, %v889
        %891 = vrot.lane.b32.xlu0 %v886, 32
        %v892 = vpop.permute.xlu0 %891
        %893 = vrot.lane.b32.xlu0 %v888, 32
        %v894 = vpop.permute.xlu0 %893
        %895 = vrot.lane.b32.xlu0 %v890, 32
        %v896 = vpop.permute.xlu0 %895
        %897 = vrot.lane.b32.xlu0 %v889, 32
        %v898 = vpop.permute.xlu0 %897
        %v903 = vrot.slane %v340, 3
        %v904 = vrot.slane %v341, 3
        %v905 = vsel %vm388, %v903, %v904
        %v906 = vrot.slane %v342, 3
        %v907 = vsel %vm388, %v904, %v906
        %v908 = vrot.slane %v343, 3
        %v909 = vsel %vm388, %v906, %v908
        %910 = vrot.lane.b32.xlu0 %v905, 48
        %v911 = vpop.permute.xlu0 %910
        %912 = vrot.lane.b32.xlu0 %v907, 48
        %v913 = vpop.permute.xlu0 %912
        %914 = vrot.lane.b32.xlu0 %v909, 48
        %v915 = vpop.permute.xlu0 %914
        %916 = vrot.lane.b32.xlu0 %v908, 48
        %v917 = vpop.permute.xlu0 %916
        %v922 = vsel %vm408, %v340, %v873
        %v923 = vsel %vm408, %v341, %v875
        %v924 = vsel %vm408, %v342, %v877
        %v925 = vsel %vm408, %v343, %v879
        %v926 = vsel %vm413, %v922, %v892
        %v927 = vsel %vm413, %v923, %v894
        %v928 = vsel %vm413, %v924, %v896
        %v929 = vsel %vm413, %v925, %v898
        %v930 = vsel %vm418, %v926, %v911
        %v931 = vsel %vm418, %v927, %v913
        %v932 = vsel %vm418, %v928, %v915
        %v933 = vsel %vm418, %v929, %v917
        %v938 = vrot.slane %v492, 3
        %v939 = vrot.slane %v493, 3
        %v940 = vsel %vm388, %v938, %v939
        %v941 = vrot.slane %v494, 3
        %v942 = vsel %vm388, %v939, %v941
        %v943 = vrot.slane %v495, 3
        %v944 = vsel %vm388, %v941, %v943
        %vm954 = vcmask 1041408
        %v955 = vrot.slane %v565, 6
        %v956 = vrot.slane %v566, 6
        %v957 = vsel %vm954, %v955, %v956
        %v958 = vrot.slane %v567, 6
        %v959 = vsel %vm954, %v956, %v958
        %v960 = vrot.slane %v568, 6
        %v961 = vsel %vm954, %v958, %v960
        %v970 = vrot.slane %v638, 1
        %v971 = vrot.slane %v639, 1
        %v972 = vsel %vm348, %v970, %v971
        %v973 = vrot.slane %v640, 1
        %v974 = vsel %vm348, %v971, %v973
        %v975 = vrot.slane %v641, 1
        %v976 = vsel %vm348, %v973, %v975
        %vm986 = vcmask 1043456
        %v987 = vrot.slane %v711, 4
        %v988 = vrot.slane %v712, 4
        %v989 = vsel %vm986, %v987, %v988
        %v990 = vrot.slane %v713, 4
        %v991 = vsel %vm986, %v988, %v990
        %v992 = vrot.slane %v714, 4
        %v993 = vsel %vm986, %v990, %v992
        %vm1003 = vcmask 1040384
        %v1004 = vrot.slane %v784, 7
        %v1005 = vrot.slane %v785, 7
        %v1006 = vsel %vm1003, %v1004, %v1005
        %v1007 = vrot.slane %v786, 7
        %v1008 = vsel %vm1003, %v1005, %v1007
        %v1009 = vrot.slane %v787, 7
        %v1010 = vsel %vm1003, %v1007, %v1009
        %v1019 = vrot.slane %v857, 2
        %v1020 = vrot.slane %v858, 2
        %v1021 = vsel %vm368, %v1019, %v1020
        %v1022 = vrot.slane %v859, 2
        %v1023 = vsel %vm368, %v1020, %v1022
        %v1024 = vrot.slane %v860, 2
        %v1025 = vsel %vm368, %v1022, %v1024
        %vm1035 = vcmask 1042432
        %v1036 = vrot.slane %v930, 5
        %v1037 = vrot.slane %v931, 5
        %v1038 = vsel %vm1035, %v1036, %v1037
        %v1039 = vrot.slane %v932, 5
        %v1040 = vsel %vm1035, %v1037, %v1039
        %v1041 = vrot.slane %v933, 5
        %v1042 = vsel %vm1035, %v1039, %v1041
        %v1047 = vsel %vm388, %v422, %v938
        %v1048 = vsel %vm954, %v943, %v955
        %v1049 = vsel %vm348, %v961, %v970
        %v1050 = vsel %vm986, %v975, %v987
        %v1051 = vsel %vm1003, %v992, %v1004
        %v1052 = vsel %vm368, %v1010, %v1019
        %v1053 = vsel %vm1035, %v1024, %v1036
        %v1054 = vpack.c.bf16 %v420, %v419
        %v1055 = vpack.c.bf16 %v1047, %v421
        %v1056 = vpack.c.bf16 %v942, %v940
        %v1057 = vpack.c.bf16 %v1048, %v944
        %v1058 = vpack.c.bf16 %v959, %v957
        %v1059 = vpack.c.bf16 %v972, %v1049
        %v1060 = vpack.c.bf16 %v976, %v974
        %v1061 = vpack.c.bf16 %v989, %v1050
        %v1062 = vpack.c.bf16 %v993, %v991
        %v1063 = vpack.c.bf16 %v1006, %v1051
        %v1064 = vpack.c.bf16 %v1052, %v1008
        %v1065 = vpack.c.bf16 %v1023, %v1021
        %v1066 = vpack.c.bf16 %v1053, %v1025
        %v1067 = vpack.c.bf16 %v1040, %v1038
        %v1068 = vpack.c.bf16 %v1042, %v1042
        %v1069 = vld [vmem:[%s1] sm:$0xf]
        %v1070 = vld [vmem:[%s1 + $0x4] sm:$0xf]
        %v1071 = vld [vmem:[%s1 + $0x8] sm:$0xf]
        %v1072 = vld [vmem:[%s1 + $0xc] sm:$0xf]
        %v1073 = vld [vmem:[%s1 + $0x10] sm:$0xf]
        %v1074 = vld [vmem:[%s1 + $0x14] sm:$0xf]
        %v1075 = vld [vmem:[%s1 + $0x18] sm:$0xf]
        %v1076 = vld [vmem:[%s1 + $0x1c] sm:$0xf]
        %v1077 = vld [vmem:[%s2] sm:$0x1]
        %v1079 = vperm.slane %v1077, 0
        %v1089 = vunpack.c.l.b16 %v1069
        %v1090 = vunpack.c.l.b16 %v1070
        %v1091 = vunpack.c.l.b16 %v1071
        %v1092 = vunpack.c.l.b16 %v1072
        %v1093 = vunpack.c.l.b16 %v1073
        %v1094 = vunpack.c.l.b16 %v1074
        %v1095 = vunpack.c.l.b16 %v1075
        %v1096 = vunpack.c.l.b16 %v1076
        %v1097 = vpack.c.b16 %v1090, %v1089
        %v1098 = vpack.c.b16 %v1092, %v1091
        %v1099 = vpack.c.b16 %v1094, %v1093
        %v1100 = vpack.c.b16 %v1096, %v1095
        %vm1105 = vcmask 523264
        %v1107 = vsel %vm1105, %v1054, 0
        %v1110 = vsel %vm1105, %v1055, 0
        %v1113 = vsel %vm1105, %v1056, 0
        %v1116 = vsel %vm1105, %v1057, 0
        %v1119 = vsel %vm1105, %v1058, 0
        %v1122 = vsel %vm1105, %v1059, 0
        %v1125 = vsel %vm1105, %v1060, 0
        %v1128 = vsel %vm1105, %v1061, 0
        %v1131 = vsel %vm1105, %v1062, 0
        %v1134 = vsel %vm1105, %v1063, 0
        %v1137 = vsel %vm1105, %v1064, 0
        %v1140 = vsel %vm1105, %v1065, 0
        %v1143 = vsel %vm1105, %v1066, 0
        %v1146 = vsel %vm1105, %v1067, 0
        %v1149 = vsel %vm1105, %v1068, 0
        %1151 = vmatpush.bf16.msra.mxu0 0
        %1152 = vmatpush.bf16.msra.mxu0 0
        %1153 = vmatpush.bf16.msra.mxu0 0
        %1154 = vmatpush.bf16.msra.mxu0 0
        %1155 = vmatpush.bf16.msra.mxu0 %v1100
        %1156 = vmatpush.bf16.msra.mxu0 %v1099
        %1157 = vmatpush.bf16.msra.mxu0 %v1098
        %1158 = vmatpush.bf16.msra.mxu0 %v1097
        %1159 = vmatmul.bf16.gmra.mxu0 %v1107
        %v1160 = vpop.f32.mrf.mxu0
        %v1161 = vadd.f32 %v1079, %v1160
        %v1162 = vpop.f32.mrf.mxu0
        %v1163 = vadd.f32 %v1079, %v1162
        %1164 = vmatmul.bf16.gmra.mxu0 %v1110
        %v1165 = vpop.f32.mrf.mxu0
        %v1166 = vadd.f32 %v1079, %v1165
        %v1167 = vpop.f32.mrf.mxu0
        %v1168 = vadd.f32 %v1079, %v1167
        %1169 = vmatmul.bf16.gmra.mxu0 %v1113
        %v1170 = vpop.f32.mrf.mxu0
        %v1171 = vadd.f32 %v1079, %v1170
        %v1172 = vpop.f32.mrf.mxu0
        %v1173 = vadd.f32 %v1079, %v1172
        %1174 = vmatmul.bf16.gmra.mxu0 %v1116
        %v1175 = vpop.f32.mrf.mxu0
        %v1176 = vadd.f32 %v1079, %v1175
        %v1177 = vpop.f32.mrf.mxu0
        %v1178 = vadd.f32 %v1079, %v1177
        %1179 = vmatmul.bf16.gmra.mxu0 %v1119
        %v1180 = vpop.f32.mrf.mxu0
        %v1181 = vadd.f32 %v1079, %v1180
        %v1182 = vpop.f32.mrf.mxu0
        %v1183 = vadd.f32 %v1079, %v1182
        %1184 = vmatmul.bf16.gmra.mxu0 %v1122
        %v1185 = vpop.f32.mrf.mxu0
        %v1186 = vadd.f32 %v1079, %v1185
        %v1187 = vpop.f32.mrf.mxu0
        %v1188 = vadd.f32 %v1079, %v1187
        %1189 = vmatmul.bf16.gmra.mxu0 %v1125
        %v1190 = vpop.f32.mrf.mxu0
        %v1191 = vadd.f32 %v1079, %v1190
        %v1192 = vpop.f32.mrf.mxu0
        %v1193 = vadd.f32 %v1079, %v1192
        %1194 = vmatmul.bf16.gmra.mxu0 %v1128
        %v1195 = vpop.f32.mrf.mxu0
        %v1196 = vadd.f32 %v1079, %v1195
        %v1197 = vpop.f32.mrf.mxu0
        %v1198 = vadd.f32 %v1079, %v1197
        %1199 = vmatmul.bf16.gmra.mxu0 %v1131
        %v1200 = vpop.f32.mrf.mxu0
        %v1201 = vadd.f32 %v1079, %v1200
        %v1202 = vpop.f32.mrf.mxu0
        %v1203 = vadd.f32 %v1079, %v1202
        %1204 = vmatmul.bf16.gmra.mxu0 %v1134
        %v1205 = vpop.f32.mrf.mxu0
        %v1206 = vadd.f32 %v1079, %v1205
        %v1207 = vpop.f32.mrf.mxu0
        %v1208 = vadd.f32 %v1079, %v1207
        %1209 = vmatmul.bf16.gmra.mxu0 %v1137
        %v1210 = vpop.f32.mrf.mxu0
        %v1211 = vadd.f32 %v1079, %v1210
        %v1212 = vpop.f32.mrf.mxu0
        %v1213 = vadd.f32 %v1079, %v1212
        %1214 = vmatmul.bf16.gmra.mxu0 %v1140
        %v1215 = vpop.f32.mrf.mxu0
        %v1216 = vadd.f32 %v1079, %v1215
        %v1217 = vpop.f32.mrf.mxu0
        %v1218 = vadd.f32 %v1079, %v1217
        %1219 = vmatmul.bf16.gmra.mxu0 %v1143
        %v1220 = vpop.f32.mrf.mxu0
        %v1221 = vadd.f32 %v1079, %v1220
        %v1222 = vpop.f32.mrf.mxu0
        %v1223 = vadd.f32 %v1079, %v1222
        %1224 = vmatmul.bf16.gmra.mxu0 %v1146
        %v1225 = vpop.f32.mrf.mxu0
        %v1226 = vadd.f32 %v1079, %v1225
        %v1227 = vpop.f32.mrf.mxu0
        %v1228 = vadd.f32 %v1079, %v1227
        %1229 = vmatmul.bf16.gmra.mxu0 %v1149
        %v1230 = vpop.f32.mrf.mxu0
        %v1231 = vadd.f32 %v1079, %v1230
        %v1232 = vpop.f32.mrf.mxu0
        %1233 = vdwg.mxu0
        %v1234 = vmax.f32 %v1161, 0.0
        %v1235 = vmax.f32 %v1163, 0.0
        %v1236 = vmax.f32 %v1166, 0.0
        %v1237 = vmax.f32 %v1168, 0.0
        %v1238 = vmax.f32 %v1171, 0.0
        %v1239 = vmax.f32 %v1173, 0.0
        %v1240 = vmax.f32 %v1176, 0.0
        %v1241 = vmax.f32 %v1178, 0.0
        %v1242 = vmax.f32 %v1181, 0.0
        %v1243 = vmax.f32 %v1183, 0.0
        %v1244 = vmax.f32 %v1186, 0.0
        %v1245 = vmax.f32 %v1188, 0.0
        %v1246 = vmax.f32 %v1191, 0.0
        %v1247 = vmax.f32 %v1193, 0.0
        %v1248 = vmax.f32 %v1196, 0.0
        %v1249 = vmax.f32 %v1198, 0.0
        %v1250 = vmax.f32 %v1201, 0.0
        %v1251 = vmax.f32 %v1203, 0.0
        %v1252 = vmax.f32 %v1206, 0.0
        %v1253 = vmax.f32 %v1208, 0.0
        %v1254 = vmax.f32 %v1211, 0.0
        %v1255 = vmax.f32 %v1213, 0.0
        %v1256 = vmax.f32 %v1216, 0.0
        %v1257 = vmax.f32 %v1218, 0.0
        %v1258 = vmax.f32 %v1221, 0.0
        %v1259 = vmax.f32 %v1223, 0.0
        %v1260 = vmax.f32 %v1226, 0.0
        %v1261 = vmax.f32 %v1228, 0.0
        %v1262 = vmax.f32 %v1231, 0.0
        %v1266 = vrot.slane %v1234, 1
        %v1267 = vrot.slane %v1235, 1
        %v1268 = vsel %vm348, %v1266, %v1267
        %v1269 = vrot.slane %v1236, 1
        %v1270 = vsel %vm348, %v1267, %v1269
        %1271 = vrot.lane.b32.xlu0 %v1268, 32
        %v1272 = vpop.permute.xlu0 %1271
        %1273 = vrot.lane.b32.xlu0 %v1270, 32
        %v1274 = vpop.permute.xlu0 %1273
        %1275 = vrot.lane.b32.xlu0 %v1269, 32
        %v1276 = vpop.permute.xlu0 %1275
        %v1280 = vrot.slane %v1234, 2
        %v1281 = vrot.slane %v1235, 2
        %v1282 = vsel %vm368, %v1280, %v1281
        %v1283 = vrot.slane %v1236, 2
        %v1284 = vsel %vm368, %v1281, %v1283
        %1285 = vrot.lane.b32.xlu0 %v1282, 64
        %v1286 = vpop.permute.xlu0 %1285
        %1287 = vrot.lane.b32.xlu0 %v1284, 64
        %v1288 = vpop.permute.xlu0 %1287
        %1289 = vrot.lane.b32.xlu0 %v1283, 64
        %v1290 = vpop.permute.xlu0 %1289
        %v1295 = vrot.slane %v1234, 3
        %v1296 = vrot.slane %v1235, 3
        %v1297 = vsel %vm388, %v1295, %v1296
        %v1298 = vrot.slane %v1236, 3
        %v1299 = vsel %vm388, %v1296, %v1298
        %v1300 = vrot.slane %v1237, 3
        %v1301 = vsel %vm388, %v1298, %v1300
        %1302 = vrot.lane.b32.xlu0 %v1297, 96
        %v1303 = vpop.permute.xlu0 %1302
        %1304 = vrot.lane.b32.xlu0 %v1299, 96
        %v1305 = vpop.permute.xlu0 %1304
        %1306 = vrot.lane.b32.xlu0 %v1301, 96
        %v1307 = vpop.permute.xlu0 %1306
        %v1311 = vrot.slane %v1234, 4
        %v1312 = vrot.slane %v1235, 4
        %v1313 = vsel %vm986, %v1311, %v1312
        %v1314 = vrot.slane %v1236, 4
        %v1315 = vsel %vm986, %v1312, %v1314
        %v1316 = vrot.slane %v1237, 4
        %v1317 = vsel %vm986, %v1314, %v1316
        %v1321 = vrot.slane %v1234, 5
        %v1322 = vrot.slane %v1235, 5
        %v1323 = vsel %vm1035, %v1321, %v1322
        %v1324 = vrot.slane %v1236, 5
        %v1325 = vsel %vm1035, %v1322, %v1324
        %v1326 = vrot.slane %v1237, 5
        %v1327 = vsel %vm1035, %v1324, %v1326
        %1328 = vrot.lane.b32.xlu0 %v1323, 32
        %v1329 = vpop.permute.xlu0 %1328
        %1330 = vrot.lane.b32.xlu0 %v1325, 32
        %v1331 = vpop.permute.xlu0 %1330
        %1332 = vrot.lane.b32.xlu0 %v1327, 32
        %v1333 = vpop.permute.xlu0 %1332
        %v1337 = vrot.slane %v1234, 6
        %v1338 = vrot.slane %v1235, 6
        %v1339 = vsel %vm954, %v1337, %v1338
        %v1340 = vrot.slane %v1236, 6
        %v1341 = vsel %vm954, %v1338, %v1340
        %v1342 = vrot.slane %v1237, 6
        %v1343 = vsel %vm954, %v1340, %v1342
        %1344 = vrot.lane.b32.xlu0 %v1339, 64
        %v1345 = vpop.permute.xlu0 %1344
        %1346 = vrot.lane.b32.xlu0 %v1341, 64
        %v1347 = vpop.permute.xlu0 %1346
        %1348 = vrot.lane.b32.xlu0 %v1343, 64
        %v1349 = vpop.permute.xlu0 %1348
        %v1353 = vrot.slane %v1234, 7
        %v1354 = vrot.slane %v1235, 7
        %v1355 = vsel %vm1003, %v1353, %v1354
        %v1356 = vrot.slane %v1236, 7
        %v1357 = vsel %vm1003, %v1354, %v1356
        %v1358 = vrot.slane %v1237, 7
        %v1359 = vsel %vm1003, %v1356, %v1358
        %1360 = vrot.lane.b32.xlu0 %v1355, 96
        %v1361 = vpop.permute.xlu0 %1360
        %1362 = vrot.lane.b32.xlu0 %v1357, 96
        %v1363 = vpop.permute.xlu0 %1362
        %1364 = vrot.lane.b32.xlu0 %v1359, 96
        %v1365 = vpop.permute.xlu0 %1364
        %v1369 = vsel %vm413, %v1234, %v1272
        %v1370 = vsel %vm413, %v1235, %v1274
        %v1371 = vsel %vm413, %v1236, %v1276
        %v1372 = vsel %vm1105, %v1369, %v1286
        %v1373 = vsel %vm1105, %v1370, %v1288
        %v1374 = vsel %vm1105, %v1371, %v1290
        %vm1375 = vcmask 785408
        %v1376 = vsel %vm1375, %v1372, %v1303
        %v1377 = vsel %vm1375, %v1373, %v1305
        %v1378 = vsel %vm1375, %v1374, %v1307
        %v1379 = vsel %vm413, %v1313, %v1329
        %v1380 = vsel %vm413, %v1315, %v1331
        %v1381 = vsel %vm413, %v1317, %v1333
        %v1382 = vsel %vm1105, %v1379, %v1345
        %v1383 = vsel %vm1105, %v1380, %v1347
        %v1384 = vsel %vm1105, %v1381, %v1349
        %v1385 = vsel %vm1375, %v1382, %v1361
        %v1386 = vsel %vm1375, %v1383, %v1363
        %v1387 = vsel %vm1375, %v1384, %v1365
        %v1391 = vrot.slane %v1237, 1
        %v1392 = vrot.slane %v1238, 1
        %v1393 = vsel %vm348, %v1391, %v1392
        %v1394 = vrot.slane %v1239, 1
        %v1395 = vsel %vm348, %v1392, %v1394
        %v1396 = vrot.slane %v1240, 1
        %v1397 = vsel %vm348, %v1394, %v1396
        %1398 = vrot.lane.b32.xlu0 %v1393, 32
        %v1399 = vpop.permute.xlu0 %1398
        %1400 = vrot.lane.b32.xlu0 %v1395, 32
        %v1401 = vpop.permute.xlu0 %1400
        %1402 = vrot.lane.b32.xlu0 %v1397, 32
        %v1403 = vpop.permute.xlu0 %1402
        %1404 = vrot.lane.b32.xlu0 %v1396, 32
        %v1405 = vpop.permute.xlu0 %1404
        %v1410 = vrot.slane %v1237, 2
        %v1411 = vrot.slane %v1238, 2
        %v1412 = vsel %vm368, %v1410, %v1411
        %v1413 = vrot.slane %v1239, 2
        %v1414 = vsel %vm368, %v1411, %v1413
        %v1415 = vrot.slane %v1240, 2
        %v1416 = vsel %vm368, %v1413, %v1415
        %1417 = vrot.lane.b32.xlu0 %v1412, 64
        %v1418 = vpop.permute.xlu0 %1417
        %1419 = vrot.lane.b32.xlu0 %v1414, 64
        %v1420 = vpop.permute.xlu0 %1419
        %1421 = vrot.lane.b32.xlu0 %v1416, 64
        %v1422 = vpop.permute.xlu0 %1421
        %1423 = vrot.lane.b32.xlu0 %v1415, 64
        %v1424 = vpop.permute.xlu0 %1423
        %v1429 = vrot.slane %v1238, 3
        %v1430 = vrot.slane %v1239, 3
        %v1431 = vsel %vm388, %v1429, %v1430
        %v1432 = vrot.slane %v1240, 3
        %v1433 = vsel %vm388, %v1430, %v1432
        %1434 = vrot.lane.b32.xlu0 %v1429, 96
        %v1435 = vpop.permute.xlu0 %1434
        %1436 = vrot.lane.b32.xlu0 %v1431, 96
        %v1437 = vpop.permute.xlu0 %1436
        %1438 = vrot.lane.b32.xlu0 %v1433, 96
        %v1439 = vpop.permute.xlu0 %1438
        %1440 = vrot.lane.b32.xlu0 %v1432, 96
        %v1441 = vpop.permute.xlu0 %1440
        %v1446 = vrot.slane %v1238, 4
        %v1447 = vrot.slane %v1239, 4
        %v1448 = vsel %vm986, %v1446, %v1447
        %v1449 = vrot.slane %v1240, 4
        %v1450 = vsel %vm986, %v1447, %v1449
        %v1455 = vrot.slane %v1238, 5
        %v1456 = vrot.slane %v1239, 5
        %v1457 = vsel %vm1035, %v1455, %v1456
        %v1458 = vrot.slane %v1240, 5
        %v1459 = vsel %vm1035, %v1456, %v1458
        %1460 = vrot.lane.b32.xlu0 %v1455, 32
        %v1461 = vpop.permute.xlu0 %1460
        %1462 = vrot.lane.b32.xlu0 %v1457, 32
        %v1463 = vpop.permute.xlu0 %1462
        %1464 = vrot.lane.b32.xlu0 %v1459, 32
        %v1465 = vpop.permute.xlu0 %1464
        %1466 = vrot.lane.b32.xlu0 %v1458, 32
        %v1467 = vpop.permute.xlu0 %1466
        %v1473 = vrot.slane %v1238, 6
        %v1474 = vrot.slane %v1239, 6
        %v1475 = vsel %vm954, %v1473, %v1474
        %v1476 = vrot.slane %v1240, 6
        %v1477 = vsel %vm954, %v1474, %v1476
        %v1478 = vrot.slane %v1241, 6
        %v1479 = vsel %vm954, %v1476, %v1478
        %1480 = vrot.lane.b32.xlu0 %v1473, 64
        %v1481 = vpop.permute.xlu0 %1480
        %1482 = vrot.lane.b32.xlu0 %v1475, 64
        %v1483 = vpop.permute.xlu0 %1482
        %1484 = vrot.lane.b32.xlu0 %v1477, 64
        %v1485 = vpop.permute.xlu0 %1484
        %1486 = vrot.lane.b32.xlu0 %v1479, 64
        %v1487 = vpop.permute.xlu0 %1486
        %v1492 = vrot.slane %v1238, 7
        %v1493 = vrot.slane %v1239, 7
        %v1494 = vsel %vm1003, %v1492, %v1493
        %v1495 = vrot.slane %v1240, 7
        %v1496 = vsel %vm1003, %v1493, %v1495
        %v1497 = vrot.slane %v1241, 7
        %v1498 = vsel %vm1003, %v1495, %v1497
        %1499 = vrot.lane.b32.xlu0 %v1492, 96
        %v1500 = vpop.permute.xlu0 %1499
        %1501 = vrot.lane.b32.xlu0 %v1494, 96
        %v1502 = vpop.permute.xlu0 %1501
        %1503 = vrot.lane.b32.xlu0 %v1496, 96
        %v1504 = vpop.permute.xlu0 %1503
        %1505 = vrot.lane.b32.xlu0 %v1498, 96
        %v1506 = vpop.permute.xlu0 %1505
        %v1511 = vsel %vm413, %v1237, %v1399
        %v1512 = vsel %vm413, %v1238, %v1401
        %v1513 = vsel %vm413, %v1239, %v1403
        %v1514 = vsel %vm413, %v1240, %v1405
        %v1515 = vsel %vm1105, %v1511, %v1418
        %v1516 = vsel %vm1105, %v1512, %v1420
        %v1517 = vsel %vm1105, %v1513, %v1422
        %v1518 = vsel %vm1105, %v1514, %v1424
        %v1519 = vsel %vm1375, %v1515, %v1435
        %v1520 = vsel %vm1375, %v1516, %v1437
        %v1521 = vsel %vm1375, %v1517, %v1439
        %v1522 = vsel %vm1375, %v1518, %v1441
        %v1523 = vsel %vm413, %v1446, %v1461
        %v1524 = vsel %vm413, %v1448, %v1463
        %v1525 = vsel %vm413, %v1450, %v1465
        %v1526 = vsel %vm413, %v1449, %v1467
        %v1527 = vsel %vm1105, %v1523, %v1481
        %v1528 = vsel %vm1105, %v1524, %v1483
        %v1529 = vsel %vm1105, %v1525, %v1485
        %v1530 = vsel %vm1105, %v1526, %v1487
        %v1531 = vsel %vm1375, %v1527, %v1500
        %v1532 = vsel %vm1375, %v1528, %v1502
        %v1533 = vsel %vm1375, %v1529, %v1504
        %v1534 = vsel %vm1375, %v1530, %v1506
        %v1538 = vrot.slane %v1241, 1
        %v1539 = vrot.slane %v1242, 1
        %v1540 = vsel %vm348, %v1538, %v1539
        %v1541 = vrot.slane %v1243, 1
        %v1542 = vsel %vm348, %v1539, %v1541
        %v1543 = vrot.slane %v1244, 1
        %v1544 = vsel %vm348, %v1541, %v1543
        %1545 = vrot.lane.b32.xlu0 %v1540, 32
        %v1546 = vpop.permute.xlu0 %1545
        %1547 = vrot.lane.b32.xlu0 %v1542, 32
        %v1548 = vpop.permute.xlu0 %1547
        %1549 = vrot.lane.b32.xlu0 %v1544, 32
        %v1550 = vpop.permute.xlu0 %1549
        %v1554 = vrot.slane %v1241, 2
        %v1555 = vrot.slane %v1242, 2
        %v1556 = vsel %vm368, %v1554, %v1555
        %v1557 = vrot.slane %v1243, 2
        %v1558 = vsel %vm368, %v1555, %v1557
        %v1559 = vrot.slane %v1244, 2
        %v1560 = vsel %vm368, %v1557, %v1559
        %1561 = vrot.lane.b32.xlu0 %v1556, 64
        %v1562 = vpop.permute.xlu0 %1561
        %1563 = vrot.lane.b32.xlu0 %v1558, 64
        %v1564 = vpop.permute.xlu0 %1563
        %1565 = vrot.lane.b32.xlu0 %v1560, 64
        %v1566 = vpop.permute.xlu0 %1565
        %v1570 = vrot.slane %v1241, 3
        %v1571 = vrot.slane %v1242, 3
        %v1572 = vsel %vm388, %v1570, %v1571
        %v1573 = vrot.slane %v1243, 3
        %v1574 = vsel %vm388, %v1571, %v1573
        %v1575 = vrot.slane %v1244, 3
        %v1576 = vsel %vm388, %v1573, %v1575
        %1577 = vrot.lane.b32.xlu0 %v1572, 96
        %v1578 = vpop.permute.xlu0 %1577
        %1579 = vrot.lane.b32.xlu0 %v1574, 96
        %v1580 = vpop.permute.xlu0 %1579
        %1581 = vrot.lane.b32.xlu0 %v1576, 96
        %v1582 = vpop.permute.xlu0 %1581
        %v1586 = vrot.slane %v1241, 4
        %v1587 = vrot.slane %v1242, 4
        %v1588 = vsel %vm986, %v1586, %v1587
        %v1589 = vrot.slane %v1243, 4
        %v1590 = vsel %vm986, %v1587, %v1589
        %v1591 = vrot.slane %v1244, 4
        %v1592 = vsel %vm986, %v1589, %v1591
        %v1596 = vrot.slane %v1241, 5
        %v1597 = vrot.slane %v1242, 5
        %v1598 = vsel %vm1035, %v1596, %v1597
        %v1599 = vrot.slane %v1243, 5
        %v1600 = vsel %vm1035, %v1597, %v1599
        %v1601 = vrot.slane %v1244, 5
        %v1602 = vsel %vm1035, %v1599, %v1601
        %1603 = vrot.lane.b32.xlu0 %v1598, 32
        %v1604 = vpop.permute.xlu0 %1603
        %1605 = vrot.lane.b32.xlu0 %v1600, 32
        %v1606 = vpop.permute.xlu0 %1605
        %1607 = vrot.lane.b32.xlu0 %v1602, 32
        %v1608 = vpop.permute.xlu0 %1607
        %v1612 = vrot.slane %v1242, 6
        %v1613 = vrot.slane %v1243, 6
        %v1614 = vsel %vm954, %v1612, %v1613
        %v1615 = vrot.slane %v1244, 6
        %v1616 = vsel %vm954, %v1613, %v1615
        %1617 = vrot.lane.b32.xlu0 %v1612, 64
        %v1618 = vpop.permute.xlu0 %1617
        %1619 = vrot.lane.b32.xlu0 %v1614, 64
        %v1620 = vpop.permute.xlu0 %1619
        %1621 = vrot.lane.b32.xlu0 %v1616, 64
        %v1622 = vpop.permute.xlu0 %1621
        %v1626 = vrot.slane %v1242, 7
        %v1627 = vrot.slane %v1243, 7
        %v1628 = vsel %vm1003, %v1626, %v1627
        %v1629 = vrot.slane %v1244, 7
        %v1630 = vsel %vm1003, %v1627, %v1629
        %1631 = vrot.lane.b32.xlu0 %v1626, 96
        %v1632 = vpop.permute.xlu0 %1631
        %1633 = vrot.lane.b32.xlu0 %v1628, 96
        %v1634 = vpop.permute.xlu0 %1633
        %1635 = vrot.lane.b32.xlu0 %v1630, 96
        %v1636 = vpop.permute.xlu0 %1635
        %v1640 = vsel %vm413, %v1241, %v1546
        %v1641 = vsel %vm413, %v1242, %v1548
        %v1642 = vsel %vm413, %v1243, %v1550
        %v1643 = vsel %vm1105, %v1640, %v1562
        %v1644 = vsel %vm1105, %v1641, %v1564
        %v1645 = vsel %vm1105, %v1642, %v1566
        %v1646 = vsel %vm1375, %v1643, %v1578
        %v1647 = vsel %vm1375, %v1644, %v1580
        %v1648 = vsel %vm1375, %v1645, %v1582
        %v1649 = vsel %vm413, %v1588, %v1604
        %v1650 = vsel %vm413, %v1590, %v1606
        %v1651 = vsel %vm413, %v1592, %v1608
        %v1652 = vsel %vm1105, %v1649, %v1618
        %v1653 = vsel %vm1105, %v1650, %v1620
        %v1654 = vsel %vm1105, %v1651, %v1622
        %v1655 = vsel %vm1375, %v1652, %v1632
        %v1656 = vsel %vm1375, %v1653, %v1634
        %v1657 = vsel %vm1375, %v1654, %v1636
        %v1661 = vrot.slane %v1245, 1
        %v1662 = vrot.slane %v1246, 1
        %v1663 = vsel %vm348, %v1661, %v1662
        %v1664 = vrot.slane %v1247, 1
        %v1665 = vsel %vm348, %v1662, %v1664
        %1666 = vrot.lane.b32.xlu0 %v1661, 32
        %v1667 = vpop.permute.xlu0 %1666
        %1668 = vrot.lane.b32.xlu0 %v1663, 32
        %v1669 = vpop.permute.xlu0 %1668
        %1670 = vrot.lane.b32.xlu0 %v1665, 32
        %v1671 = vpop.permute.xlu0 %1670
        %1672 = vrot.lane.b32.xlu0 %v1664, 32
        %v1673 = vpop.permute.xlu0 %1672
        %v1678 = vrot.slane %v1245, 2
        %v1679 = vrot.slane %v1246, 2
        %v1680 = vsel %vm368, %v1678, %v1679
        %v1681 = vrot.slane %v1247, 2
        %v1682 = vsel %vm368, %v1679, %v1681
        %1683 = vrot.lane.b32.xlu0 %v1678, 64
        %v1684 = vpop.permute.xlu0 %1683
        %1685 = vrot.lane.b32.xlu0 %v1680, 64
        %v1686 = vpop.permute.xlu0 %1685
        %1687 = vrot.lane.b32.xlu0 %v1682, 64
        %v1688 = vpop.permute.xlu0 %1687
        %1689 = vrot.lane.b32.xlu0 %v1681, 64
        %v1690 = vpop.permute.xlu0 %1689
        %v1695 = vrot.slane %v1245, 3
        %v1696 = vrot.slane %v1246, 3
        %v1697 = vsel %vm388, %v1695, %v1696
        %v1698 = vrot.slane %v1247, 3
        %v1699 = vsel %vm388, %v1696, %v1698
        %1700 = vrot.lane.b32.xlu0 %v1695, 96
        %v1701 = vpop.permute.xlu0 %1700
        %1702 = vrot.lane.b32.xlu0 %v1697, 96
        %v1703 = vpop.permute.xlu0 %1702
        %1704 = vrot.lane.b32.xlu0 %v1699, 96
        %v1705 = vpop.permute.xlu0 %1704
        %1706 = vrot.lane.b32.xlu0 %v1698, 96
        %v1707 = vpop.permute.xlu0 %1706
        %v1713 = vrot.slane %v1245, 4
        %v1714 = vrot.slane %v1246, 4
        %v1715 = vsel %vm986, %v1713, %v1714
        %v1716 = vrot.slane %v1247, 4
        %v1717 = vsel %vm986, %v1714, %v1716
        %v1718 = vrot.slane %v1248, 4
        %v1719 = vsel %vm986, %v1716, %v1718
        %v1724 = vrot.slane %v1245, 5
        %v1725 = vrot.slane %v1246, 5
        %v1726 = vsel %vm1035, %v1724, %v1725
        %v1727 = vrot.slane %v1247, 5
        %v1728 = vsel %vm1035, %v1725, %v1727
        %v1729 = vrot.slane %v1248, 5
        %v1730 = vsel %vm1035, %v1727, %v1729
        %1731 = vrot.lane.b32.xlu0 %v1724, 32
        %v1732 = vpop.permute.xlu0 %1731
        %1733 = vrot.lane.b32.xlu0 %v1726, 32
        %v1734 = vpop.permute.xlu0 %1733
        %1735 = vrot.lane.b32.xlu0 %v1728, 32
        %v1736 = vpop.permute.xlu0 %1735
        %1737 = vrot.lane.b32.xlu0 %v1730, 32
        %v1738 = vpop.permute.xlu0 %1737
        %v1743 = vrot.slane %v1245, 6
        %v1744 = vrot.slane %v1246, 6
        %v1745 = vsel %vm954, %v1743, %v1744
        %v1746 = vrot.slane %v1247, 6
        %v1747 = vsel %vm954, %v1744, %v1746
        %v1748 = vrot.slane %v1248, 6
        %v1749 = vsel %vm954, %v1746, %v1748
        %1750 = vrot.lane.b32.xlu0 %v1743, 64
        %v1751 = vpop.permute.xlu0 %1750
        %1752 = vrot.lane.b32.xlu0 %v1745, 64
        %v1753 = vpop.permute.xlu0 %1752
        %1754 = vrot.lane.b32.xlu0 %v1747, 64
        %v1755 = vpop.permute.xlu0 %1754
        %1756 = vrot.lane.b32.xlu0 %v1749, 64
        %v1757 = vpop.permute.xlu0 %1756
        %v1762 = vrot.slane %v1245, 7
        %v1763 = vrot.slane %v1246, 7
        %v1764 = vsel %vm1003, %v1762, %v1763
        %v1765 = vrot.slane %v1247, 7
        %v1766 = vsel %vm1003, %v1763, %v1765
        %v1767 = vrot.slane %v1248, 7
        %v1768 = vsel %vm1003, %v1765, %v1767
        %1769 = vrot.lane.b32.xlu0 %v1762, 96
        %v1770 = vpop.permute.xlu0 %1769
        %1771 = vrot.lane.b32.xlu0 %v1764, 96
        %v1772 = vpop.permute.xlu0 %1771
        %1773 = vrot.lane.b32.xlu0 %v1766, 96
        %v1774 = vpop.permute.xlu0 %1773
        %1775 = vrot.lane.b32.xlu0 %v1768, 96
        %v1776 = vpop.permute.xlu0 %1775
        %v1781 = vsel %vm413, %v1244, %v1667
        %v1782 = vsel %vm413, %v1245, %v1669
        %v1783 = vsel %vm413, %v1246, %v1671
        %v1784 = vsel %vm413, %v1247, %v1673
        %v1785 = vsel %vm1105, %v1781, %v1684
        %v1786 = vsel %vm1105, %v1782, %v1686
        %v1787 = vsel %vm1105, %v1783, %v1688
        %v1788 = vsel %vm1105, %v1784, %v1690
        %v1789 = vsel %vm1375, %v1785, %v1701
        %v1790 = vsel %vm1375, %v1786, %v1703
        %v1791 = vsel %vm1375, %v1787, %v1705
        %v1792 = vsel %vm1375, %v1788, %v1707
        %v1793 = vsel %vm413, %v1713, %v1732
        %v1794 = vsel %vm413, %v1715, %v1734
        %v1795 = vsel %vm413, %v1717, %v1736
        %v1796 = vsel %vm413, %v1719, %v1738
        %v1797 = vsel %vm1105, %v1793, %v1751
        %v1798 = vsel %vm1105, %v1794, %v1753
        %v1799 = vsel %vm1105, %v1795, %v1755
        %v1800 = vsel %vm1105, %v1796, %v1757
        %v1801 = vsel %vm1375, %v1797, %v1770
        %v1802 = vsel %vm1375, %v1798, %v1772
        %v1803 = vsel %vm1375, %v1799, %v1774
        %v1804 = vsel %vm1375, %v1800, %v1776
        %v1808 = vrot.slane %v1248, 1
        %v1809 = vrot.slane %v1249, 1
        %v1810 = vsel %vm348, %v1808, %v1809
        %v1811 = vrot.slane %v1250, 1
        %v1812 = vsel %vm348, %v1809, %v1811
        %v1813 = vrot.slane %v1251, 1
        %v1814 = vsel %vm348, %v1811, %v1813
        %1815 = vrot.lane.b32.xlu0 %v1810, 32
        %v1816 = vpop.permute.xlu0 %1815
        %1817 = vrot.lane.b32.xlu0 %v1812, 32
        %v1818 = vpop.permute.xlu0 %1817
        %1819 = vrot.lane.b32.xlu0 %v1814, 32
        %v1820 = vpop.permute.xlu0 %1819
        %1821 = vrot.lane.b32.xlu0 %v1813, 32
        %v1822 = vpop.permute.xlu0 %1821
        %v1827 = vrot.slane %v1248, 2
        %v1828 = vrot.slane %v1249, 2
        %v1829 = vsel %vm368, %v1827, %v1828
        %v1830 = vrot.slane %v1250, 2
        %v1831 = vsel %vm368, %v1828, %v1830
        %v1832 = vrot.slane %v1251, 2
        %v1833 = vsel %vm368, %v1830, %v1832
        %1834 = vrot.lane.b32.xlu0 %v1829, 64
        %v1835 = vpop.permute.xlu0 %1834
        %1836 = vrot.lane.b32.xlu0 %v1831, 64
        %v1837 = vpop.permute.xlu0 %1836
        %1838 = vrot.lane.b32.xlu0 %v1833, 64
        %v1839 = vpop.permute.xlu0 %1838
        %1840 = vrot.lane.b32.xlu0 %v1832, 64
        %v1841 = vpop.permute.xlu0 %1840
        %v1846 = vrot.slane %v1248, 3
        %v1847 = vrot.slane %v1249, 3
        %v1848 = vsel %vm388, %v1846, %v1847
        %v1849 = vrot.slane %v1250, 3
        %v1850 = vsel %vm388, %v1847, %v1849
        %v1851 = vrot.slane %v1251, 3
        %v1852 = vsel %vm388, %v1849, %v1851
        %1853 = vrot.lane.b32.xlu0 %v1848, 96
        %v1854 = vpop.permute.xlu0 %1853
        %1855 = vrot.lane.b32.xlu0 %v1850, 96
        %v1856 = vpop.permute.xlu0 %1855
        %1857 = vrot.lane.b32.xlu0 %v1852, 96
        %v1858 = vpop.permute.xlu0 %1857
        %1859 = vrot.lane.b32.xlu0 %v1851, 96
        %v1860 = vpop.permute.xlu0 %1859
        %v1865 = vrot.slane %v1249, 4
        %v1866 = vrot.slane %v1250, 4
        %v1867 = vsel %vm986, %v1865, %v1866
        %v1868 = vrot.slane %v1251, 4
        %v1869 = vsel %vm986, %v1866, %v1868
        %v1874 = vrot.slane %v1249, 5
        %v1875 = vrot.slane %v1250, 5
        %v1876 = vsel %vm1035, %v1874, %v1875
        %v1877 = vrot.slane %v1251, 5
        %v1878 = vsel %vm1035, %v1875, %v1877
        %1879 = vrot.lane.b32.xlu0 %v1874, 32
        %v1880 = vpop.permute.xlu0 %1879
        %1881 = vrot.lane.b32.xlu0 %v1876, 32
        %v1882 = vpop.permute.xlu0 %1881
        %1883 = vrot.lane.b32.xlu0 %v1878, 32
        %v1884 = vpop.permute.xlu0 %1883
        %1885 = vrot.lane.b32.xlu0 %v1877, 32
        %v1886 = vpop.permute.xlu0 %1885
        %v1891 = vrot.slane %v1249, 6
        %v1892 = vrot.slane %v1250, 6
        %v1893 = vsel %vm954, %v1891, %v1892
        %v1894 = vrot.slane %v1251, 6
        %v1895 = vsel %vm954, %v1892, %v1894
        %1896 = vrot.lane.b32.xlu0 %v1891, 64
        %v1897 = vpop.permute.xlu0 %1896
        %1898 = vrot.lane.b32.xlu0 %v1893, 64
        %v1899 = vpop.permute.xlu0 %1898
        %1900 = vrot.lane.b32.xlu0 %v1895, 64
        %v1901 = vpop.permute.xlu0 %1900
        %1902 = vrot.lane.b32.xlu0 %v1894, 64
        %v1903 = vpop.permute.xlu0 %1902
        %v1909 = vrot.slane %v1249, 7
        %v1910 = vrot.slane %v1250, 7
        %v1911 = vsel %vm1003, %v1909, %v1910
        %v1912 = vrot.slane %v1251, 7
        %v1913 = vsel %vm1003, %v1910, %v1912
        %v1914 = vrot.slane %v1252, 7
        %v1915 = vsel %vm1003, %v1912, %v1914
        %1916 = vrot.lane.b32.xlu0 %v1909, 96
        %v1917 = vpop.permute.xlu0 %1916
        %1918 = vrot.lane.b32.xlu0 %v1911, 96
        %v1919 = vpop.permute.xlu0 %1918
        %1920 = vrot.lane.b32.xlu0 %v1913, 96
        %v1921 = vpop.permute.xlu0 %1920
        %1922 = vrot.lane.b32.xlu0 %v1915, 96
        %v1923 = vpop.permute.xlu0 %1922
        %v1928 = vsel %vm413, %v1248, %v1816
        %v1929 = vsel %vm413, %v1249, %v1818
        %v1930 = vsel %vm413, %v1250, %v1820
        %v1931 = vsel %vm413, %v1251, %v1822
        %v1932 = vsel %vm1105, %v1928, %v1835
        %v1933 = vsel %vm1105, %v1929, %v1837
        %v1934 = vsel %vm1105, %v1930, %v1839
        %v1935 = vsel %vm1105, %v1931, %v1841
        %v1936 = vsel %vm1375, %v1932, %v1854
        %v1937 = vsel %vm1375, %v1933, %v1856
        %v1938 = vsel %vm1375, %v1934, %v1858
        %v1939 = vsel %vm1375, %v1935, %v1860
        %v1940 = vsel %vm413, %v1865, %v1880
        %v1941 = vsel %vm413, %v1867, %v1882
        %v1942 = vsel %vm413, %v1869, %v1884
        %v1943 = vsel %vm413, %v1868, %v1886
        %v1944 = vsel %vm1105, %v1940, %v1897
        %v1945 = vsel %vm1105, %v1941, %v1899
        %v1946 = vsel %vm1105, %v1942, %v1901
        %v1947 = vsel %vm1105, %v1943, %v1903
        %v1948 = vsel %vm1375, %v1944, %v1917
        %v1949 = vsel %vm1375, %v1945, %v1919
        %v1950 = vsel %vm1375, %v1946, %v1921
        %v1951 = vsel %vm1375, %v1947, %v1923
        %v1954 = vrot.slane %v1252, 1
        %v1955 = vrot.slane %v1253, 1
        %v1956 = vsel %vm348, %v1954, %v1955
        %v1957 = vrot.slane %v1254, 1
        %v1958 = vsel %vm348, %v1955, %v1957
        %1959 = vrot.lane.b32.xlu0 %v1956, 32
        %v1960 = vpop.permute.xlu0 %1959
        %1961 = vrot.lane.b32.xlu0 %v1958, 32
        %v1962 = vpop.permute.xlu0 %1961
        %1963 = vrot.lane.b32.xlu0 %v1957, 32
        %v1964 = vpop.permute.xlu0 %1963
        %v1969 = vrot.slane %v1252, 2
        %v1970 = vrot.slane %v1253, 2
        %v1971 = vsel %vm368, %v1969, %v1970
        %v1972 = vrot.slane %v1254, 2
        %v1973 = vsel %vm368, %v1970, %v1972
        %v1974 = vrot.slane %v1255, 2
        %v1975 = vsel %vm368, %v1972, %v1974
        %1976 = vrot.lane.b32.xlu0 %v1971, 64
        %v1977 = vpop.permute.xlu0 %1976
        %1978 = vrot.lane.b32.xlu0 %v1973, 64
        %v1979 = vpop.permute.xlu0 %1978
        %1980 = vrot.lane.b32.xlu0 %v1975, 64
        %v1981 = vpop.permute.xlu0 %1980
        %v1985 = vrot.slane %v1252, 3
        %v1986 = vrot.slane %v1253, 3
        %v1987 = vsel %vm388, %v1985, %v1986
        %v1988 = vrot.slane %v1254, 3
        %v1989 = vsel %vm388, %v1986, %v1988
        %v1990 = vrot.slane %v1255, 3
        %v1991 = vsel %vm388, %v1988, %v1990
        %1992 = vrot.lane.b32.xlu0 %v1987, 96
        %v1993 = vpop.permute.xlu0 %1992
        %1994 = vrot.lane.b32.xlu0 %v1989, 96
        %v1995 = vpop.permute.xlu0 %1994
        %1996 = vrot.lane.b32.xlu0 %v1991, 96
        %v1997 = vpop.permute.xlu0 %1996
        %v2001 = vrot.slane %v1252, 4
        %v2002 = vrot.slane %v1253, 4
        %v2003 = vsel %vm986, %v2001, %v2002
        %v2004 = vrot.slane %v1254, 4
        %v2005 = vsel %vm986, %v2002, %v2004
        %v2006 = vrot.slane %v1255, 4
        %v2007 = vsel %vm986, %v2004, %v2006
        %v2011 = vrot.slane %v1252, 5
        %v2012 = vrot.slane %v1253, 5
        %v2013 = vsel %vm1035, %v2011, %v2012
        %v2014 = vrot.slane %v1254, 5
        %v2015 = vsel %vm1035, %v2012, %v2014
        %v2016 = vrot.slane %v1255, 5
        %v2017 = vsel %vm1035, %v2014, %v2016
        %2018 = vrot.lane.b32.xlu0 %v2013, 32
        %v2019 = vpop.permute.xlu0 %2018
        %2020 = vrot.lane.b32.xlu0 %v2015, 32
        %v2021 = vpop.permute.xlu0 %2020
        %2022 = vrot.lane.b32.xlu0 %v2017, 32
        %v2023 = vpop.permute.xlu0 %2022
        %v2027 = vrot.slane %v1252, 6
        %v2028 = vrot.slane %v1253, 6
        %v2029 = vsel %vm954, %v2027, %v2028
        %v2030 = vrot.slane %v1254, 6
        %v2031 = vsel %vm954, %v2028, %v2030
        %v2032 = vrot.slane %v1255, 6
        %v2033 = vsel %vm954, %v2030, %v2032
        %2034 = vrot.lane.b32.xlu0 %v2029, 64
        %v2035 = vpop.permute.xlu0 %2034
        %2036 = vrot.lane.b32.xlu0 %v2031, 64
        %v2037 = vpop.permute.xlu0 %2036
        %2038 = vrot.lane.b32.xlu0 %v2033, 64
        %v2039 = vpop.permute.xlu0 %2038
        %v2043 = vrot.slane %v1253, 7
        %v2044 = vrot.slane %v1254, 7
        %v2045 = vsel %vm1003, %v2043, %v2044
        %v2046 = vrot.slane %v1255, 7
        %v2047 = vsel %vm1003, %v2044, %v2046
        %2048 = vrot.lane.b32.xlu0 %v2043, 96
        %v2049 = vpop.permute.xlu0 %2048
        %2050 = vrot.lane.b32.xlu0 %v2045, 96
        %v2051 = vpop.permute.xlu0 %2050
        %2052 = vrot.lane.b32.xlu0 %v2047, 96
        %v2053 = vpop.permute.xlu0 %2052
        %v2057 = vsel %vm413, %v1252, %v1960
        %v2058 = vsel %vm413, %v1253, %v1962
        %v2059 = vsel %vm413, %v1254, %v1964
        %v2060 = vsel %vm1105, %v2057, %v1977
        %v2061 = vsel %vm1105, %v2058, %v1979
        %v2062 = vsel %vm1105, %v2059, %v1981
        %v2063 = vsel %vm1375, %v2060, %v1993
        %v2064 = vsel %vm1375, %v2061, %v1995
        %v2065 = vsel %vm1375, %v2062, %v1997
        %v2066 = vsel %vm413, %v2003, %v2019
        %v2067 = vsel %vm413, %v2005, %v2021
        %v2068 = vsel %vm413, %v2007, %v2023
        %v2069 = vsel %vm1105, %v2066, %v2035
        %v2070 = vsel %vm1105, %v2067, %v2037
        %v2071 = vsel %vm1105, %v2068, %v2039
        %v2072 = vsel %vm1375, %v2069, %v2049
        %v2073 = vsel %vm1375, %v2070, %v2051
        %v2074 = vsel %vm1375, %v2071, %v2053
        %v2078 = vrot.slane %v1255, 1
        %v2079 = vrot.slane %v1256, 1
        %v2080 = vsel %vm348, %v2078, %v2079
        %v2081 = vrot.slane %v1257, 1
        %v2082 = vsel %vm348, %v2079, %v2081
        %v2083 = vrot.slane %v1258, 1
        %v2084 = vsel %vm348, %v2081, %v2083
        %2085 = vrot.lane.b32.xlu0 %v2080, 32
        %v2086 = vpop.permute.xlu0 %2085
        %2087 = vrot.lane.b32.xlu0 %v2082, 32
        %v2088 = vpop.permute.xlu0 %2087
        %2089 = vrot.lane.b32.xlu0 %v2084, 32
        %v2090 = vpop.permute.xlu0 %2089
        %2091 = vrot.lane.b32.xlu0 %v2083, 32
        %v2092 = vpop.permute.xlu0 %2091
        %v2097 = vrot.slane %v1256, 2
        %v2098 = vrot.slane %v1257, 2
        %v2099 = vsel %vm368, %v2097, %v2098
        %v2100 = vrot.slane %v1258, 2
        %v2101 = vsel %vm368, %v2098, %v2100
        %2102 = vrot.lane.b32.xlu0 %v2097, 64
        %v2103 = vpop.permute.xlu0 %2102
        %2104 = vrot.lane.b32.xlu0 %v2099, 64
        %v2105 = vpop.permute.xlu0 %2104
        %2106 = vrot.lane.b32.xlu0 %v2101, 64
        %v2107 = vpop.permute.xlu0 %2106
        %2108 = vrot.lane.b32.xlu0 %v2100, 64
        %v2109 = vpop.permute.xlu0 %2108
        %v2114 = vrot.slane %v1256, 3
        %v2115 = vrot.slane %v1257, 3
        %v2116 = vsel %vm388, %v2114, %v2115
        %v2117 = vrot.slane %v1258, 3
        %v2118 = vsel %vm388, %v2115, %v2117
        %2119 = vrot.lane.b32.xlu0 %v2114, 96
        %v2120 = vpop.permute.xlu0 %2119
        %2121 = vrot.lane.b32.xlu0 %v2116, 96
        %v2122 = vpop.permute.xlu0 %2121
        %2123 = vrot.lane.b32.xlu0 %v2118, 96
        %v2124 = vpop.permute.xlu0 %2123
        %2125 = vrot.lane.b32.xlu0 %v2117, 96
        %v2126 = vpop.permute.xlu0 %2125
        %v2131 = vrot.slane %v1256, 4
        %v2132 = vrot.slane %v1257, 4
        %v2133 = vsel %vm986, %v2131, %v2132
        %v2134 = vrot.slane %v1258, 4
        %v2135 = vsel %vm986, %v2132, %v2134
        %v2141 = vrot.slane %v1256, 5
        %v2142 = vrot.slane %v1257, 5
        %v2143 = vsel %vm1035, %v2141, %v2142
        %v2144 = vrot.slane %v1258, 5
        %v2145 = vsel %vm1035, %v2142, %v2144
        %v2146 = vrot.slane %v1259, 5
        %v2147 = vsel %vm1035, %v2144, %v2146
        %2148 = vrot.lane.b32.xlu0 %v2141, 32
        %v2149 = vpop.permute.xlu0 %2148
        %2150 = vrot.lane.b32.xlu0 %v2143, 32
        %v2151 = vpop.permute.xlu0 %2150
        %2152 = vrot.lane.b32.xlu0 %v2145, 32
        %v2153 = vpop.permute.xlu0 %2152
        %2154 = vrot.lane.b32.xlu0 %v2147, 32
        %v2155 = vpop.permute.xlu0 %2154
        %v2160 = vrot.slane %v1256, 6
        %v2161 = vrot.slane %v1257, 6
        %v2162 = vsel %vm954, %v2160, %v2161
        %v2163 = vrot.slane %v1258, 6
        %v2164 = vsel %vm954, %v2161, %v2163
        %v2165 = vrot.slane %v1259, 6
        %v2166 = vsel %vm954, %v2163, %v2165
        %2167 = vrot.lane.b32.xlu0 %v2160, 64
        %v2168 = vpop.permute.xlu0 %2167
        %2169 = vrot.lane.b32.xlu0 %v2162, 64
        %v2170 = vpop.permute.xlu0 %2169
        %2171 = vrot.lane.b32.xlu0 %v2164, 64
        %v2172 = vpop.permute.xlu0 %2171
        %2173 = vrot.lane.b32.xlu0 %v2166, 64
        %v2174 = vpop.permute.xlu0 %2173
        %v2179 = vrot.slane %v1256, 7
        %v2180 = vrot.slane %v1257, 7
        %v2181 = vsel %vm1003, %v2179, %v2180
        %v2182 = vrot.slane %v1258, 7
        %v2183 = vsel %vm1003, %v2180, %v2182
        %v2184 = vrot.slane %v1259, 7
        %v2185 = vsel %vm1003, %v2182, %v2184
        %2186 = vrot.lane.b32.xlu0 %v2179, 96
        %v2187 = vpop.permute.xlu0 %2186
        %2188 = vrot.lane.b32.xlu0 %v2181, 96
        %v2189 = vpop.permute.xlu0 %2188
        %2190 = vrot.lane.b32.xlu0 %v2183, 96
        %v2191 = vpop.permute.xlu0 %2190
        %2192 = vrot.lane.b32.xlu0 %v2185, 96
        %v2193 = vpop.permute.xlu0 %2192
        %v2198 = vsel %vm413, %v1255, %v2086
        %v2199 = vsel %vm413, %v1256, %v2088
        %v2200 = vsel %vm413, %v1257, %v2090
        %v2201 = vsel %vm413, %v1258, %v2092
        %v2202 = vsel %vm1105, %v2198, %v2103
        %v2203 = vsel %vm1105, %v2199, %v2105
        %v2204 = vsel %vm1105, %v2200, %v2107
        %v2205 = vsel %vm1105, %v2201, %v2109
        %v2206 = vsel %vm1375, %v2202, %v2120
        %v2207 = vsel %vm1375, %v2203, %v2122
        %v2208 = vsel %vm1375, %v2204, %v2124
        %v2209 = vsel %vm1375, %v2205, %v2126
        %v2210 = vsel %vm413, %v2131, %v2149
        %v2211 = vsel %vm413, %v2133, %v2151
        %v2212 = vsel %vm413, %v2135, %v2153
        %v2213 = vsel %vm413, %v2134, %v2155
        %v2214 = vsel %vm1105, %v2210, %v2168
        %v2215 = vsel %vm1105, %v2211, %v2170
        %v2216 = vsel %vm1105, %v2212, %v2172
        %v2217 = vsel %vm1105, %v2213, %v2174
        %v2218 = vsel %vm1375, %v2214, %v2187
        %v2219 = vsel %vm1375, %v2215, %v2189
        %v2220 = vsel %vm1375, %v2216, %v2191
        %v2221 = vsel %vm1375, %v2217, %v2193
        %v2225 = vrot.slane %v1259, 1
        %v2226 = vrot.slane %v1260, 1
        %v2227 = vsel %vm348, %v2225, %v2226
        %v2228 = vrot.slane %v1261, 1
        %v2229 = vsel %vm348, %v2226, %v2228
        %v2230 = vrot.slane %v1262, 1
        %v2231 = vsel %vm348, %v2228, %v2230
        %2232 = vrot.lane.b32.xlu0 %v2227, 32
        %v2233 = vpop.permute.xlu0 %2232
        %2234 = vrot.lane.b32.xlu0 %v2229, 32
        %v2235 = vpop.permute.xlu0 %2234
        %2236 = vrot.lane.b32.xlu0 %v2231, 32
        %v2237 = vpop.permute.xlu0 %2236
        %2238 = vrot.lane.b32.xlu0 %v2230, 32
        %v2239 = vpop.permute.xlu0 %2238
        %v2244 = vrot.slane %v1259, 2
        %v2245 = vrot.slane %v1260, 2
        %v2246 = vsel %vm368, %v2244, %v2245
        %v2247 = vrot.slane %v1261, 2
        %v2248 = vsel %vm368, %v2245, %v2247
        %v2249 = vrot.slane %v1262, 2
        %v2250 = vsel %vm368, %v2247, %v2249
        %2251 = vrot.lane.b32.xlu0 %v2246, 64
        %v2252 = vpop.permute.xlu0 %2251
        %2253 = vrot.lane.b32.xlu0 %v2248, 64
        %v2254 = vpop.permute.xlu0 %2253
        %2255 = vrot.lane.b32.xlu0 %v2250, 64
        %v2256 = vpop.permute.xlu0 %2255
        %2257 = vrot.lane.b32.xlu0 %v2249, 64
        %v2258 = vpop.permute.xlu0 %2257
        %v2263 = vrot.slane %v1259, 3
        %v2264 = vrot.slane %v1260, 3
        %v2265 = vsel %vm388, %v2263, %v2264
        %v2266 = vrot.slane %v1261, 3
        %v2267 = vsel %vm388, %v2264, %v2266
        %v2268 = vrot.slane %v1262, 3
        %v2269 = vsel %vm388, %v2266, %v2268
        %2270 = vrot.lane.b32.xlu0 %v2265, 96
        %v2271 = vpop.permute.xlu0 %2270
        %2272 = vrot.lane.b32.xlu0 %v2267, 96
        %v2273 = vpop.permute.xlu0 %2272
        %2274 = vrot.lane.b32.xlu0 %v2269, 96
        %v2275 = vpop.permute.xlu0 %2274
        %2276 = vrot.lane.b32.xlu0 %v2268, 96
        %v2277 = vpop.permute.xlu0 %2276
        %v2282 = vrot.slane %v1259, 4
        %v2283 = vrot.slane %v1260, 4
        %v2284 = vsel %vm986, %v2282, %v2283
        %v2285 = vrot.slane %v1261, 4
        %v2286 = vsel %vm986, %v2283, %v2285
        %v2287 = vrot.slane %v1262, 4
        %v2288 = vsel %vm986, %v2285, %v2287
        %v2293 = vrot.slane %v1260, 5
        %v2294 = vrot.slane %v1261, 5
        %v2295 = vsel %vm1035, %v2293, %v2294
        %v2296 = vrot.slane %v1262, 5
        %v2297 = vsel %vm1035, %v2294, %v2296
        %2298 = vrot.lane.b32.xlu0 %v2293, 32
        %v2299 = vpop.permute.xlu0 %2298
        %2300 = vrot.lane.b32.xlu0 %v2295, 32
        %v2301 = vpop.permute.xlu0 %2300
        %2302 = vrot.lane.b32.xlu0 %v2297, 32
        %v2303 = vpop.permute.xlu0 %2302
        %2304 = vrot.lane.b32.xlu0 %v2296, 32
        %v2305 = vpop.permute.xlu0 %2304
        %v2310 = vrot.slane %v1260, 6
        %v2311 = vrot.slane %v1261, 6
        %v2312 = vsel %vm954, %v2310, %v2311
        %v2313 = vrot.slane %v1262, 6
        %v2314 = vsel %vm954, %v2311, %v2313
        %2315 = vrot.lane.b32.xlu0 %v2310, 64
        %v2316 = vpop.permute.xlu0 %2315
        %2317 = vrot.lane.b32.xlu0 %v2312, 64
        %v2318 = vpop.permute.xlu0 %2317
        %2319 = vrot.lane.b32.xlu0 %v2314, 64
        %v2320 = vpop.permute.xlu0 %2319
        %2321 = vrot.lane.b32.xlu0 %v2313, 64
        %v2322 = vpop.permute.xlu0 %2321
        %v2327 = vrot.slane %v1260, 7
        %v2328 = vrot.slane %v1261, 7
        %v2329 = vsel %vm1003, %v2327, %v2328
        %v2330 = vrot.slane %v1262, 7
        %v2331 = vsel %vm1003, %v2328, %v2330
        %2332 = vrot.lane.b32.xlu0 %v2327, 96
        %v2333 = vpop.permute.xlu0 %2332
        %2334 = vrot.lane.b32.xlu0 %v2329, 96
        %v2335 = vpop.permute.xlu0 %2334
        %2336 = vrot.lane.b32.xlu0 %v2331, 96
        %v2337 = vpop.permute.xlu0 %2336
        %2338 = vrot.lane.b32.xlu0 %v2330, 96
        %v2339 = vpop.permute.xlu0 %2338
        %v2344 = vsel %vm413, %v1259, %v2233
        %v2345 = vsel %vm413, %v1260, %v2235
        %v2346 = vsel %vm413, %v1261, %v2237
        %v2347 = vsel %vm413, %v1262, %v2239
        %v2348 = vsel %vm1105, %v2344, %v2252
        %v2349 = vsel %vm1105, %v2345, %v2254
        %v2350 = vsel %vm1105, %v2346, %v2256
        %v2351 = vsel %vm1105, %v2347, %v2258
        %v2352 = vsel %vm1375, %v2348, %v2271
        %v2353 = vsel %vm1375, %v2349, %v2273
        %v2354 = vsel %vm1375, %v2350, %v2275
        %v2355 = vsel %vm1375, %v2351, %v2277
        %v2356 = vsel %vm413, %v2284, %v2299
        %v2357 = vsel %vm413, %v2286, %v2301
        %v2358 = vsel %vm413, %v2288, %v2303
        %v2359 = vsel %vm413, %v2287, %v2305
        %v2360 = vsel %vm1105, %v2356, %v2316
        %v2361 = vsel %vm1105, %v2357, %v2318
        %v2362 = vsel %vm1105, %v2358, %v2320
        %v2363 = vsel %vm1105, %v2359, %v2322
        %v2364 = vsel %vm1375, %v2360, %v2333
        %v2365 = vsel %vm1375, %v2361, %v2335
        %v2366 = vsel %vm1375, %v2362, %v2337
        %v2367 = vsel %vm1375, %v2363, %v2339
        %v2376 = vrot.slane %v1519, 7
        %v2377 = vrot.slane %v1531, 7
        %v2378 = vrot.slane %v1520, 7
        %v2379 = vsel %vm1003, %v2376, %v2378
        %v2380 = vrot.slane %v1532, 7
        %v2381 = vsel %vm1003, %v2377, %v2380
        %v2382 = vrot.slane %v1521, 7
        %v2383 = vsel %vm1003, %v2378, %v2382
        %v2384 = vrot.slane %v1533, 7
        %v2385 = vsel %vm1003, %v2380, %v2384
        %v2386 = vrot.slane %v1522, 7
        %v2387 = vsel %vm1003, %v2382, %v2386
        %v2388 = vrot.slane %v1534, 7
        %v2389 = vsel %vm1003, %v2384, %v2388
        %v2404 = vrot.slane %v1646, 6
        %v2405 = vrot.slane %v1655, 6
        %v2406 = vrot.slane %v1647, 6
        %v2407 = vsel %vm954, %v2404, %v2406
        %v2408 = vrot.slane %v1656, 6
        %v2409 = vsel %vm954, %v2405, %v2408
        %v2410 = vrot.slane %v1648, 6
        %v2411 = vsel %vm954, %v2406, %v2410
        %v2412 = vrot.slane %v1657, 6
        %v2413 = vsel %vm954, %v2408, %v2412
        %v2430 = vrot.slane %v1789, 5
        %v2431 = vrot.slane %v1790, 5
        %v2432 = vsel %vm1035, %v2430, %v2431
        %v2433 = vrot.slane %v1801, 5
        %v2434 = vrot.slane %v1802, 5
        %v2435 = vsel %vm1035, %v2433, %v2434
        %v2436 = vrot.slane %v1791, 5
        %v2437 = vsel %vm1035, %v2431, %v2436
        %v2438 = vrot.slane %v1803, 5
        %v2439 = vsel %vm1035, %v2434, %v2438
        %v2440 = vrot.slane %v1792, 5
        %v2441 = vsel %vm1035, %v2436, %v2440
        %v2442 = vrot.slane %v1804, 5
        %v2443 = vsel %vm1035, %v2438, %v2442
        %v2458 = vrot.slane %v1936, 4
        %v2459 = vrot.slane %v1937, 4
        %v2460 = vsel %vm986, %v2458, %v2459
        %v2461 = vrot.slane %v1948, 4
        %v2462 = vrot.slane %v1949, 4
        %v2463 = vsel %vm986, %v2461, %v2462
        %v2464 = vrot.slane %v1938, 4
        %v2465 = vsel %vm986, %v2459, %v2464
        %v2466 = vrot.slane %v1950, 4
        %v2467 = vsel %vm986, %v2462, %v2466
        %v2468 = vrot.slane %v1939, 4
        %v2469 = vsel %vm986, %v2464, %v2468
        %v2470 = vrot.slane %v1951, 4
        %v2471 = vsel %vm986, %v2466, %v2470
        %v2484 = vrot.slane %v2063, 3
        %v2485 = vrot.slane %v2072, 3
        %v2486 = vrot.slane %v2064, 3
        %v2487 = vsel %vm388, %v2484, %v2486
        %v2488 = vrot.slane %v2073, 3
        %v2489 = vsel %vm388, %v2485, %v2488
        %v2490 = vrot.slane %v2065, 3
        %v2491 = vsel %vm388, %v2486, %v2490
        %v2492 = vrot.slane %v2074, 3
        %v2493 = vsel %vm388, %v2488, %v2492
        %v2510 = vrot.slane %v2206, 2
        %v2511 = vrot.slane %v2207, 2
        %v2512 = vsel %vm368, %v2510, %v2511
        %v2513 = vrot.slane %v2218, 2
        %v2514 = vrot.slane %v2219, 2
        %v2515 = vsel %vm368, %v2513, %v2514
        %v2516 = vrot.slane %v2208, 2
        %v2517 = vsel %vm368, %v2511, %v2516
        %v2518 = vrot.slane %v2220, 2
        %v2519 = vsel %vm368, %v2514, %v2518
        %v2520 = vrot.slane %v2209, 2
        %v2521 = vsel %vm368, %v2516, %v2520
        %v2522 = vrot.slane %v2221, 2
        %v2523 = vsel %vm368, %v2518, %v2522
        %v2540 = vrot.slane %v2352, 1
        %v2541 = vrot.slane %v2353, 1
        %v2542 = vsel %vm348, %v2540, %v2541
        %v2543 = vrot.slane %v2364, 1
        %v2544 = vrot.slane %v2365, 1
        %v2545 = vsel %vm348, %v2543, %v2544
        %v2546 = vrot.slane %v2354, 1
        %v2547 = vsel %vm348, %v2541, %v2546
        %v2548 = vrot.slane %v2366, 1
        %v2549 = vsel %vm348, %v2544, %v2548
        %v2550 = vrot.slane %v2355, 1
        %v2551 = vsel %vm348, %v2546, %v2550
        %v2552 = vrot.slane %v2367, 1
        %v2553 = vsel %vm348, %v2548, %v2552
        %v2560 = vsel %vm368, %v1378, %v2376
        %v2561 = vsel %vm368, %v1387, %v2377
        %v2562 = vsel %vm986, %v2387, %v2404
        %v2563 = vsel %vm986, %v2389, %v2405
        %v2564 = vsel %vm954, %v2410, %v2432
        %v2565 = vsel %vm954, %v2412, %v2435
        %v2566 = vsel %vm368, %v2469, %v2484
        %v2567 = vsel %vm368, %v2471, %v2485
        %v2568 = vsel %vm986, %v2490, %v2512
        %v2569 = vsel %vm986, %v2492, %v2515
        %v2570 = vsel %vm954, %v2520, %v2542
        %v2571 = vsel %vm954, %v2522, %v2545
        %v2572 = vpack.c.bf16 %v1377, %v1376
        %v2573 = vpack.c.bf16 %v1386, %v1385
        %v2574 = vpack.c.bf16 %v2379, %v2560
        %v2575 = vpack.c.bf16 %v2381, %v2561
        %v2576 = vpack.c.bf16 %v2562, %v2383
        %v2577 = vpack.c.bf16 %v2563, %v2385
        %v2578 = vpack.c.bf16 %v2411, %v2407
        %v2579 = vpack.c.bf16 %v2413, %v2409
        %v2580 = vpack.c.bf16 %v2437, %v2564
        %v2581 = vpack.c.bf16 %v2439, %v2565
        %v2582 = vpack.c.bf16 %v2460, %v2441
        %v2583 = vpack.c.bf16 %v2463, %v2443
        %v2584 = vpack.c.bf16 %v2566, %v2465
        %v2585 = vpack.c.bf16 %v2567, %v2467
        %v2586 = vpack.c.bf16 %v2491, %v2487
        %v2587 = vpack.c.bf16 %v2493, %v2489
        %v2588 = vpack.c.bf16 %v2517, %v2568
        %v2589 = vpack.c.bf16 %v2519, %v2569
        %v2590 = vpack.c.bf16 %v2570, %v2521
        %v2591 = vpack.c.bf16 %v2571, %v2523
        %v2592 = vpack.c.bf16 %v2551, %v2547
        %v2593 = vpack.c.bf16 %v2553, %v2549
        %v2594 = vld [vmem:[%s3] sm:$0xf]
        %v2595 = vld [vmem:[%s3 + $0x4] sm:$0xf]
        %v2596 = vld [vmem:[%s3 + $0x8] sm:$0xf]
        %v2597 = vld [vmem:[%s3 + $0xc] sm:$0xf]
        %v2598 = vld [vmem:[%s3 + $0x10] sm:$0xf]
        %v2599 = vld [vmem:[%s3 + $0x14] sm:$0xf]
        %v2600 = vld [vmem:[%s3 + $0x18] sm:$0xf]
        %v2601 = vld [vmem:[%s3 + $0x1c] sm:$0xf]
        %v2602 = vld [vmem:[%s3 + $0x20] sm:$0xf]
        %v2603 = vld [vmem:[%s3 + $0x24] sm:$0xf]
        %v2604 = vld [vmem:[%s3 + $0x28] sm:$0xf]
        %v2605 = vld [vmem:[%s3 + $0x2c] sm:$0xf]
        %v2606 = vld [vmem:[%s3 + $0x30] sm:$0xf]
        %v2607 = vld [vmem:[%s3 + $0x34] sm:$0xf]
        %v2608 = vld [vmem:[%s3 + $0x38] sm:$0xf]
        %v2609 = vld [vmem:[%s3 + $0x3c] sm:$0xf]
        %v2610 = vld [vmem:[%s3 + $0x40] sm:$0xf]
        %v2611 = vld [vmem:[%s3 + $0x44] sm:$0xf]
        %v2612 = vld [vmem:[%s3 + $0x48] sm:$0xf]
        %v2613 = vld [vmem:[%s3 + $0x4c] sm:$0xf]
        %v2614 = vld [vmem:[%s3 + $0x50] sm:$0xf]
        %v2615 = vld [vmem:[%s3 + $0x54] sm:$0xf]
        %v2616 = vld [vmem:[%s3 + $0x58] sm:$0xf]
        %v2617 = vld [vmem:[%s3 + $0x5c] sm:$0xf]
        %v2618 = vld [vmem:[%s3 + $0x60] sm:$0xf]
        %v2619 = vld [vmem:[%s3 + $0x64] sm:$0xf]
        %v2620 = vld [vmem:[%s3 + $0x68] sm:$0xf]
        %v2621 = vld [vmem:[%s3 + $0x6c] sm:$0xf]
        %v2622 = vld [vmem:[%s3 + $0x70] sm:$0xf]
        %v2623 = vld [vmem:[%s3 + $0x74] sm:$0xf]
        %v2624 = vld [vmem:[%s3 + $0x78] sm:$0xf]
        %v2625 = vld [vmem:[%s3 + $0x7c] sm:$0xf]
        %v2626 = vld [vmem:[%s4] sm:$0x1]
        %v2628 = vperm.slane %v2626, 0
        %v2662 = vunpack.c.l.b16 %v2594
        %v2663 = vunpack.c.l.b16 %v2595
        %v2664 = vunpack.c.l.b16 %v2596
        %v2665 = vunpack.c.l.b16 %v2597
        %v2666 = vunpack.c.l.b16 %v2598
        %v2667 = vunpack.c.l.b16 %v2599
        %v2668 = vunpack.c.l.b16 %v2600
        %v2669 = vunpack.c.l.b16 %v2601
        %v2670 = vunpack.c.l.b16 %v2602
        %v2671 = vunpack.c.l.b16 %v2603
        %v2672 = vunpack.c.l.b16 %v2604
        %v2673 = vunpack.c.l.b16 %v2605
        %v2674 = vunpack.c.l.b16 %v2606
        %v2675 = vunpack.c.l.b16 %v2607
        %v2676 = vunpack.c.l.b16 %v2608
        %v2677 = vunpack.c.l.b16 %v2609
        %v2678 = vunpack.c.l.b16 %v2610
        %v2679 = vunpack.c.l.b16 %v2611
        %v2680 = vunpack.c.l.b16 %v2612
        %v2681 = vunpack.c.l.b16 %v2613
        %v2682 = vunpack.c.l.b16 %v2614
        %v2683 = vunpack.c.l.b16 %v2615
        %v2684 = vunpack.c.l.b16 %v2616
        %v2685 = vunpack.c.l.b16 %v2617
        %v2686 = vunpack.c.l.b16 %v2618
        %v2687 = vunpack.c.l.b16 %v2619
        %v2688 = vunpack.c.l.b16 %v2620
        %v2689 = vunpack.c.l.b16 %v2621
        %v2690 = vunpack.c.l.b16 %v2622
        %v2691 = vunpack.c.l.b16 %v2623
        %v2692 = vunpack.c.l.b16 %v2624
        %v2693 = vunpack.c.l.b16 %v2625
        %v2694 = vpack.c.b16 %v2663, %v2662
        %v2695 = vpack.c.b16 %v2665, %v2664
        %v2696 = vpack.c.b16 %v2667, %v2666
        %v2697 = vpack.c.b16 %v2669, %v2668
        %v2698 = vpack.c.b16 %v2671, %v2670
        %v2699 = vpack.c.b16 %v2673, %v2672
        %v2700 = vpack.c.b16 %v2675, %v2674
        %v2701 = vpack.c.b16 %v2677, %v2676
        %v2702 = vpack.c.b16 %v2679, %v2678
        %v2703 = vpack.c.b16 %v2681, %v2680
        %v2704 = vpack.c.b16 %v2683, %v2682
        %v2705 = vpack.c.b16 %v2685, %v2684
        %v2706 = vpack.c.b16 %v2687, %v2686
        %v2707 = vpack.c.b16 %v2689, %v2688
        %v2708 = vpack.c.b16 %v2691, %v2690
        %v2709 = vpack.c.b16 %v2693, %v2692
        %2726 = vmatpush.bf16.msra.mxu0 %v2701
        %2727 = vmatpush.bf16.msra.mxu0 %v2700
        %2728 = vmatpush.bf16.msra.mxu0 %v2699
        %2729 = vmatpush.bf16.msra.mxu0 %v2698
        %2730 = vmatpush.bf16.msra.mxu0 %v2697
        %2731 = vmatpush.bf16.msra.mxu0 %v2696
        %2732 = vmatpush.bf16.msra.mxu0 %v2695
        %2733 = vmatpush.bf16.msra.mxu0 %v2694
        %2734 = vmatmul.bf16.gmra.mxu0 %v2572
        %v2735 = vpop.f32.mrf.mxu0
        %v2736 = vadd.f32 %v2628, %v2735
        %v2737 = vpop.f32.mrf.mxu0
        %v2738 = vadd.f32 %v2628, %v2737
        %2739 = vmatmul.bf16.gmra.mxu0 %v2574
        %v2740 = vpop.f32.mrf.mxu0
        %v2741 = vadd.f32 %v2628, %v2740
        %v2742 = vpop.f32.mrf.mxu0
        %v2743 = vadd.f32 %v2628, %v2742
        %2744 = vmatmul.bf16.gmra.mxu0 %v2576
        %v2745 = vpop.f32.mrf.mxu0
        %v2746 = vadd.f32 %v2628, %v2745
        %v2747 = vpop.f32.mrf.mxu0
        %v2748 = vadd.f32 %v2628, %v2747
        %2749 = vmatmul.bf16.gmra.mxu0 %v2578
        %v2750 = vpop.f32.mrf.mxu0
        %v2751 = vadd.f32 %v2628, %v2750
        %v2752 = vpop.f32.mrf.mxu0
        %v2753 = vadd.f32 %v2628, %v2752
        %2754 = vmatmul.bf16.gmra.mxu0 %v2580
        %v2755 = vpop.f32.mrf.mxu0
        %v2756 = vadd.f32 %v2628, %v2755
        %v2757 = vpop.f32.mrf.mxu0
        %v2758 = vadd.f32 %v2628, %v2757
        %2759 = vmatmul.bf16.gmra.mxu0 %v2582
        %v2760 = vpop.f32.mrf.mxu0
        %v2761 = vadd.f32 %v2628, %v2760
        %v2762 = vpop.f32.mrf.mxu0
        %v2763 = vadd.f32 %v2628, %v2762
        %2764 = vmatmul.bf16.gmra.mxu0 %v2584
        %v2765 = vpop.f32.mrf.mxu0
        %v2766 = vadd.f32 %v2628, %v2765
        %v2767 = vpop.f32.mrf.mxu0
        %v2768 = vadd.f32 %v2628, %v2767
        %2769 = vmatmul.bf16.gmra.mxu0 %v2586
        %v2770 = vpop.f32.mrf.mxu0
        %v2771 = vadd.f32 %v2628, %v2770
        %v2772 = vpop.f32.mrf.mxu0
        %v2773 = vadd.f32 %v2628, %v2772
        %2774 = vmatmul.bf16.gmra.mxu0 %v2588
        %v2775 = vpop.f32.mrf.mxu0
        %v2776 = vadd.f32 %v2628, %v2775
        %v2777 = vpop.f32.mrf.mxu0
        %v2778 = vadd.f32 %v2628, %v2777
        %2779 = vmatmul.bf16.gmra.mxu0 %v2590
        %v2780 = vpop.f32.mrf.mxu0
        %v2781 = vadd.f32 %v2628, %v2780
        %v2782 = vpop.f32.mrf.mxu0
        %v2783 = vadd.f32 %v2628, %v2782
        %2784 = vmatmul.bf16.gmra.mxu0 %v2592
        %v2785 = vpop.f32.mrf.mxu0
        %v2786 = vadd.f32 %v2628, %v2785
        %v2787 = vpop.f32.mrf.mxu0
        %v2788 = vadd.f32 %v2628, %v2787
        %2789 = vdwg.mxu0
        %2790 = vmatpush.bf16.msra.mxu0 %v2709
        %2791 = vmatpush.bf16.msra.mxu0 %v2708
        %2792 = vmatpush.bf16.msra.mxu0 %v2707
        %2793 = vmatpush.bf16.msra.mxu0 %v2706
        %2794 = vmatpush.bf16.msra.mxu0 %v2705
        %2795 = vmatpush.bf16.msra.mxu0 %v2704
        %2796 = vmatpush.bf16.msra.mxu0 %v2703
        %2797 = vmatpush.bf16.msra.mxu0 %v2702
        %2798 = vmatmul.bf16.gmra.mxu0 %v2573
        %v2799 = vpop.f32.mrf.mxu0
        %v2800 = vadd.f32 %v2736, %v2799
        %v2801 = vpop.f32.mrf.mxu0
        %v2802 = vadd.f32 %v2738, %v2801
        %2803 = vmatmul.bf16.gmra.mxu0 %v2575
        %v2804 = vpop.f32.mrf.mxu0
        %v2805 = vadd.f32 %v2741, %v2804
        %v2806 = vpop.f32.mrf.mxu0
        %v2807 = vadd.f32 %v2743, %v2806
        %2808 = vmatmul.bf16.gmra.mxu0 %v2577
        %v2809 = vpop.f32.mrf.mxu0
        %v2810 = vadd.f32 %v2746, %v2809
        %v2811 = vpop.f32.mrf.mxu0
        %v2812 = vadd.f32 %v2748, %v2811
        %2813 = vmatmul.bf16.gmra.mxu0 %v2579
        %v2814 = vpop.f32.mrf.mxu0
        %v2815 = vadd.f32 %v2751, %v2814
        %v2816 = vpop.f32.mrf.mxu0
        %v2817 = vadd.f32 %v2753, %v2816
        %2818 = vmatmul.bf16.gmra.mxu0 %v2581
        %v2819 = vpop.f32.mrf.mxu0
        %v2820 = vadd.f32 %v2756, %v2819
        %v2821 = vpop.f32.mrf.mxu0
        %v2822 = vadd.f32 %v2758, %v2821
        %2823 = vmatmul.bf16.gmra.mxu0 %v2583
        %v2824 = vpop.f32.mrf.mxu0
        %v2825 = vadd.f32 %v2761, %v2824
        %v2826 = vpop.f32.mrf.mxu0
        %v2827 = vadd.f32 %v2763, %v2826
        %2828 = vmatmul.bf16.gmra.mxu0 %v2585
        %v2829 = vpop.f32.mrf.mxu0
        %v2830 = vadd.f32 %v2766, %v2829
        %v2831 = vpop.f32.mrf.mxu0
        %v2832 = vadd.f32 %v2768, %v2831
        %2833 = vmatmul.bf16.gmra.mxu0 %v2587
        %v2834 = vpop.f32.mrf.mxu0
        %v2835 = vadd.f32 %v2771, %v2834
        %v2836 = vpop.f32.mrf.mxu0
        %v2837 = vadd.f32 %v2773, %v2836
        %2838 = vmatmul.bf16.gmra.mxu0 %v2589
        %v2839 = vpop.f32.mrf.mxu0
        %v2840 = vadd.f32 %v2776, %v2839
        %v2841 = vpop.f32.mrf.mxu0
        %v2842 = vadd.f32 %v2778, %v2841
        %2843 = vmatmul.bf16.gmra.mxu0 %v2591
        %v2844 = vpop.f32.mrf.mxu0
        %v2845 = vadd.f32 %v2781, %v2844
        %v2846 = vpop.f32.mrf.mxu0
        %v2847 = vadd.f32 %v2783, %v2846
        %2848 = vmatmul.bf16.gmra.mxu0 %v2593
        %v2849 = vpop.f32.mrf.mxu0
        %v2850 = vadd.f32 %v2786, %v2849
        %v2851 = vpop.f32.mrf.mxu0
        %v2852 = vadd.f32 %v2788, %v2851
        %2853 = vdwg.mxu0
        %v2854 = vmax.f32 %v2800, 0.0
        %v2855 = vmax.f32 %v2802, 0.0
        %v2856 = vmax.f32 %v2805, 0.0
        %v2857 = vmax.f32 %v2807, 0.0
        %v2858 = vmax.f32 %v2810, 0.0
        %v2859 = vmax.f32 %v2812, 0.0
        %v2860 = vmax.f32 %v2815, 0.0
        %v2861 = vmax.f32 %v2817, 0.0
        %v2862 = vmax.f32 %v2820, 0.0
        %v2863 = vmax.f32 %v2822, 0.0
        %v2864 = vmax.f32 %v2825, 0.0
        %v2865 = vmax.f32 %v2827, 0.0
        %v2866 = vmax.f32 %v2830, 0.0
        %v2867 = vmax.f32 %v2832, 0.0
        %v2868 = vmax.f32 %v2835, 0.0
        %v2869 = vmax.f32 %v2837, 0.0
        %v2870 = vmax.f32 %v2840, 0.0
        %v2871 = vmax.f32 %v2842, 0.0
        %v2872 = vmax.f32 %v2845, 0.0
        %v2873 = vmax.f32 %v2847, 0.0
        %v2874 = vmax.f32 %v2850, 0.0
        %v2875 = vmax.f32 %v2852, 0.0
        %v2878 = vrot.slane %v2854, 1
        %v2879 = vrot.slane %v2855, 1
        %v2880 = vsel %vm348, %v2878, %v2879
        %2881 = vrot.lane.b32.xlu0 %v2880, 64
        %v2882 = vpop.permute.xlu0 %2881
        %2883 = vrot.lane.b32.xlu0 %v2879, 64
        %v2884 = vpop.permute.xlu0 %2883
        %v2887 = vrot.slane %v2854, 2
        %v2888 = vrot.slane %v2855, 2
        %v2889 = vsel %vm368, %v2887, %v2888
        %v2892 = vrot.slane %v2854, 3
        %v2893 = vrot.slane %v2855, 3
        %v2894 = vsel %vm388, %v2892, %v2893
        %2895 = vrot.lane.b32.xlu0 %v2894, 64
        %v2896 = vpop.permute.xlu0 %2895
        %2897 = vrot.lane.b32.xlu0 %v2893, 64
        %v2898 = vpop.permute.xlu0 %2897
        %v2901 = vrot.slane %v2854, 4
        %v2902 = vrot.slane %v2855, 4
        %v2903 = vsel %vm986, %v2901, %v2902
        %v2906 = vrot.slane %v2854, 5
        %v2907 = vrot.slane %v2855, 5
        %v2908 = vsel %vm1035, %v2906, %v2907
        %2909 = vrot.lane.b32.xlu0 %v2908, 64
        %v2910 = vpop.permute.xlu0 %2909
        %2911 = vrot.lane.b32.xlu0 %v2907, 64
        %v2912 = vpop.permute.xlu0 %2911
        %v2916 = vrot.slane %v2854, 6
        %v2917 = vrot.slane %v2855, 6
        %v2918 = vsel %vm954, %v2916, %v2917
        %v2919 = vrot.slane %v2856, 6
        %v2920 = vsel %vm954, %v2917, %v2919
        %v2923 = vrot.slane %v2854, 7
        %v2924 = vrot.slane %v2855, 7
        %v2925 = vsel %vm1003, %v2923, %v2924
        %v2926 = vrot.slane %v2856, 7
        %v2927 = vsel %vm1003, %v2924, %v2926
        %2928 = vrot.lane.b32.xlu0 %v2925, 64
        %v2929 = vpop.permute.xlu0 %2928
        %2930 = vrot.lane.b32.xlu0 %v2927, 64
        %v2931 = vpop.permute.xlu0 %2930
        %v2934 = vrot.slane %v2856, 1
        %v2935 = vsel %vm348, %v2879, %v2934
        %2936 = vrot.lane.b32.xlu0 %v2935, 64
        %v2937 = vpop.permute.xlu0 %2936
        %2938 = vrot.lane.b32.xlu0 %v2934, 64
        %v2939 = vpop.permute.xlu0 %2938
        %v2942 = vrot.slane %v2856, 2
        %v2943 = vsel %vm368, %v2888, %v2942
        %v2946 = vrot.slane %v2856, 3
        %v2947 = vsel %vm388, %v2893, %v2946
        %2948 = vrot.lane.b32.xlu0 %v2947, 64
        %v2949 = vpop.permute.xlu0 %2948
        %2950 = vrot.lane.b32.xlu0 %v2946, 64
        %v2951 = vpop.permute.xlu0 %2950
        %v2954 = vsel %vm1105, %v2854, %v2882
        %v2955 = vsel %vm1105, %v2855, %v2884
        %v2956 = vsel %vm1105, %v2889, %v2896
        %v2957 = vsel %vm1105, %v2888, %v2898
        %v2958 = vsel %vm1105, %v2903, %v2910
        %v2959 = vsel %vm1105, %v2902, %v2912
        %v2960 = vsel %vm1105, %v2918, %v2929
        %v2961 = vsel %vm1105, %v2920, %v2931
        %v2962 = vsel %vm1105, %v2855, %v2937
        %v2963 = vsel %vm1105, %v2856, %v2939
        %v2964 = vsel %vm1105, %v2943, %v2949
        %v2965 = vsel %vm1105, %v2942, %v2951
        %v2968 = vrot.slane %v2857, 1
        %v2969 = vsel %vm348, %v2934, %v2968
        %v2970 = vrot.slane %v2858, 1
        %v2971 = vsel %vm348, %v2968, %v2970
        %2972 = vrot.lane.b32.xlu0 %v2969, 64
        %v2973 = vpop.permute.xlu0 %2972
        %2974 = vrot.lane.b32.xlu0 %v2971, 64
        %v2975 = vpop.permute.xlu0 %2974
        %2976 = vrot.lane.b32.xlu0 %v2970, 64
        %v2977 = vpop.permute.xlu0 %2976
        %v2981 = vrot.slane %v2857, 2
        %v2982 = vrot.slane %v2858, 2
        %v2983 = vsel %vm368, %v2981, %v2982
        %v2987 = vrot.slane %v2857, 3
        %v2988 = vrot.slane %v2858, 3
        %v2989 = vsel %vm388, %v2987, %v2988
        %2990 = vrot.lane.b32.xlu0 %v2987, 64
        %v2991 = vpop.permute.xlu0 %2990
        %2992 = vrot.lane.b32.xlu0 %v2989, 64
        %v2993 = vpop.permute.xlu0 %2992
        %2994 = vrot.lane.b32.xlu0 %v2988, 64
        %v2995 = vpop.permute.xlu0 %2994
        %v2999 = vrot.slane %v2857, 4
        %v3000 = vrot.slane %v2858, 4
        %v3001 = vsel %vm986, %v2999, %v3000
        %v3005 = vrot.slane %v2857, 5
        %v3006 = vrot.slane %v2858, 5
        %v3007 = vsel %vm1035, %v3005, %v3006
        %3008 = vrot.lane.b32.xlu0 %v3005, 64
        %v3009 = vpop.permute.xlu0 %3008
        %3010 = vrot.lane.b32.xlu0 %v3007, 64
        %v3011 = vpop.permute.xlu0 %3010
        %3012 = vrot.lane.b32.xlu0 %v3006, 64
        %v3013 = vpop.permute.xlu0 %3012
        %v3017 = vrot.slane %v2857, 6
        %v3018 = vrot.slane %v2858, 6
        %v3019 = vsel %vm954, %v3017, %v3018
        %v3023 = vrot.slane %v2857, 7
        %v3024 = vrot.slane %v2858, 7
        %v3025 = vsel %vm1003, %v3023, %v3024
        %3026 = vrot.lane.b32.xlu0 %v3023, 64
        %v3027 = vpop.permute.xlu0 %3026
        %3028 = vrot.lane.b32.xlu0 %v3025, 64
        %v3029 = vpop.permute.xlu0 %3028
        %3030 = vrot.lane.b32.xlu0 %v3024, 64
        %v3031 = vpop.permute.xlu0 %3030
        %v3036 = vrot.slane %v2859, 1
        %v3037 = vsel %vm348, %v2970, %v3036
        %3038 = vrot.lane.b32.xlu0 %v3037, 64
        %v3039 = vpop.permute.xlu0 %3038
        %3040 = vrot.lane.b32.xlu0 %v3036, 64
        %v3041 = vpop.permute.xlu0 %3040
        %v3044 = vrot.slane %v2859, 2
        %v3045 = vsel %vm368, %v2982, %v3044
        %v3048 = vrot.slane %v2859, 3
        %v3049 = vsel %vm388, %v2988, %v3048
        %3050 = vrot.lane.b32.xlu0 %v3049, 64
        %v3051 = vpop.permute.xlu0 %3050
        %3052 = vrot.lane.b32.xlu0 %v3048, 64
        %v3053 = vpop.permute.xlu0 %3052
        %v3056 = vsel %vm1105, %v2856, %v2973
        %v3057 = vsel %vm1105, %v2857, %v2975
        %v3058 = vsel %vm1105, %v2858, %v2977
        %v3059 = vsel %vm1105, %v2981, %v2991
        %v3060 = vsel %vm1105, %v2983, %v2993
        %v3061 = vsel %vm1105, %v2982, %v2995
        %v3062 = vsel %vm1105, %v2999, %v3009
        %v3063 = vsel %vm1105, %v3001, %v3011
        %v3064 = vsel %vm1105, %v3000, %v3013
        %v3065 = vsel %vm1105, %v3017, %v3027
        %v3066 = vsel %vm1105, %v3019, %v3029
        %v3067 = vsel %vm1105, %v3018, %v3031
        %v3068 = vsel %vm1105, %v2858, %v3039
        %v3069 = vsel %vm1105, %v2859, %v3041
        %v3070 = vsel %vm1105, %v3045, %v3051
        %v3071 = vsel %vm1105, %v3044, %v3053
        %v3073 = vrot.slane %v2860, 1
        %v3074 = vsel %vm348, %v3036, %v3073
        %3075 = vrot.lane.b32.xlu0 %v3074, 64
        %v3076 = vpop.permute.xlu0 %3075
        %3077 = vrot.lane.b32.xlu0 %v3073, 64
        %v3078 = vpop.permute.xlu0 %3077
        %v3082 = vrot.slane %v2860, 2
        %v3083 = vsel %vm368, %v3044, %v3082
        %v3084 = vrot.slane %v2861, 2
        %v3085 = vsel %vm368, %v3082, %v3084
        %v3088 = vrot.slane %v2860, 3
        %v3089 = vsel %vm388, %v3048, %v3088
        %v3090 = vrot.slane %v2861, 3
        %v3091 = vsel %vm388, %v3088, %v3090
        %3092 = vrot.lane.b32.xlu0 %v3089, 64
        %v3093 = vpop.permute.xlu0 %3092
        %3094 = vrot.lane.b32.xlu0 %v3091, 64
        %v3095 = vpop.permute.xlu0 %3094
        %v3098 = vrot.slane %v2860, 4
        %v3099 = vrot.slane %v2861, 4
        %v3100 = vsel %vm986, %v3098, %v3099
        %v3103 = vrot.slane %v2860, 5
        %v3104 = vrot.slane %v2861, 5
        %v3105 = vsel %vm1035, %v3103, %v3104
        %3106 = vrot.lane.b32.xlu0 %v3103, 64
        %v3107 = vpop.permute.xlu0 %3106
        %3108 = vrot.lane.b32.xlu0 %v3105, 64
        %v3109 = vpop.permute.xlu0 %3108
        %v3112 = vrot.slane %v2860, 6
        %v3113 = vrot.slane %v2861, 6
        %v3114 = vsel %vm954, %v3112, %v3113
        %v3117 = vrot.slane %v2860, 7
        %v3118 = vrot.slane %v2861, 7
        %v3119 = vsel %vm1003, %v3117, %v3118
        %3120 = vrot.lane.b32.xlu0 %v3117, 64
        %v3121 = vpop.permute.xlu0 %3120
        %3122 = vrot.lane.b32.xlu0 %v3119, 64
        %v3123 = vpop.permute.xlu0 %3122
        %v3126 = vrot.slane %v2861, 1
        %v3127 = vsel %vm348, %v3073, %v3126
        %3128 = vrot.lane.b32.xlu0 %v3127, 64
        %v3129 = vpop.permute.xlu0 %3128
        %3130 = vrot.lane.b32.xlu0 %v3126, 64
        %v3131 = vpop.permute.xlu0 %3130
        %v3135 = vrot.slane %v2862, 2
        %v3136 = vsel %vm368, %v3084, %v3135
        %v3138 = vrot.slane %v2862, 3
        %v3139 = vsel %vm388, %v3090, %v3138
        %3140 = vrot.lane.b32.xlu0 %v3139, 64
        %v3141 = vpop.permute.xlu0 %3140
        %v3143 = vsel %vm1105, %v2859, %v3076
        %v3144 = vsel %vm1105, %v2860, %v3078
        %v3145 = vsel %vm1105, %v3083, %v3093
        %v3146 = vsel %vm1105, %v3085, %v3095
        %v3147 = vsel %vm1105, %v3098, %v3107
        %v3148 = vsel %vm1105, %v3100, %v3109
        %v3149 = vsel %vm1105, %v3112, %v3121
        %v3150 = vsel %vm1105, %v3114, %v3123
        %v3151 = vsel %vm1105, %v2860, %v3129
        %v3152 = vsel %vm1105, %v2861, %v3131
        %v3153 = vsel %vm1105, %v3136, %v3141
        %v3155 = vrot.slane %v2862, 1
        %v3156 = vrot.slane %v2863, 1
        %v3157 = vsel %vm348, %v3155, %v3156
        %3158 = vrot.lane.b32.xlu0 %v3157, 64
        %v3159 = vpop.permute.xlu0 %3158
        %3160 = vrot.lane.b32.xlu0 %v3156, 64
        %v3161 = vpop.permute.xlu0 %3160
        %v3164 = vrot.slane %v2863, 2
        %v3165 = vsel %vm368, %v3135, %v3164
        %v3168 = vrot.slane %v2863, 3
        %v3169 = vsel %vm388, %v3138, %v3168
        %3170 = vrot.lane.b32.xlu0 %v3169, 64
        %v3171 = vpop.permute.xlu0 %3170
        %3172 = vrot.lane.b32.xlu0 %v3168, 64
        %v3173 = vpop.permute.xlu0 %3172
        %v3177 = vrot.slane %v2862, 4
        %v3178 = vrot.slane %v2863, 4
        %v3179 = vsel %vm986, %v3177, %v3178
        %v3180 = vrot.slane %v2864, 4
        %v3181 = vsel %vm986, %v3178, %v3180
        %v3184 = vrot.slane %v2862, 5
        %v3185 = vrot.slane %v2863, 5
        %v3186 = vsel %vm1035, %v3184, %v3185
        %v3187 = vrot.slane %v2864, 5
        %v3188 = vsel %vm1035, %v3185, %v3187
        %3189 = vrot.lane.b32.xlu0 %v3186, 64
        %v3190 = vpop.permute.xlu0 %3189
        %3191 = vrot.lane.b32.xlu0 %v3188, 64
        %v3192 = vpop.permute.xlu0 %3191
        %v3195 = vrot.slane %v2863, 6
        %v3196 = vrot.slane %v2864, 6
        %v3197 = vsel %vm954, %v3195, %v3196
        %v3200 = vrot.slane %v2863, 7
        %v3201 = vrot.slane %v2864, 7
        %v3202 = vsel %vm1003, %v3200, %v3201
        %3203 = vrot.lane.b32.xlu0 %v3200, 64
        %v3204 = vpop.permute.xlu0 %3203
        %3205 = vrot.lane.b32.xlu0 %v3202, 64
        %v3206 = vpop.permute.xlu0 %3205
        %v3209 = vrot.slane %v2864, 1
        %v3210 = vsel %vm348, %v3156, %v3209
        %3211 = vrot.lane.b32.xlu0 %v3210, 64
        %v3212 = vpop.permute.xlu0 %3211
        %3213 = vrot.lane.b32.xlu0 %v3209, 64
        %v3214 = vpop.permute.xlu0 %3213
        %v3217 = vrot.slane %v2864, 2
        %v3218 = vsel %vm368, %v3164, %v3217
        %v3221 = vrot.slane %v2864, 3
        %v3222 = vsel %vm388, %v3168, %v3221
        %3223 = vrot.lane.b32.xlu0 %v3222, 64
        %v3224 = vpop.permute.xlu0 %3223
        %3225 = vrot.lane.b32.xlu0 %v3221, 64
        %v3226 = vpop.permute.xlu0 %3225
        %v3229 = vsel %vm1105, %v2862, %v3159
        %v3230 = vsel %vm1105, %v2863, %v3161
        %v3231 = vsel %vm1105, %v3165, %v3171
        %v3232 = vsel %vm1105, %v3164, %v3173
        %v3233 = vsel %vm1105, %v3179, %v3190
        %v3234 = vsel %vm1105, %v3181, %v3192
        %v3235 = vsel %vm1105, %v3195, %v3204
        %v3236 = vsel %vm1105, %v3197, %v3206
        %v3237 = vsel %vm1105, %v2863, %v3212
        %v3238 = vsel %vm1105, %v2864, %v3214
        %v3239 = vsel %vm1105, %v3218, %v3224
        %v3240 = vsel %vm1105, %v3217, %v3226
        %v3243 = vrot.slane %v2865, 1
        %v3244 = vrot.slane %v2866, 1
        %v3245 = vsel %vm348, %v3243, %v3244
        %3246 = vrot.lane.b32.xlu0 %v3245, 64
        %v3247 = vpop.permute.xlu0 %3246
        %3248 = vrot.lane.b32.xlu0 %v3244, 64
        %v3249 = vpop.permute.xlu0 %3248
        %v3252 = vrot.slane %v2865, 2
        %v3253 = vrot.slane %v2866, 2
        %v3254 = vsel %vm368, %v3252, %v3253
        %v3257 = vrot.slane %v2865, 3
        %v3258 = vrot.slane %v2866, 3
        %v3259 = vsel %vm388, %v3257, %v3258
        %3260 = vrot.lane.b32.xlu0 %v3259, 64
        %v3261 = vpop.permute.xlu0 %3260
        %3262 = vrot.lane.b32.xlu0 %v3258, 64
        %v3263 = vpop.permute.xlu0 %3262
        %v3266 = vrot.slane %v2865, 4
        %v3267 = vrot.slane %v2866, 4
        %v3268 = vsel %vm986, %v3266, %v3267
        %v3271 = vrot.slane %v2865, 5
        %v3272 = vrot.slane %v2866, 5
        %v3273 = vsel %vm1035, %v3271, %v3272
        %3274 = vrot.lane.b32.xlu0 %v3273, 64
        %v3275 = vpop.permute.xlu0 %3274
        %3276 = vrot.lane.b32.xlu0 %v3272, 64
        %v3277 = vpop.permute.xlu0 %3276
        %v3281 = vrot.slane %v2865, 6
        %v3282 = vrot.slane %v2866, 6
        %v3283 = vsel %vm954, %v3281, %v3282
        %v3284 = vrot.slane %v2867, 6
        %v3285 = vsel %vm954, %v3282, %v3284
        %v3288 = vrot.slane %v2865, 7
        %v3289 = vrot.slane %v2866, 7
        %v3290 = vsel %vm1003, %v3288, %v3289
        %v3291 = vrot.slane %v2867, 7
        %v3292 = vsel %vm1003, %v3289, %v3291
        %3293 = vrot.lane.b32.xlu0 %v3290, 64
        %v3294 = vpop.permute.xlu0 %3293
        %3295 = vrot.lane.b32.xlu0 %v3292, 64
        %v3296 = vpop.permute.xlu0 %3295
        %v3299 = vrot.slane %v2867, 1
        %v3300 = vsel %vm348, %v3244, %v3299
        %3301 = vrot.lane.b32.xlu0 %v3300, 64
        %v3302 = vpop.permute.xlu0 %3301
        %3303 = vrot.lane.b32.xlu0 %v3299, 64
        %v3304 = vpop.permute.xlu0 %3303
        %v3307 = vrot.slane %v2867, 2
        %v3308 = vsel %vm368, %v3253, %v3307
        %v3311 = vrot.slane %v2867, 3
        %v3312 = vsel %vm388, %v3258, %v3311
        %3313 = vrot.lane.b32.xlu0 %v3312, 64
        %v3314 = vpop.permute.xlu0 %3313
        %3315 = vrot.lane.b32.xlu0 %v3311, 64
        %v3316 = vpop.permute.xlu0 %3315
        %v3319 = vsel %vm1105, %v2865, %v3247
        %v3320 = vsel %vm1105, %v2866, %v3249
        %v3321 = vsel %vm1105, %v3254, %v3261
        %v3322 = vsel %vm1105, %v3253, %v3263
        %v3323 = vsel %vm1105, %v3268, %v3275
        %v3324 = vsel %vm1105, %v3267, %v3277
        %v3325 = vsel %vm1105, %v3283, %v3294
        %v3326 = vsel %vm1105, %v3285, %v3296
        %v3327 = vsel %vm1105, %v2866, %v3302
        %v3328 = vsel %vm1105, %v2867, %v3304
        %v3329 = vsel %vm1105, %v3308, %v3314
        %v3330 = vsel %vm1105, %v3307, %v3316
        %v3333 = vrot.slane %v2868, 1
        %v3334 = vsel %vm348, %v3299, %v3333
        %v3335 = vrot.slane %v2869, 1
        %v3336 = vsel %vm348, %v3333, %v3335
        %3337 = vrot.lane.b32.xlu0 %v3334, 64
        %v3338 = vpop.permute.xlu0 %3337
        %3339 = vrot.lane.b32.xlu0 %v3336, 64
        %v3340 = vpop.permute.xlu0 %3339
        %3341 = vrot.lane.b32.xlu0 %v3335, 64
        %v3342 = vpop.permute.xlu0 %3341
        %v3346 = vrot.slane %v2868, 2
        %v3347 = vrot.slane %v2869, 2
        %v3348 = vsel %vm368, %v3346, %v3347
        %v3352 = vrot.slane %v2868, 3
        %v3353 = vrot.slane %v2869, 3
        %v3354 = vsel %vm388, %v3352, %v3353
        %3355 = vrot.lane.b32.xlu0 %v3352, 64
        %v3356 = vpop.permute.xlu0 %3355
        %3357 = vrot.lane.b32.xlu0 %v3354, 64
        %v3358 = vpop.permute.xlu0 %3357
        %3359 = vrot.lane.b32.xlu0 %v3353, 64
        %v3360 = vpop.permute.xlu0 %3359
        %v3364 = vrot.slane %v2868, 4
        %v3365 = vrot.slane %v2869, 4
        %v3366 = vsel %vm986, %v3364, %v3365
        %v3370 = vrot.slane %v2868, 5
        %v3371 = vrot.slane %v2869, 5
        %v3372 = vsel %vm1035, %v3370, %v3371
        %3373 = vrot.lane.b32.xlu0 %v3370, 64
        %v3374 = vpop.permute.xlu0 %3373
        %3375 = vrot.lane.b32.xlu0 %v3372, 64
        %v3376 = vpop.permute.xlu0 %3375
        %3377 = vrot.lane.b32.xlu0 %v3371, 64
        %v3378 = vpop.permute.xlu0 %3377
        %v3382 = vrot.slane %v2868, 6
        %v3383 = vrot.slane %v2869, 6
        %v3384 = vsel %vm954, %v3382, %v3383
        %v3388 = vrot.slane %v2868, 7
        %v3389 = vrot.slane %v2869, 7
        %v3390 = vsel %vm1003, %v3388, %v3389
        %3391 = vrot.lane.b32.xlu0 %v3388, 64
        %v3392 = vpop.permute.xlu0 %3391
        %3393 = vrot.lane.b32.xlu0 %v3390, 64
        %v3394 = vpop.permute.xlu0 %3393
        %3395 = vrot.lane.b32.xlu0 %v3389, 64
        %v3396 = vpop.permute.xlu0 %3395
        %v3401 = vrot.slane %v2870, 1
        %v3402 = vsel %vm348, %v3335, %v3401
        %3403 = vrot.lane.b32.xlu0 %v3402, 64
        %v3404 = vpop.permute.xlu0 %3403
        %3405 = vrot.lane.b32.xlu0 %v3401, 64
        %v3406 = vpop.permute.xlu0 %3405
        %v3409 = vrot.slane %v2870, 2
        %v3410 = vsel %vm368, %v3347, %v3409
        %v3413 = vrot.slane %v2870, 3
        %v3414 = vsel %vm388, %v3353, %v3413
        %3415 = vrot.lane.b32.xlu0 %v3414, 64
        %v3416 = vpop.permute.xlu0 %3415
        %3417 = vrot.lane.b32.xlu0 %v3413, 64
        %v3418 = vpop.permute.xlu0 %3417
        %v3421 = vsel %vm1105, %v2867, %v3338
        %v3422 = vsel %vm1105, %v2868, %v3340
        %v3423 = vsel %vm1105, %v2869, %v3342
        %v3424 = vsel %vm1105, %v3346, %v3356
        %v3425 = vsel %vm1105, %v3348, %v3358
        %v3426 = vsel %vm1105, %v3347, %v3360
        %v3427 = vsel %vm1105, %v3364, %v3374
        %v3428 = vsel %vm1105, %v3366, %v3376
        %v3429 = vsel %vm1105, %v3365, %v3378
        %v3430 = vsel %vm1105, %v3382, %v3392
        %v3431 = vsel %vm1105, %v3384, %v3394
        %v3432 = vsel %vm1105, %v3383, %v3396
        %v3433 = vsel %vm1105, %v2869, %v3404
        %v3434 = vsel %vm1105, %v2870, %v3406
        %v3435 = vsel %vm1105, %v3410, %v3416
        %v3436 = vsel %vm1105, %v3409, %v3418
        %v3438 = vrot.slane %v2871, 1
        %v3439 = vsel %vm348, %v3401, %v3438
        %3440 = vrot.lane.b32.xlu0 %v3439, 64
        %v3441 = vpop.permute.xlu0 %3440
        %3442 = vrot.lane.b32.xlu0 %v3438, 64
        %v3443 = vpop.permute.xlu0 %3442
        %v3447 = vrot.slane %v2871, 2
        %v3448 = vsel %vm368, %v3409, %v3447
        %v3449 = vrot.slane %v2872, 2
        %v3450 = vsel %vm368, %v3447, %v3449
        %v3453 = vrot.slane %v2871, 3
        %v3454 = vsel %vm388, %v3413, %v3453
        %v3455 = vrot.slane %v2872, 3
        %v3456 = vsel %vm388, %v3453, %v3455
        %3457 = vrot.lane.b32.xlu0 %v3454, 64
        %v3458 = vpop.permute.xlu0 %3457
        %3459 = vrot.lane.b32.xlu0 %v3456, 64
        %v3460 = vpop.permute.xlu0 %3459
        %v3463 = vrot.slane %v2871, 4
        %v3464 = vrot.slane %v2872, 4
        %v3465 = vsel %vm986, %v3463, %v3464
        %v3468 = vrot.slane %v2871, 5
        %v3469 = vrot.slane %v2872, 5
        %v3470 = vsel %vm1035, %v3468, %v3469
        %3471 = vrot.lane.b32.xlu0 %v3468, 64
        %v3472 = vpop.permute.xlu0 %3471
        %3473 = vrot.lane.b32.xlu0 %v3470, 64
        %v3474 = vpop.permute.xlu0 %3473
        %v3477 = vrot.slane %v2871, 6
        %v3478 = vrot.slane %v2872, 6
        %v3479 = vsel %vm954, %v3477, %v3478
        %v3482 = vrot.slane %v2871, 7
        %v3483 = vrot.slane %v2872, 7
        %v3484 = vsel %vm1003, %v3482, %v3483
        %3485 = vrot.lane.b32.xlu0 %v3482, 64
        %v3486 = vpop.permute.xlu0 %3485
        %3487 = vrot.lane.b32.xlu0 %v3484, 64
        %v3488 = vpop.permute.xlu0 %3487
        %v3491 = vrot.slane %v2872, 1
        %v3492 = vsel %vm348, %v3438, %v3491
        %3493 = vrot.lane.b32.xlu0 %v3492, 64
        %v3494 = vpop.permute.xlu0 %3493
        %3495 = vrot.lane.b32.xlu0 %v3491, 64
        %v3496 = vpop.permute.xlu0 %3495
        %v3500 = vrot.slane %v2873, 2
        %v3501 = vsel %vm368, %v3449, %v3500
        %v3503 = vrot.slane %v2873, 3
        %v3504 = vsel %vm388, %v3455, %v3503
        %3505 = vrot.lane.b32.xlu0 %v3504, 64
        %v3506 = vpop.permute.xlu0 %3505
        %v3508 = vsel %vm1105, %v2870, %v3441
        %v3509 = vsel %vm1105, %v2871, %v3443
        %v3510 = vsel %vm1105, %v3448, %v3458
        %v3511 = vsel %vm1105, %v3450, %v3460
        %v3512 = vsel %vm1105, %v3463, %v3472
        %v3513 = vsel %vm1105, %v3465, %v3474
        %v3514 = vsel %vm1105, %v3477, %v3486
        %v3515 = vsel %vm1105, %v3479, %v3488
        %v3516 = vsel %vm1105, %v2871, %v3494
        %v3517 = vsel %vm1105, %v2872, %v3496
        %v3518 = vsel %vm1105, %v3501, %v3506
        %v3520 = vrot.slane %v2873, 1
        %v3521 = vrot.slane %v2874, 1
        %v3522 = vsel %vm348, %v3520, %v3521
        %3523 = vrot.lane.b32.xlu0 %v3522, 64
        %v3524 = vpop.permute.xlu0 %3523
        %3525 = vrot.lane.b32.xlu0 %v3521, 64
        %v3526 = vpop.permute.xlu0 %3525
        %v3529 = vrot.slane %v2874, 2
        %v3530 = vsel %vm368, %v3500, %v3529
        %v3533 = vrot.slane %v2874, 3
        %v3534 = vsel %vm388, %v3503, %v3533
        %3535 = vrot.lane.b32.xlu0 %v3534, 64
        %v3536 = vpop.permute.xlu0 %3535
        %3537 = vrot.lane.b32.xlu0 %v3533, 64
        %v3538 = vpop.permute.xlu0 %3537
        %v3542 = vrot.slane %v2873, 4
        %v3543 = vrot.slane %v2874, 4
        %v3544 = vsel %vm986, %v3542, %v3543
        %v3545 = vrot.slane %v2875, 4
        %v3546 = vsel %vm986, %v3543, %v3545
        %v3549 = vrot.slane %v2873, 5
        %v3550 = vrot.slane %v2874, 5
        %v3551 = vsel %vm1035, %v3549, %v3550
        %v3552 = vrot.slane %v2875, 5
        %v3553 = vsel %vm1035, %v3550, %v3552
        %3554 = vrot.lane.b32.xlu0 %v3551, 64
        %v3555 = vpop.permute.xlu0 %3554
        %3556 = vrot.lane.b32.xlu0 %v3553, 64
        %v3557 = vpop.permute.xlu0 %3556
        %v3560 = vrot.slane %v2874, 6
        %v3561 = vrot.slane %v2875, 6
        %v3562 = vsel %vm954, %v3560, %v3561
        %v3565 = vrot.slane %v2874, 7
        %v3566 = vrot.slane %v2875, 7
        %v3567 = vsel %vm1003, %v3565, %v3566
        %3568 = vrot.lane.b32.xlu0 %v3565, 64
        %v3569 = vpop.permute.xlu0 %3568
        %3570 = vrot.lane.b32.xlu0 %v3567, 64
        %v3571 = vpop.permute.xlu0 %3570
        %v3574 = vrot.slane %v2875, 1
        %v3575 = vsel %vm348, %v3521, %v3574
        %3576 = vrot.lane.b32.xlu0 %v3575, 64
        %v3577 = vpop.permute.xlu0 %3576
        %3578 = vrot.lane.b32.xlu0 %v3574, 64
        %v3579 = vpop.permute.xlu0 %3578
        %v3582 = vrot.slane %v2875, 2
        %v3583 = vsel %vm368, %v3529, %v3582
        %v3586 = vrot.slane %v2875, 3
        %v3587 = vsel %vm388, %v3533, %v3586
        %3588 = vrot.lane.b32.xlu0 %v3587, 64
        %v3589 = vpop.permute.xlu0 %3588
        %3590 = vrot.lane.b32.xlu0 %v3586, 64
        %v3591 = vpop.permute.xlu0 %3590
        %v3594 = vsel %vm1105, %v2873, %v3524
        %v3595 = vsel %vm1105, %v2874, %v3526
        %v3596 = vsel %vm1105, %v3530, %v3536
        %v3597 = vsel %vm1105, %v3529, %v3538
        %v3598 = vsel %vm1105, %v3544, %v3555
        %v3599 = vsel %vm1105, %v3546, %v3557
        %v3600 = vsel %vm1105, %v3560, %v3569
        %v3601 = vsel %vm1105, %v3562, %v3571
        %v3602 = vsel %vm1105, %v2874, %v3577
        %v3603 = vsel %vm1105, %v2875, %v3579
        %v3604 = vsel %vm1105, %v3583, %v3589
        %v3605 = vsel %vm1105, %v3582, %v3591
        %v3622 = vrot.slane %v3056, 3
        %v3623 = vrot.slane %v3057, 3
        %v3624 = vsel %vm388, %v3622, %v3623
        %v3625 = vrot.slane %v3059, 3
        %v3626 = vrot.slane %v3060, 3
        %v3627 = vsel %vm388, %v3625, %v3626
        %v3628 = vrot.slane %v3062, 3
        %v3629 = vrot.slane %v3063, 3
        %v3630 = vsel %vm388, %v3628, %v3629
        %v3631 = vrot.slane %v3065, 3
        %v3632 = vrot.slane %v3066, 3
        %v3633 = vsel %vm388, %v3631, %v3632
        %v3634 = vrot.slane %v3068, 3
        %v3635 = vsel %vm388, %v3623, %v3634
        %v3636 = vrot.slane %v3061, 3
        %v3637 = vrot.slane %v3070, 3
        %v3638 = vsel %vm388, %v3636, %v3637
        %v3639 = vrot.slane %v3058, 3
        %v3640 = vsel %vm388, %v3623, %v3639
        %v3641 = vsel %vm388, %v3626, %v3636
        %v3642 = vrot.slane %v3064, 3
        %v3643 = vsel %vm388, %v3629, %v3642
        %v3644 = vrot.slane %v3067, 3
        %v3645 = vsel %vm388, %v3632, %v3644
        %v3646 = vrot.slane %v3069, 3
        %v3647 = vsel %vm388, %v3634, %v3646
        %v3648 = vrot.slane %v3071, 3
        %v3649 = vsel %vm388, %v3637, %v3648
        %v3673 = vrot.slane %v3143, 6
        %v3674 = vrot.slane %v3145, 6
        %v3675 = vrot.slane %v3147, 6
        %v3676 = vrot.slane %v3149, 6
        %v3677 = vrot.slane %v3151, 6
        %v3678 = vrot.slane %v3146, 6
        %v3679 = vrot.slane %v3144, 6
        %v3680 = vsel %vm954, %v3673, %v3679
        %v3681 = vsel %vm954, %v3674, %v3678
        %v3682 = vrot.slane %v3148, 6
        %v3683 = vsel %vm954, %v3675, %v3682
        %v3684 = vrot.slane %v3150, 6
        %v3685 = vsel %vm954, %v3676, %v3684
        %v3686 = vrot.slane %v3152, 6
        %v3687 = vsel %vm954, %v3677, %v3686
        %v3688 = vrot.slane %v3153, 6
        %v3689 = vsel %vm954, %v3678, %v3688
        %v3719 = vrot.slane %v3229, 1
        %v3720 = vrot.slane %v3230, 1
        %v3721 = vsel %vm348, %v3719, %v3720
        %v3722 = vrot.slane %v3231, 1
        %v3723 = vrot.slane %v3232, 1
        %v3724 = vsel %vm348, %v3722, %v3723
        %v3725 = vrot.slane %v3233, 1
        %v3726 = vrot.slane %v3234, 1
        %v3727 = vsel %vm348, %v3725, %v3726
        %v3728 = vrot.slane %v3235, 1
        %v3729 = vrot.slane %v3236, 1
        %v3730 = vsel %vm348, %v3728, %v3729
        %v3731 = vrot.slane %v3237, 1
        %v3732 = vrot.slane %v3238, 1
        %v3733 = vsel %vm348, %v3731, %v3732
        %v3734 = vrot.slane %v3239, 1
        %v3735 = vrot.slane %v3240, 1
        %v3736 = vsel %vm348, %v3734, %v3735
        %v3761 = vrot.slane %v3319, 4
        %v3762 = vrot.slane %v3321, 4
        %v3763 = vrot.slane %v3323, 4
        %v3764 = vrot.slane %v3325, 4
        %v3765 = vrot.slane %v3327, 4
        %v3766 = vrot.slane %v3329, 4
        %v3767 = vrot.slane %v3320, 4
        %v3768 = vsel %vm986, %v3761, %v3767
        %v3769 = vrot.slane %v3322, 4
        %v3770 = vsel %vm986, %v3762, %v3769
        %v3771 = vrot.slane %v3324, 4
        %v3772 = vsel %vm986, %v3763, %v3771
        %v3773 = vrot.slane %v3326, 4
        %v3774 = vsel %vm986, %v3764, %v3773
        %v3775 = vrot.slane %v3328, 4
        %v3776 = vsel %vm986, %v3765, %v3775
        %v3777 = vrot.slane %v3330, 4
        %v3778 = vsel %vm986, %v3766, %v3777
        %v3807 = vrot.slane %v3421, 7
        %v3808 = vrot.slane %v3424, 7
        %v3809 = vrot.slane %v3427, 7
        %v3810 = vrot.slane %v3430, 7
        %v3811 = vrot.slane %v3422, 7
        %v3812 = vrot.slane %v3426, 7
        %v3813 = vsel %vm1003, %v3807, %v3811
        %v3814 = vrot.slane %v3425, 7
        %v3815 = vsel %vm1003, %v3808, %v3814
        %v3816 = vrot.slane %v3428, 7
        %v3817 = vsel %vm1003, %v3809, %v3816
        %v3818 = vrot.slane %v3431, 7
        %v3819 = vsel %vm1003, %v3810, %v3818
        %v3820 = vrot.slane %v3433, 7
        %v3821 = vsel %vm1003, %v3811, %v3820
        %v3822 = vrot.slane %v3435, 7
        %v3823 = vsel %vm1003, %v3812, %v3822
        %v3824 = vrot.slane %v3423, 7
        %v3825 = vsel %vm1003, %v3811, %v3824
        %v3826 = vsel %vm1003, %v3814, %v3812
        %v3827 = vrot.slane %v3429, 7
        %v3828 = vsel %vm1003, %v3816, %v3827
        %v3829 = vrot.slane %v3432, 7
        %v3830 = vsel %vm1003, %v3818, %v3829
        %v3831 = vrot.slane %v3434, 7
        %v3832 = vsel %vm1003, %v3820, %v3831
        %v3833 = vrot.slane %v3436, 7
        %v3834 = vsel %vm1003, %v3822, %v3833
        %v3864 = vrot.slane %v3508, 2
        %v3865 = vrot.slane %v3509, 2
        %v3866 = vsel %vm368, %v3864, %v3865
        %v3867 = vrot.slane %v3510, 2
        %v3868 = vrot.slane %v3511, 2
        %v3869 = vsel %vm368, %v3867, %v3868
        %v3870 = vrot.slane %v3512, 2
        %v3871 = vrot.slane %v3513, 2
        %v3872 = vsel %vm368, %v3870, %v3871
        %v3873 = vrot.slane %v3514, 2
        %v3874 = vrot.slane %v3515, 2
        %v3875 = vsel %vm368, %v3873, %v3874
        %v3876 = vrot.slane %v3516, 2
        %v3877 = vrot.slane %v3517, 2
        %v3878 = vsel %vm368, %v3876, %v3877
        %v3879 = vrot.slane %v3518, 2
        %v3880 = vsel %vm368, %v3868, %v3879
        %v3905 = vrot.slane %v3594, 5
        %v3906 = vrot.slane %v3596, 5
        %v3907 = vrot.slane %v3598, 5
        %v3908 = vrot.slane %v3600, 5
        %v3909 = vrot.slane %v3602, 5
        %v3910 = vrot.slane %v3604, 5
        %v3911 = vrot.slane %v3595, 5
        %v3912 = vsel %vm1035, %v3905, %v3911
        %v3913 = vrot.slane %v3597, 5
        %v3914 = vsel %vm1035, %v3906, %v3913
        %v3915 = vrot.slane %v3599, 5
        %v3916 = vsel %vm1035, %v3907, %v3915
        %v3917 = vrot.slane %v3601, 5
        %v3918 = vsel %vm1035, %v3908, %v3917
        %v3919 = vrot.slane %v3603, 5
        %v3920 = vsel %vm1035, %v3909, %v3919
        %v3921 = vrot.slane %v3605, 5
        %v3922 = vsel %vm1035, %v3910, %v3921
        %v3935 = vsel %vm1035, %v2955, %v3624
        %v3936 = vsel %vm1035, %v2957, %v3627
        %v3937 = vsel %vm1035, %v2959, %v3630
        %v3938 = vsel %vm1035, %v2961, %v3633
        %v3939 = vsel %vm1035, %v2963, %v3635
        %v3940 = vsel %vm1035, %v2965, %v3638
        %v3941 = vsel %vm368, %v3640, %v3673
        %v3942 = vsel %vm368, %v3641, %v3674
        %v3943 = vsel %vm368, %v3643, %v3675
        %v3944 = vsel %vm368, %v3645, %v3676
        %v3945 = vsel %vm368, %v3647, %v3677
        %v3946 = vsel %vm368, %v3649, %v3678
        %v3947 = vsel %vm1003, %v3679, %v3721
        %v3948 = vsel %vm1003, %v3678, %v3724
        %v3949 = vsel %vm1003, %v3682, %v3727
        %v3950 = vsel %vm1003, %v3684, %v3730
        %v3951 = vsel %vm1003, %v3686, %v3733
        %v3952 = vsel %vm1003, %v3688, %v3736
        %v3953 = vsel %vm986, %v3720, %v3761
        %v3954 = vsel %vm986, %v3723, %v3762
        %v3955 = vsel %vm986, %v3726, %v3763
        %v3956 = vsel %vm986, %v3729, %v3764
        %v3957 = vsel %vm986, %v3732, %v3765
        %v3958 = vsel %vm986, %v3735, %v3766
        %v3959 = vsel %vm348, %v3768, %v3807
        %v3960 = vsel %vm348, %v3770, %v3808
        %v3961 = vsel %vm348, %v3772, %v3809
        %v3962 = vsel %vm348, %v3774, %v3810
        %v3963 = vsel %vm348, %v3776, %v3811
        %v3964 = vsel %vm348, %v3778, %v3812
        %v3965 = vsel %vm954, %v3825, %v3866
        %v3966 = vsel %vm954, %v3826, %v3869
        %v3967 = vsel %vm954, %v3828, %v3872
        %v3968 = vsel %vm954, %v3830, %v3875
        %v3969 = vsel %vm954, %v3832, %v3878
        %v3970 = vsel %vm954, %v3834, %v3880
        %v3971 = vsel %vm388, %v3865, %v3905
        %v3972 = vsel %vm388, %v3868, %v3906
        %v3973 = vsel %vm388, %v3871, %v3907
        %v3974 = vsel %vm388, %v3874, %v3908
        %v3975 = vsel %vm388, %v3877, %v3909
        %v3976 = vsel %vm388, %v3879, %v3910
        %v3977 = vpack.c.bf16 %v3935, %v2954
        %v3978 = vpack.c.bf16 %v3936, %v2956
        %v3979 = vpack.c.bf16 %v3937, %v2958
        %v3980 = vpack.c.bf16 %v3938, %v2960
        %v3981 = vpack.c.bf16 %v3939, %v2962
        %v3982 = vpack.c.bf16 %v3940, %v2964
        %v3983 = vpack.c.bf16 %v3680, %v3941
        %v3984 = vpack.c.bf16 %v3681, %v3942
        %v3985 = vpack.c.bf16 %v3683, %v3943
        %v3986 = vpack.c.bf16 %v3685, %v3944
        %v3987 = vpack.c.bf16 %v3687, %v3945
        %v3988 = vpack.c.bf16 %v3689, %v3946
        %v3989 = vpack.c.bf16 %v3953, %v3947
        %v3990 = vpack.c.bf16 %v3954, %v3948
        %v3991 = vpack.c.bf16 %v3955, %v3949
        %v3992 = vpack.c.bf16 %v3956, %v3950
        %v3993 = vpack.c.bf16 %v3957, %v3951
        %v3994 = vpack.c.bf16 %v3958, %v3952
        %v3995 = vpack.c.bf16 %v3813, %v3959
        %v3996 = vpack.c.bf16 %v3815, %v3960
        %v3997 = vpack.c.bf16 %v3817, %v3961
        %v3998 = vpack.c.bf16 %v3819, %v3962
        %v3999 = vpack.c.bf16 %v3821, %v3963
        %v4000 = vpack.c.bf16 %v3823, %v3964
        %v4001 = vpack.c.bf16 %v3971, %v3965
        %v4002 = vpack.c.bf16 %v3972, %v3966
        %v4003 = vpack.c.bf16 %v3973, %v3967
        %v4004 = vpack.c.bf16 %v3974, %v3968
        %v4005 = vpack.c.bf16 %v3975, %v3969
        %v4006 = vpack.c.bf16 %v3976, %v3970
        %v4007 = vpack.c.bf16 %v3912, %v3912
        %v4008 = vpack.c.bf16 %v3914, %v3914
        %v4009 = vpack.c.bf16 %v3916, %v3916
        %v4010 = vpack.c.bf16 %v3918, %v3918
        %v4011 = vpack.c.bf16 %v3920, %v3920
        %v4012 = vpack.c.bf16 %v3922, %v3922
        %v4013 = vld [vmem:[%s5] sm:$0xf]
        %v4014 = vld [vmem:[%s5 + $0x4] sm:$0xf]
        %v4015 = vld [vmem:[%s5 + $0x8] sm:$0xf]
        %v4016 = vld [vmem:[%s5 + $0xc] sm:$0xf]
        %v4017 = vld [vmem:[%s5 + $0x10] sm:$0xf]
        %v4018 = vld [vmem:[%s5 + $0x14] sm:$0xf]
        %v4019 = vld [vmem:[%s5 + $0x18] sm:$0xf]
        %v4020 = vld [vmem:[%s5 + $0x1c] sm:$0xf]
        %v4021 = vld [vmem:[%s5 + $0x20] sm:$0xf]
        %v4022 = vld [vmem:[%s5 + $0x24] sm:$0xf]
        %v4023 = vld [vmem:[%s5 + $0x28] sm:$0xf]
        %v4024 = vld [vmem:[%s5 + $0x2c] sm:$0xf]
        %v4025 = vld [vmem:[%s5 + $0x30] sm:$0xf]
        %v4026 = vld [vmem:[%s5 + $0x34] sm:$0xf]
        %v4027 = vld [vmem:[%s5 + $0x38] sm:$0xf]
        %v4028 = vld [vmem:[%s5 + $0x3c] sm:$0xf]
        %v4029 = vld [vmem:[%s5 + $0x40] sm:$0xf]
        %v4030 = vld [vmem:[%s5 + $0x44] sm:$0xf]
        %v4031 = vld [vmem:[%s5 + $0x48] sm:$0xf]
        %v4032 = vld [vmem:[%s5 + $0x4c] sm:$0xf]
        %v4033 = vld [vmem:[%s5 + $0x50] sm:$0xf]
        %v4034 = vld [vmem:[%s5 + $0x54] sm:$0xf]
        %v4035 = vld [vmem:[%s5 + $0x58] sm:$0xf]
        %v4036 = vld [vmem:[%s5 + $0x5c] sm:$0xf]
        %v4037 = vld [vmem:[%s5 + $0x60] sm:$0xf]
        %v4038 = vld [vmem:[%s5 + $0x64] sm:$0xf]
        %v4039 = vld [vmem:[%s5 + $0x68] sm:$0xf]
        %v4040 = vld [vmem:[%s5 + $0x6c] sm:$0xf]
        %v4041 = vld [vmem:[%s5 + $0x70] sm:$0xf]
        %v4042 = vld [vmem:[%s5 + $0x74] sm:$0xf]
        %v4043 = vld [vmem:[%s5 + $0x78] sm:$0xf]
        %v4044 = vld [vmem:[%s5 + $0x7c] sm:$0xf]
        %v4045 = vld [vmem:[%s5 + $0x80] sm:$0xf]
        %v4046 = vld [vmem:[%s5 + $0x84] sm:$0xf]
        %v4047 = vld [vmem:[%s5 + $0x88] sm:$0xf]
        %v4048 = vld [vmem:[%s5 + $0x8c] sm:$0xf]
        %v4049 = vld [vmem:[%s5 + $0x90] sm:$0xf]
        %v4050 = vld [vmem:[%s5 + $0x94] sm:$0xf]
        %v4051 = vld [vmem:[%s5 + $0x98] sm:$0xf]
        %v4052 = vld [vmem:[%s5 + $0x9c] sm:$0xf]
        %v4053 = vld [vmem:[%s5 + $0xa0] sm:$0xf]
        %v4054 = vld [vmem:[%s5 + $0xa4] sm:$0xf]
        %v4055 = vld [vmem:[%s5 + $0xa8] sm:$0xf]
        %v4056 = vld [vmem:[%s5 + $0xac] sm:$0xf]
        %v4057 = vld [vmem:[%s5 + $0xb0] sm:$0xf]
        %v4058 = vld [vmem:[%s5 + $0xb4] sm:$0xf]
        %v4059 = vld [vmem:[%s5 + $0xb8] sm:$0xf]
        %v4060 = vld [vmem:[%s5 + $0xbc] sm:$0xf]
        %v4061 = vld [vmem:[%s5 + $0xc0] sm:$0xf]
        %v4062 = vld [vmem:[%s5 + $0xc4] sm:$0xf]
        %v4063 = vld [vmem:[%s5 + $0xc8] sm:$0xf]
        %v4064 = vld [vmem:[%s5 + $0xcc] sm:$0xf]
        %v4065 = vld [vmem:[%s5 + $0xd0] sm:$0xf]
        %v4066 = vld [vmem:[%s5 + $0xd4] sm:$0xf]
        %v4067 = vld [vmem:[%s5 + $0xd8] sm:$0xf]
        %v4068 = vld [vmem:[%s5 + $0xdc] sm:$0xf]
        %v4069 = vld [vmem:[%s5 + $0xe0] sm:$0xf]
        %v4070 = vld [vmem:[%s5 + $0xe4] sm:$0xf]
        %v4071 = vld [vmem:[%s5 + $0xe8] sm:$0xf]
        %v4072 = vld [vmem:[%s5 + $0xec] sm:$0xf]
        %v4073 = vld [vmem:[%s5 + $0xf0] sm:$0xf]
        %v4074 = vld [vmem:[%s5 + $0xf4] sm:$0xf]
        %v4075 = vld [vmem:[%s5 + $0xf8] sm:$0xf]
        %v4076 = vld [vmem:[%s5 + $0xfc] sm:$0xf]
        %v4077 = vld [vmem:[%s5 + $0x100] sm:$0xf]
        %v4078 = vld [vmem:[%s5 + $0x104] sm:$0xf]
        %v4079 = vld [vmem:[%s5 + $0x108] sm:$0xf]
        %v4080 = vld [vmem:[%s5 + $0x10c] sm:$0xf]
        %v4081 = vld [vmem:[%s5 + $0x110] sm:$0xf]
        %v4082 = vld [vmem:[%s5 + $0x114] sm:$0xf]
        %v4083 = vld [vmem:[%s5 + $0x118] sm:$0xf]
        %v4084 = vld [vmem:[%s5 + $0x11c] sm:$0xf]
        %v4085 = vld [vmem:[%s5 + $0x120] sm:$0xf]
        %v4086 = vld [vmem:[%s5 + $0x124] sm:$0xf]
        %v4087 = vld [vmem:[%s5 + $0x128] sm:$0xf]
        %v4088 = vld [vmem:[%s5 + $0x12c] sm:$0xf]
        %v4089 = vld [vmem:[%s5 + $0x130] sm:$0xf]
        %v4090 = vld [vmem:[%s5 + $0x134] sm:$0xf]
        %v4091 = vld [vmem:[%s5 + $0x138] sm:$0xf]
        %v4092 = vld [vmem:[%s5 + $0x13c] sm:$0xf]
        %v4093 = vld [vmem:[%s5 + $0x140] sm:$0xf]
        %v4094 = vld [vmem:[%s5 + $0x144] sm:$0xf]
        %v4095 = vld [vmem:[%s5 + $0x148] sm:$0xf]
        %v4096 = vld [vmem:[%s5 + $0x14c] sm:$0xf]
        %v4097 = vld [vmem:[%s5 + $0x150] sm:$0xf]
        %v4098 = vld [vmem:[%s5 + $0x154] sm:$0xf]
        %v4099 = vld [vmem:[%s5 + $0x158] sm:$0xf]
        %v4100 = vld [vmem:[%s5 + $0x15c] sm:$0xf]
        %v4101 = vld [vmem:[%s5 + $0x160] sm:$0xf]
        %v4102 = vld [vmem:[%s5 + $0x164] sm:$0xf]
        %v4103 = vld [vmem:[%s5 + $0x168] sm:$0xf]
        %v4104 = vld [vmem:[%s5 + $0x16c] sm:$0xf]
        %v4105 = vld [vmem:[%s5 + $0x170] sm:$0xf]
        %v4106 = vld [vmem:[%s5 + $0x174] sm:$0xf]
        %v4107 = vld [vmem:[%s5 + $0x178] sm:$0xf]
        %v4108 = vld [vmem:[%s5 + $0x17c] sm:$0xf]
        %v4109 = vld [vmem:[%s6] sm:$0x1]
        %v4111 = vperm.slane %v4109, 0
        %v4209 = vunpack.c.l.b16 %v4013
        %v4210 = vunpack.c.l.b16 %v4014
        %v4211 = vunpack.c.l.b16 %v4015
        %v4212 = vunpack.c.l.b16 %v4016
        %v4213 = vunpack.c.l.b16 %v4017
        %v4214 = vunpack.c.l.b16 %v4018
        %v4215 = vunpack.c.l.b16 %v4019
        %v4216 = vunpack.c.l.b16 %v4020
        %v4217 = vunpack.c.l.b16 %v4021
        %v4218 = vunpack.c.l.b16 %v4022
        %v4219 = vunpack.c.l.b16 %v4023
        %v4220 = vunpack.c.l.b16 %v4024
        %v4221 = vunpack.c.l.b16 %v4025
        %v4222 = vunpack.c.l.b16 %v4026
        %v4223 = vunpack.c.l.b16 %v4027
        %v4224 = vunpack.c.l.b16 %v4028
        %v4225 = vunpack.c.l.b16 %v4029
        %v4226 = vunpack.c.l.b16 %v4030
        %v4227 = vunpack.c.l.b16 %v4031
        %v4228 = vunpack.c.l.b16 %v4032
        %v4229 = vunpack.c.l.b16 %v4033
        %v4230 = vunpack.c.l.b16 %v4034
        %v4231 = vunpack.c.l.b16 %v4035
        %v4232 = vunpack.c.l.b16 %v4036
        %v4233 = vunpack.c.l.b16 %v4037
        %v4234 = vunpack.c.l.b16 %v4038
        %v4235 = vunpack.c.l.b16 %v4039
        %v4236 = vunpack.c.l.b16 %v4040
        %v4237 = vunpack.c.l.b16 %v4041
        %v4238 = vunpack.c.l.b16 %v4042
        %v4239 = vunpack.c.l.b16 %v4043
        %v4240 = vunpack.c.l.b16 %v4044
        %v4241 = vunpack.c.l.b16 %v4045
        %v4242 = vunpack.c.l.b16 %v4046
        %v4243 = vunpack.c.l.b16 %v4047
        %v4244 = vunpack.c.l.b16 %v4048
        %v4245 = vunpack.c.l.b16 %v4049
        %v4246 = vunpack.c.l.b16 %v4050
        %v4247 = vunpack.c.l.b16 %v4051
        %v4248 = vunpack.c.l.b16 %v4052
        %v4249 = vunpack.c.l.b16 %v4053
        %v4250 = vunpack.c.l.b16 %v4054
        %v4251 = vunpack.c.l.b16 %v4055
        %v4252 = vunpack.c.l.b16 %v4056
        %v4253 = vunpack.c.l.b16 %v4057
        %v4254 = vunpack.c.l.b16 %v4058
        %v4255 = vunpack.c.l.b16 %v4059
        %v4256 = vunpack.c.l.b16 %v4060
        %v4257 = vunpack.c.l.b16 %v4061
        %v4258 = vunpack.c.l.b16 %v4062
        %v4259 = vunpack.c.l.b16 %v4063
        %v4260 = vunpack.c.l.b16 %v4064
        %v4261 = vunpack.c.l.b16 %v4065
        %v4262 = vunpack.c.l.b16 %v4066
        %v4263 = vunpack.c.l.b16 %v4067
        %v4264 = vunpack.c.l.b16 %v4068
        %v4265 = vunpack.c.l.b16 %v4069
        %v4266 = vunpack.c.l.b16 %v4070
        %v4267 = vunpack.c.l.b16 %v4071
        %v4268 = vunpack.c.l.b16 %v4072
        %v4269 = vunpack.c.l.b16 %v4073
        %v4270 = vunpack.c.l.b16 %v4074
        %v4271 = vunpack.c.l.b16 %v4075
        %v4272 = vunpack.c.l.b16 %v4076
        %v4273 = vunpack.c.l.b16 %v4077
        %v4274 = vunpack.c.l.b16 %v4078
        %v4275 = vunpack.c.l.b16 %v4079
        %v4276 = vunpack.c.l.b16 %v4080
        %v4277 = vunpack.c.l.b16 %v4081
        %v4278 = vunpack.c.l.b16 %v4082
        %v4279 = vunpack.c.l.b16 %v4083
        %v4280 = vunpack.c.l.b16 %v4084
        %v4281 = vunpack.c.l.b16 %v4085
        %v4282 = vunpack.c.l.b16 %v4086
        %v4283 = vunpack.c.l.b16 %v4087
        %v4284 = vunpack.c.l.b16 %v4088
        %v4285 = vunpack.c.l.b16 %v4089
        %v4286 = vunpack.c.l.b16 %v4090
        %v4287 = vunpack.c.l.b16 %v4091
        %v4288 = vunpack.c.l.b16 %v4092
        %v4289 = vunpack.c.l.b16 %v4093
        %v4290 = vunpack.c.l.b16 %v4094
        %v4291 = vunpack.c.l.b16 %v4095
        %v4292 = vunpack.c.l.b16 %v4096
        %v4293 = vunpack.c.l.b16 %v4097
        %v4294 = vunpack.c.l.b16 %v4098
        %v4295 = vunpack.c.l.b16 %v4099
        %v4296 = vunpack.c.l.b16 %v4100
        %v4297 = vunpack.c.l.b16 %v4101
        %v4298 = vunpack.c.l.b16 %v4102
        %v4299 = vunpack.c.l.b16 %v4103
        %v4300 = vunpack.c.l.b16 %v4104
        %v4301 = vunpack.c.l.b16 %v4105
        %v4302 = vunpack.c.l.b16 %v4106
        %v4303 = vunpack.c.l.b16 %v4107
        %v4304 = vunpack.c.l.b16 %v4108
        %v4305 = vpack.c.b16 %v4210, %v4209
        %v4306 = vpack.c.b16 %v4212, %v4211
        %v4307 = vpack.c.b16 %v4214, %v4213
        %v4308 = vpack.c.b16 %v4216, %v4215
        %v4309 = vpack.c.b16 %v4218, %v4217
        %v4310 = vpack.c.b16 %v4220, %v4219
        %v4311 = vpack.c.b16 %v4222, %v4221
        %v4312 = vpack.c.b16 %v4224, %v4223
        %v4313 = vpack.c.b16 %v4226, %v4225
        %v4314 = vpack.c.b16 %v4228, %v4227
        %v4315 = vpack.c.b16 %v4230, %v4229
        %v4316 = vpack.c.b16 %v4232, %v4231
        %v4317 = vpack.c.b16 %v4234, %v4233
        %v4318 = vpack.c.b16 %v4236, %v4235
        %v4319 = vpack.c.b16 %v4238, %v4237
        %v4320 = vpack.c.b16 %v4240, %v4239
        %v4321 = vpack.c.b16 %v4242, %v4241
        %v4322 = vpack.c.b16 %v4244, %v4243
        %v4323 = vpack.c.b16 %v4246, %v4245
        %v4324 = vpack.c.b16 %v4248, %v4247
        %v4325 = vpack.c.b16 %v4250, %v4249
        %v4326 = vpack.c.b16 %v4252, %v4251
        %v4327 = vpack.c.b16 %v4254, %v4253
        %v4328 = vpack.c.b16 %v4256, %v4255
        %v4329 = vpack.c.b16 %v4258, %v4257
        %v4330 = vpack.c.b16 %v4260, %v4259
        %v4331 = vpack.c.b16 %v4262, %v4261
        %v4332 = vpack.c.b16 %v4264, %v4263
        %v4333 = vpack.c.b16 %v4266, %v4265
        %v4334 = vpack.c.b16 %v4268, %v4267
        %v4335 = vpack.c.b16 %v4270, %v4269
        %v4336 = vpack.c.b16 %v4272, %v4271
        %v4337 = vpack.c.b16 %v4274, %v4273
        %v4338 = vpack.c.b16 %v4276, %v4275
        %v4339 = vpack.c.b16 %v4278, %v4277
        %v4340 = vpack.c.b16 %v4280, %v4279
        %v4341 = vpack.c.b16 %v4282, %v4281
        %v4342 = vpack.c.b16 %v4284, %v4283
        %v4343 = vpack.c.b16 %v4286, %v4285
        %v4344 = vpack.c.b16 %v4288, %v4287
        %v4345 = vpack.c.b16 %v4290, %v4289
        %v4346 = vpack.c.b16 %v4292, %v4291
        %v4347 = vpack.c.b16 %v4294, %v4293
        %v4348 = vpack.c.b16 %v4296, %v4295
        %v4349 = vpack.c.b16 %v4298, %v4297
        %v4350 = vpack.c.b16 %v4300, %v4299
        %v4351 = vpack.c.b16 %v4302, %v4301
        %v4352 = vpack.c.b16 %v4304, %v4303
        %4401 = vmatpush.bf16.msra.mxu0 %v4312
        %4402 = vmatpush.bf16.msra.mxu0 %v4311
        %4403 = vmatpush.bf16.msra.mxu0 %v4310
        %4404 = vmatpush.bf16.msra.mxu0 %v4309
        %4405 = vmatpush.bf16.msra.mxu0 %v4308
        %4406 = vmatpush.bf16.msra.mxu0 %v4307
        %4407 = vmatpush.bf16.msra.mxu0 %v4306
        %4408 = vmatpush.bf16.msra.mxu0 %v4305
        %4409 = vmatmul.bf16.gmra.mxu0 %v3977
        %v4410 = vpop.f32.mrf.mxu0
        %v4411 = vadd.f32 %v4111, %v4410
        %v4412 = vpop.f32.mrf.mxu0
        %v4413 = vadd.f32 %v4111, %v4412
        %4414 = vmatmul.bf16.gmra.mxu0 %v3983
        %v4415 = vpop.f32.mrf.mxu0
        %v4416 = vadd.f32 %v4111, %v4415
        %v4417 = vpop.f32.mrf.mxu0
        %v4418 = vadd.f32 %v4111, %v4417
        %4419 = vmatmul.bf16.gmra.mxu0 %v3989
        %v4420 = vpop.f32.mrf.mxu0
        %v4421 = vadd.f32 %v4111, %v4420
        %v4422 = vpop.f32.mrf.mxu0
        %v4423 = vadd.f32 %v4111, %v4422
        %4424 = vmatmul.bf16.gmra.mxu0 %v3995
        %v4425 = vpop.f32.mrf.mxu0
        %v4426 = vadd.f32 %v4111, %v4425
        %v4427 = vpop.f32.mrf.mxu0
        %v4428 = vadd.f32 %v4111, %v4427
        %4429 = vmatmul.bf16.gmra.mxu0 %v4001
        %v4430 = vpop.f32.mrf.mxu0
        %v4431 = vadd.f32 %v4111, %v4430
        %v4432 = vpop.f32.mrf.mxu0
        %v4433 = vadd.f32 %v4111, %v4432
        %4434 = vmatmul.bf16.gmra.mxu0 %v4007
        %v4435 = vpop.f32.mrf.mxu0
        %v4436 = vadd.f32 %v4111, %v4435
        %v4437 = vpop.f32.mrf.mxu0
        %4438 = vdwg.mxu0
        %4439 = vmatpush.bf16.msra.mxu0 %v4320
        %4440 = vmatpush.bf16.msra.mxu0 %v4319
        %4441 = vmatpush.bf16.msra.mxu0 %v4318
        %4442 = vmatpush.bf16.msra.mxu0 %v4317
        %4443 = vmatpush.bf16.msra.mxu0 %v4316
        %4444 = vmatpush.bf16.msra.mxu0 %v4315
        %4445 = vmatpush.bf16.msra.mxu0 %v4314
        %4446 = vmatpush.bf16.msra.mxu0 %v4313
        %4447 = vmatmul.bf16.gmra.mxu0 %v3978
        %v4448 = vpop.f32.mrf.mxu0
        %v4449 = vadd.f32 %v4411, %v4448
        %v4450 = vpop.f32.mrf.mxu0
        %v4451 = vadd.f32 %v4413, %v4450
        %4452 = vmatmul.bf16.gmra.mxu0 %v3984
        %v4453 = vpop.f32.mrf.mxu0
        %v4454 = vadd.f32 %v4416, %v4453
        %v4455 = vpop.f32.mrf.mxu0
        %v4456 = vadd.f32 %v4418, %v4455
        %4457 = vmatmul.bf16.gmra.mxu0 %v3990
        %v4458 = vpop.f32.mrf.mxu0
        %v4459 = vadd.f32 %v4421, %v4458
        %v4460 = vpop.f32.mrf.mxu0
        %v4461 = vadd.f32 %v4423, %v4460
        %4462 = vmatmul.bf16.gmra.mxu0 %v3996
        %v4463 = vpop.f32.mrf.mxu0
        %v4464 = vadd.f32 %v4426, %v4463
        %v4465 = vpop.f32.mrf.mxu0
        %v4466 = vadd.f32 %v4428, %v4465
        %4467 = vmatmul.bf16.gmra.mxu0 %v4002
        %v4468 = vpop.f32.mrf.mxu0
        %v4469 = vadd.f32 %v4431, %v4468
        %v4470 = vpop.f32.mrf.mxu0
        %v4471 = vadd.f32 %v4433, %v4470
        %4472 = vmatmul.bf16.gmra.mxu0 %v4008
        %v4473 = vpop.f32.mrf.mxu0
        %v4474 = vadd.f32 %v4436, %v4473
        %v4475 = vpop.f32.mrf.mxu0
        %4476 = vdwg.mxu0
        %4477 = vmatpush.bf16.msra.mxu0 %v4328
        %4478 = vmatpush.bf16.msra.mxu0 %v4327
        %4479 = vmatpush.bf16.msra.mxu0 %v4326
        %4480 = vmatpush.bf16.msra.mxu0 %v4325
        %4481 = vmatpush.bf16.msra.mxu0 %v4324
        %4482 = vmatpush.bf16.msra.mxu0 %v4323
        %4483 = vmatpush.bf16.msra.mxu0 %v4322
        %4484 = vmatpush.bf16.msra.mxu0 %v4321
        %4485 = vmatmul.bf16.gmra.mxu0 %v3979
        %v4486 = vpop.f32.mrf.mxu0
        %v4487 = vadd.f32 %v4449, %v4486
        %v4488 = vpop.f32.mrf.mxu0
        %v4489 = vadd.f32 %v4451, %v4488
        %4490 = vmatmul.bf16.gmra.mxu0 %v3985
        %v4491 = vpop.f32.mrf.mxu0
        %v4492 = vadd.f32 %v4454, %v4491
        %v4493 = vpop.f32.mrf.mxu0
        %v4494 = vadd.f32 %v4456, %v4493
        %4495 = vmatmul.bf16.gmra.mxu0 %v3991
        %v4496 = vpop.f32.mrf.mxu0
        %v4497 = vadd.f32 %v4459, %v4496
        %v4498 = vpop.f32.mrf.mxu0
        %v4499 = vadd.f32 %v4461, %v4498
        %4500 = vmatmul.bf16.gmra.mxu0 %v3997
        %v4501 = vpop.f32.mrf.mxu0
        %v4502 = vadd.f32 %v4464, %v4501
        %v4503 = vpop.f32.mrf.mxu0
        %v4504 = vadd.f32 %v4466, %v4503
        %4505 = vmatmul.bf16.gmra.mxu0 %v4003
        %v4506 = vpop.f32.mrf.mxu0
        %v4507 = vadd.f32 %v4469, %v4506
        %v4508 = vpop.f32.mrf.mxu0
        %v4509 = vadd.f32 %v4471, %v4508
        %4510 = vmatmul.bf16.gmra.mxu0 %v4009
        %v4511 = vpop.f32.mrf.mxu0
        %v4512 = vadd.f32 %v4474, %v4511
        %v4513 = vpop.f32.mrf.mxu0
        %4514 = vdwg.mxu0
        %4515 = vmatpush.bf16.msra.mxu0 %v4336
        %4516 = vmatpush.bf16.msra.mxu0 %v4335
        %4517 = vmatpush.bf16.msra.mxu0 %v4334
        %4518 = vmatpush.bf16.msra.mxu0 %v4333
        %4519 = vmatpush.bf16.msra.mxu0 %v4332
        %4520 = vmatpush.bf16.msra.mxu0 %v4331
        %4521 = vmatpush.bf16.msra.mxu0 %v4330
        %4522 = vmatpush.bf16.msra.mxu0 %v4329
        %4523 = vmatmul.bf16.gmra.mxu0 %v3980
        %v4524 = vpop.f32.mrf.mxu0
        %v4525 = vadd.f32 %v4487, %v4524
        %v4526 = vpop.f32.mrf.mxu0
        %v4527 = vadd.f32 %v4489, %v4526
        %4528 = vmatmul.bf16.gmra.mxu0 %v3986
        %v4529 = vpop.f32.mrf.mxu0
        %v4530 = vadd.f32 %v4492, %v4529
        %v4531 = vpop.f32.mrf.mxu0
        %v4532 = vadd.f32 %v4494, %v4531
        %4533 = vmatmul.bf16.gmra.mxu0 %v3992
        %v4534 = vpop.f32.mrf.mxu0
        %v4535 = vadd.f32 %v4497, %v4534
        %v4536 = vpop.f32.mrf.mxu0
        %v4537 = vadd.f32 %v4499, %v4536
        %4538 = vmatmul.bf16.gmra.mxu0 %v3998
        %v4539 = vpop.f32.mrf.mxu0
        %v4540 = vadd.f32 %v4502, %v4539
        %v4541 = vpop.f32.mrf.mxu0
        %v4542 = vadd.f32 %v4504, %v4541
        %4543 = vmatmul.bf16.gmra.mxu0 %v4004
        %v4544 = vpop.f32.mrf.mxu0
        %v4545 = vadd.f32 %v4507, %v4544
        %v4546 = vpop.f32.mrf.mxu0
        %v4547 = vadd.f32 %v4509, %v4546
        %4548 = vmatmul.bf16.gmra.mxu0 %v4010
        %v4549 = vpop.f32.mrf.mxu0
        %v4550 = vadd.f32 %v4512, %v4549
        %v4551 = vpop.f32.mrf.mxu0
        %4552 = vdwg.mxu0
        %4553 = vmatpush.bf16.msra.mxu0 %v4344
        %4554 = vmatpush.bf16.msra.mxu0 %v4343
        %4555 = vmatpush.bf16.msra.mxu0 %v4342
        %4556 = vmatpush.bf16.msra.mxu0 %v4341
        %4557 = vmatpush.bf16.msra.mxu0 %v4340
        %4558 = vmatpush.bf16.msra.mxu0 %v4339
        %4559 = vmatpush.bf16.msra.mxu0 %v4338
        %4560 = vmatpush.bf16.msra.mxu0 %v4337
        %4561 = vmatmul.bf16.gmra.mxu0 %v3981
        %v4562 = vpop.f32.mrf.mxu0
        %v4563 = vadd.f32 %v4525, %v4562
        %v4564 = vpop.f32.mrf.mxu0
        %v4565 = vadd.f32 %v4527, %v4564
        %4566 = vmatmul.bf16.gmra.mxu0 %v3987
        %v4567 = vpop.f32.mrf.mxu0
        %v4568 = vadd.f32 %v4530, %v4567
        %v4569 = vpop.f32.mrf.mxu0
        %v4570 = vadd.f32 %v4532, %v4569
        %4571 = vmatmul.bf16.gmra.mxu0 %v3993
        %v4572 = vpop.f32.mrf.mxu0
        %v4573 = vadd.f32 %v4535, %v4572
        %v4574 = vpop.f32.mrf.mxu0
        %v4575 = vadd.f32 %v4537, %v4574
        %4576 = vmatmul.bf16.gmra.mxu0 %v3999
        %v4577 = vpop.f32.mrf.mxu0
        %v4578 = vadd.f32 %v4540, %v4577
        %v4579 = vpop.f32.mrf.mxu0
        %v4580 = vadd.f32 %v4542, %v4579
        %4581 = vmatmul.bf16.gmra.mxu0 %v4005
        %v4582 = vpop.f32.mrf.mxu0
        %v4583 = vadd.f32 %v4545, %v4582
        %v4584 = vpop.f32.mrf.mxu0
        %v4585 = vadd.f32 %v4547, %v4584
        %4586 = vmatmul.bf16.gmra.mxu0 %v4011
        %v4587 = vpop.f32.mrf.mxu0
        %v4588 = vadd.f32 %v4550, %v4587
        %v4589 = vpop.f32.mrf.mxu0
        %4590 = vdwg.mxu0
        %4591 = vmatpush.bf16.msra.mxu0 %v4352
        %4592 = vmatpush.bf16.msra.mxu0 %v4351
        %4593 = vmatpush.bf16.msra.mxu0 %v4350
        %4594 = vmatpush.bf16.msra.mxu0 %v4349
        %4595 = vmatpush.bf16.msra.mxu0 %v4348
        %4596 = vmatpush.bf16.msra.mxu0 %v4347
        %4597 = vmatpush.bf16.msra.mxu0 %v4346
        %4598 = vmatpush.bf16.msra.mxu0 %v4345
        %4599 = vmatmul.bf16.gmra.mxu0 %v3982
        %v4600 = vpop.f32.mrf.mxu0
        %v4601 = vadd.f32 %v4563, %v4600
        %v4602 = vpop.f32.mrf.mxu0
        %v4603 = vadd.f32 %v4565, %v4602
        %4604 = vmatmul.bf16.gmra.mxu0 %v3988
        %v4605 = vpop.f32.mrf.mxu0
        %v4606 = vadd.f32 %v4568, %v4605
        %v4607 = vpop.f32.mrf.mxu0
        %v4608 = vadd.f32 %v4570, %v4607
        %4609 = vmatmul.bf16.gmra.mxu0 %v3994
        %v4610 = vpop.f32.mrf.mxu0
        %v4611 = vadd.f32 %v4573, %v4610
        %v4612 = vpop.f32.mrf.mxu0
        %v4613 = vadd.f32 %v4575, %v4612
        %4614 = vmatmul.bf16.gmra.mxu0 %v4000
        %v4615 = vpop.f32.mrf.mxu0
        %v4616 = vadd.f32 %v4578, %v4615
        %v4617 = vpop.f32.mrf.mxu0
        %v4618 = vadd.f32 %v4580, %v4617
        %4619 = vmatmul.bf16.gmra.mxu0 %v4006
        %v4620 = vpop.f32.mrf.mxu0
        %v4621 = vadd.f32 %v4583, %v4620
        %v4622 = vpop.f32.mrf.mxu0
        %v4623 = vadd.f32 %v4585, %v4622
        %4624 = vmatmul.bf16.gmra.mxu0 %v4012
        %v4625 = vpop.f32.mrf.mxu0
        %v4626 = vadd.f32 %v4588, %v4625
        %v4627 = vpop.f32.mrf.mxu0
        %4628 = vdwg.mxu0
        %v4629 = vmax.f32 %v4601, 0.0
        %v4630 = vmax.f32 %v4603, 0.0
        %v4631 = vmax.f32 %v4606, 0.0
        %v4632 = vmax.f32 %v4608, 0.0
        %v4633 = vmax.f32 %v4611, 0.0
        %v4634 = vmax.f32 %v4613, 0.0
        %v4635 = vmax.f32 %v4616, 0.0
        %v4636 = vmax.f32 %v4618, 0.0
        %v4637 = vmax.f32 %v4621, 0.0
        %v4638 = vmax.f32 %v4623, 0.0
        %v4639 = vmax.f32 %v4626, 0.0
        %v4640 = vlaneseq
        %v4641 = vshrl.u32 %v4640, 7
        %v4642 = vlaneseq
        %v4643 = vand.u32 %v4642, 127
        %v4644 = vmul.u32 %v4641, 11
        %vm4645 = vcmp.ge.s32.totalorder %v4643, %v4644
        %v4646 = vadd.s32 %v4641, 1
        %v4647 = vmul.u32 %v4646, 11
        %vm4648 = vcmp.lt.s32.totalorder %v4643, %v4647
        %vm4649 = vmand %vm4645, %vm4648
        %v4650 = vsel %vm4649, 0.09090909, 0.0
        %vm4651 = vcmask 719872
        %v4653 = vsel %vm4651, %v4650, 0
        %4655 = vmatpush.msra.mxu0 0.0
        %4656 = vmatpush.msra.mxu0 0.0
        %4657 = vmatpush.msra.mxu0 0.0
        %4658 = vmatpush.msra.mxu0 0.0
        %4659 = vmatpush.msra.mxu0 0.0
        %4660 = vmatpush.msra.mxu0 %v4639
        %4661 = vmatpush.msra.mxu0 %v4638
        %4662 = vmatpush.msra.mxu0 %v4637
        %4663 = vmatpush.msra.mxu0 %v4636
        %4664 = vmatpush.msra.mxu0 %v4635
        %4665 = vmatpush.msra.mxu0 %v4634
        %4666 = vmatpush.msra.mxu0 %v4633
        %4667 = vmatpush.msra.mxu0 %v4632
        %4668 = vmatpush.msra.mxu0 %v4631
        %4669 = vmatpush.msra.mxu0 %v4630
        %4670 = vmatpush.msra.mxu0 %v4629
        %4671 = vmatmul.f32.gmra.mxu0 %v4653
        %v4672 = vpop.f32.mrf.mxu0
        %v4673 = vadd.f32 0.0, %v4672
        %4674 = vdwg.mxu0
        %4675 = vst [vmem:[%s272] sm:$0xff] %v4673
        %s4676 = sand.u32 %s181, 1
        %s4677 = scalar_lea.sflag [#allocation3], %s4676
        %s4678 = sand.u32 %s181, 1
        %s4679 = smul.addr %s4678, 8
        %s4680 = scalar_lea.vmem [#allocation2], %s4679
        // Predicated region
        $region49: #{protein_net_forward.1} parent=47 // pred_check
          %p4681 = pneg %p191
        $region50: #{protein_net_forward.1} parent=47 // pred_check_branch
          %4683 = sbr.rel (%p4681) target = $region52
        $region51: #{protein_net_forward.1} parent=47 // pred_region
          %4685 = vsyncadd %s4677, 0
          %s4686 = smul.addr %s21, 8
          %s4687 = scalar_lea.hbm %s7, %s4686
          %s4689 = sshll.u32 %s4680, 4
          %s4690 = int_to_ptr.vmem [resolvable:$true] %s4689
          %s4691 = sshll.u32 %s4687, 4
          %s4692 = int_to_ptr.hbm [resolvable:$true] %s4691
          %4694 = dma.vmem_to_hbm [thread:$0]  %s4690, 128, %s4692, %s4677
        $region52: #{protein_net_forward.1} parent=47 // pred_fallthru
          _
      $region48: #{protein_net_forward.1} parent=5 // pred_fallthru
        _
      %p4695 = scmp.le.s32.totalorder 2, %s16
      // Predicated region
      $region53: #{protein_net_forward.1} parent=5 // pred_check
        %p4696 = pneg %p4695
      $region54: #{protein_net_forward.1} parent=5 // pred_check_branch
        %4698 = sbr.rel (%p4696) target = $region56
      $region55: #{protein_net_forward.1} parent=5 // pred_region
        %s4699 = ssub.s32 %s16, 2
        // Predicated region
        $region57: #{protein_net_forward.1} parent=55 // pred_check
          %p4700 = pneg %p197
        $region58: #{protein_net_forward.1} parent=55 // pred_check_branch
          %4702 = sbr.rel (%p4700) target = $region60
        $region59: #{protein_net_forward.1} parent=55 // pred_region
          %s4703 = sand.u32 %s182, 1
          %s4704 = scalar_lea.sflag [#allocation3], %s4703
          %s4705 = sand.u32 %s182, 1
          %s4706 = smul.addr %s4705, 8
          %s4707 = scalar_lea.vmem [#allocation2], %s4706
          %4709 = dma.done %s4704, 128
        $region60: #{protein_net_forward.1} parent=55 // pred_fallthru
          _
      $region56: #{protein_net_forward.1} parent=5 // pred_fallthru
        _
    $region6: #{protein_net_forward.1} parent=1 // loop_footer
      %s20 = sadd.s32 1, %s16
    $region7: #{protein_net_forward.1} parent=1 // loop_footer_branch
      %15 = sbr.rel target = $region3
    $region8: #{protein_net_forward.1} parent=1 // loop_exit
      _
    %4710 = vsyncpa [#allocation3], 1
    %s4711 = scalar_lea.sflag [#allocation3], 1
    %4712 = vsyncpa %s4711, 1

</llo_original>
